<compile_context>
chip_gen: v6e
topology: v6e:2x2x1
jax: 0.10.0
libtpu: 0.0.40
codegen_flags: <defaults>
</compile_context>

<pallas_src>
import jax
import jax.numpy as jnp
from jax.experimental import pallas as pl
from jax.experimental.pallas import tpu as pltpu


def _round_up(x, m):
    return ((x + m - 1) // m) * m


# ----------------------------------------------------------------------------
# Pallas kernel: fused double_conv for one image
# ----------------------------------------------------------------------------
def _double_conv_kernel(x_ref, w1_ref, s1_ref, w2_ref, s2_ref, o_ref, h_ref):
    # x_ref : (1, H+2, W+2, Cin)  bf16, spatially zero-padded input
    # w1_ref: (9*Cin, Cp)         bf16, conv1 weights with BN1 scale folded in
    # s1_ref: (1, Cp)             f32,  BN1 shift (absorbs conv1 bias)
    # w2_ref: (9*Cp, Cp)          bf16, conv2 weights with BN2 scale folded in
    # s2_ref: (1, Cp)             f32,  BN2 shift (absorbs conv2 bias)
    # o_ref : (1, H, W, Cp)       f32 output (Cp is a multiple of 128 -> lane-dense)
    # h_ref : (H+2, W+2, Cp)      f32 VMEM scratch: zero-padded intermediate
    H = o_ref.shape[1]
    W = o_ref.shape[2]
    Cin = x_ref.shape[3]
    Cp = o_ref.shape[3]

    # ----- layer 1: in-kernel im2col -> matmul -> shift -> ReLU -------------
    x = x_ref[0].astype(jnp.float32)                       # (H+2, W+2, Cin)
    cols = []
    for dy in range(3):
        for dx in range(3):
            cols.append(x[dy:dy + H, dx:dx + W, :].reshape(H * W, Cin))
    patches1 = jnp.concatenate(cols, axis=-1).astype(jnp.bfloat16)  # (H*W, 9*Cin)
    acc1 = jnp.dot(patches1, w1_ref[...],
                   preferred_element_type=jnp.float32)     # (H*W, Cp)
    h = jnp.maximum(acc1 + s1_ref[...], 0.0)               # f32

    # zero-padded intermediate stays entirely in VMEM (no HBM round trip)
    h_ref[...] = jnp.zeros_like(h_ref)
    h_ref[pl.ds(1, H), pl.ds(1, W), :] = h.reshape(H, W, Cp)

    # ----- layer 2 -----------------------------------------------------------
    cols2 = []
    for dy in range(3):
        for dx in range(3):
            cols2.append(
                h_ref[pl.ds(dy, H), pl.ds(dx, W), :].reshape(H * W, Cp))
    patches2 = jnp.concatenate(cols2, axis=-1).astype(jnp.bfloat16)  # (H*W, 9*Cp)
    acc2 = jnp.dot(patches2, w2_ref[...],
                   preferred_element_type=jnp.float32)     # (H*W, Cp)
    y = jnp.maximum(acc2 + s2_ref[...], 0.0)
    o_ref[0] = y.reshape(H, W, Cp)


# ----------------------------------------------------------------------------
# Wrapper: weight folding + pallas_call
# ----------------------------------------------------------------------------
def _fold_conv_bn(w_oihw, bias, gamma, beta, mean, var, eps, cin_pad, cout_pad):
    """Fold eval-mode BN into conv weights; returns (bf16 matrix, f32 shift)."""
    cout, cin, kh, kw = w_oihw.shape
    scale = gamma / jnp.sqrt(var + eps)                    # (cout,)
    shift = beta + scale * (bias - mean)                   # (cout,)
    w = jnp.transpose(w_oihw, (2, 3, 1, 0)) * scale        # (3,3,cin,cout)
    w = jnp.pad(w, ((0, 0), (0, 0),
                    (0, cin_pad - cin), (0, cout_pad - cout)))
    wmat = w.reshape(kh * kw * cin_pad, cout_pad).astype(jnp.bfloat16)
    shift_p = jnp.pad(shift, (0, cout_pad - cout))
    return wmat, shift_p.reshape(1, cout_pad).astype(jnp.float32)


def _double_conv_pallas(x_nhwc, params, eps=1e-5):
    N, H, W, Cin = x_nhwc.shape
    Cout = params["w1"].shape[0]
    Cp = max(128, _round_up(Cout, 128))                    # lane-dense channels

    w1, s1 = _fold_conv_bn(params["w1"], params["b1"], params["g1"],
                           params["be1"], params["m1"], params["v1"],
                           eps, cin_pad=Cin, cout_pad=Cp)
    w2, s2 = _fold_conv_bn(params["w2"], params["b2"], params["g2"],
                           params["be2"], params["m2"], params["v2"],
                           eps, cin_pad=Cp, cout_pad=Cp)

    # bf16 activation in HBM, spatially zero-padded for conv1's padding=1
    xp = jnp.pad(x_nhwc, ((0, 0), (1, 1), (1, 1), (0, 0))).astype(jnp.bfloat16)

    out = pl.pallas_call(
        _double_conv_kernel,
        out_shape=jax.ShapeDtypeStruct((N, H, W, Cp), jnp.float32),
        grid=(N,),
        in_specs=[
            pl.BlockSpec((1, H + 2, W + 2, Cin), lambda n: (n, 0, 0, 0)),
            pl.BlockSpec((9 * Cin, Cp), lambda n: (0, 0)),
            pl.BlockSpec((1, Cp), lambda n: (0, 0)),
            pl.BlockSpec((9 * Cp, Cp), lambda n: (0, 0)),
            pl.BlockSpec((1, Cp), lambda n: (0, 0)),
        ],
        out_specs=pl.BlockSpec((1, H, W, Cp), lambda n: (n, 0, 0, 0)),
        scratch_shapes=[pltpu.VMEM((H + 2, W + 2, Cp), jnp.float32)],
        compiler_params=pltpu.CompilerParams(
            dimension_semantics=("parallel",),
            vmem_limit_bytes=32 * 1024 * 1024),
    )(xp, w1, s1, w2, s2)

    return out[..., :Cout]                                 # drop channel padding


# ----------------------------------------------------------------------------
# Plain-JAX glue: bilinear x2 upsample (align_corners=True), pad, concat
# ----------------------------------------------------------------------------
def _bilinear_upsample_x2(x_nhwc):
    N, H, W, C = x_nhwc.shape
    Ho, Wo = 2 * H, 2 * W

    def coords(n_in, n_out):
        if n_in == 1:
            z = jnp.zeros((n_out,), jnp.int32)
            return z, z, jnp.zeros((n_out,), jnp.float32)
        pos = jnp.arange(n_out, dtype=jnp.float32) * (n_in - 1) / (n_out - 1)
        i0 = jnp.clip(jnp.floor(pos).astype(jnp.int32), 0, n_in - 2)
        return i0, i0 + 1, pos - i0.astype(jnp.float32)

    y0, y1, fy = coords(H, Ho)
    c0, c1, fx = coords(W, Wo)
    rows = (x_nhwc[:, y0] * (1.0 - fy)[None, :, None, None]
            + x_nhwc[:, y1] * fy[None, :, None, None])
    out = (rows[:, :, c0] * (1.0 - fx)[None, None, :, None]
           + rows[:, :, c1] * fx[None, None, :, None])
    return out


def _preprocess(x1_nchw, x2_nchw):
    # TODO(synk): upsample / pad / concat are cheap data-movement glue kept in
    # plain JAX rather than Pallas.
    x1 = jnp.transpose(x1_nchw, (0, 2, 3, 1))
    x2 = jnp.transpose(x2_nchw, (0, 2, 3, 1))
    x1 = _bilinear_upsample_x2(x1)
    dY = x2.shape[1] - x1.shape[1]
    dX = x2.shape[2] - x1.shape[2]
    x1 = jnp.pad(x1, ((0, 0), (dY // 2, dY - dY // 2),
                      (dX // 2, dX - dX // 2), (0, 0)))
    return jnp.concatenate([x2, x1], axis=-1)              # [x2, x1] like torch.cat


# ----------------------------------------------------------------------------
# up module: params + forward
# ----------------------------------------------------------------------------
def init_up_params(key, in_ch, out_ch):
    ks = jax.random.split(key, 8)

    def conv_init(kw, kb, cin, cout):
        bound = float(1.0 / (cin * 9) ** 0.5)
        w = jax.random.uniform(kw, (cout, cin, 3, 3), jnp.float32, -bound, bound)
        b = jax.random.uniform(kb, (cout,), jnp.float32, -bound, bound)
        return w, b

    def bn_init(kg, kb, c):
        gamma = 1.0 + 0.1 * jax.random.normal(kg, (c,), jnp.float32)
        beta = 0.1 * jax.random.normal(kb, (c,), jnp.float32)
        return gamma, beta, jnp.zeros((c,), jnp.float32), jnp.ones((c,), jnp.float32)

    w1, b1 = conv_init(ks[0], ks[1], in_ch, out_ch)
    g1, be1, m1, v1 = bn_init(ks[2], ks[3], out_ch)
    w2, b2 = conv_init(ks[4], ks[5], out_ch, out_ch)
    g2, be2, m2, v2 = bn_init(ks[6], ks[7], out_ch)
    return dict(w1=w1, b1=b1, g1=g1, be1=be1, m1=m1, v1=v1,
                w2=w2, b2=b2, g2=g2, be2=be2, m2=m2, v2=v2)


@jax.jit
def up_forward(x1_nchw, x2_nchw, params):
    # TODO(synk): BatchNorm is eval-mode (running stats folded to scale/shift),
    # not PyTorch train-mode batch statistics.
    x = _preprocess(x1_nchw, x2_nchw)                      # NHWC
    y = _double_conv_pallas(x, params)
    return jnp.transpose(y, (0, 3, 1, 2))                  # NHWC -> NCHW


# ----------------------------------------------------------------------------
# Pure-JAX reference (f32) for validation
# ----------------------------------------------------------------------------
def _double_conv_ref(x_nhwc, p, eps=1e-5):
    def layer(x, w, b, g, be, m, v):
        y = jax.lax.conv_general_dilated(
            x, jnp.transpose(w, (2, 3, 1, 0)),
            window_strides=(1, 1), padding="SAME",
            dimension_numbers=("NHWC", "HWIO", "NHWC"))
        y = (y + b - m) * (g / jnp.sqrt(v + eps)) + be
        return jnp.maximum(y, 0.0)

    x = layer(x_nhwc, p["w1"], p["b1"], p["g1"], p["be1"], p["m1"], p["v1"])
    x = layer(x, p["w2"], p["b2"], p["g2"], p["be2"], p["m2"], p["v2"])
    return x


@jax.jit
def up_forward_ref(x1_nchw, x2_nchw, params):
    x = _preprocess(x1_nchw, x2_nchw)
    return jnp.transpose(_double_conv_ref(x, params), (0, 3, 1, 2))


if __name__ == "__main__":
    key = jax.random.PRNGKey(0)
    k1, k2, kp = jax.random.split(key, 3)

    N = 2
    C1, C2 = 4, 4            # channels of x1 (to upsample) and x2 (skip connection)
    H1, W1 = 8, 8
    H2, W2 = 16, 16
    in_ch, out_ch = C1 + C2, 8

    x1 = jax.random.normal(k1, (N, C1, H1, W1), jnp.float32)
    x2 = jax.random.normal(k2, (N, C2, H2, W2), jnp.float32)
    params = init_up_params(kp, in_ch, out_ch)

    out = jax.block_until_ready(up_forward(x1, x2, params))
    ref = jax.block_until_ready(up_forward_ref(x1, x2, params))

    assert out.shape == (N, out_ch, H2, W2), out.shape
    assert bool(jnp.all(out >= 0.0)), "ReLU output should be non-negative"
    assert bool(jnp.all(jnp.isfinite(out)))
    err = float(jnp.max(jnp.abs(out - ref)))
    assert err < 0.1, f"max abs err vs reference too large: {err}"
    print("KERNEL_OK")
</pallas_src>

<mosaic_0001>
module attributes {stable_mosaic.version = 11 : i64} {
  func.func @_double_conv_kernel(%arg0: i32, %arg1: memref<1x18x18x8xbf16, #tpu.memory_space<vmem>>, %arg2: memref<72x128xbf16, #tpu.memory_space<vmem>>, %arg3: memref<1x128xf32, #tpu.memory_space<vmem>>, %arg4: memref<1152x128xbf16, #tpu.memory_space<vmem>>, %arg5: memref<1x128xf32, #tpu.memory_space<vmem>>, %arg6: memref<1x16x16x128xf32, #tpu.memory_space<vmem>>, %arg7: memref<18x18x128xf32, #tpu.memory_space<vmem>>) attributes {dimension_semantics = [#tpu.dimension_semantics<parallel>], iteration_bounds = array<i64: 2>, scalar_prefetch = 0 : i64, scratch_operands = 1 : i64, tpu.core_type = #tpu.core_type<tc>, window_params = [{transform_indices = @transform_0, window_bounds = array<i64: 1, 18, 18, 8>}, {pipeline_mode = #tpu.pipeline_mode<synchronous>, transform_indices = @transform_1, window_bounds = array<i64: 72, 128>}, {pipeline_mode = #tpu.pipeline_mode<synchronous>, transform_indices = @transform_2, window_bounds = array<i64: 1, 128>}, {pipeline_mode = #tpu.pipeline_mode<synchronous>, transform_indices = @transform_3, window_bounds = array<i64: 1152, 128>}, {pipeline_mode = #tpu.pipeline_mode<synchronous>, transform_indices = @transform_4, window_bounds = array<i64: 1, 128>}, {transform_indices = @transform_5, window_bounds = array<i64: 1, 16, 16, 128>}]} {
    %c0 = arith.constant 0 : index
    %c0_0 = arith.constant 0 : index
    %c0_1 = arith.constant 0 : index
    %c0_2 = arith.constant 0 : index
    %0 = vector.load %arg1[%c0, %c0_0, %c0_1, %c0_2] : memref<1x18x18x8xbf16, #tpu.memory_space<vmem>>, vector<1x18x18x8xbf16>
    %1 = vector.shape_cast %0 : vector<1x18x18x8xbf16> to vector<18x18x8xbf16>
    %2 = arith.extf %1 : vector<18x18x8xbf16> to vector<18x18x8xf32>
    %3 = vector.extract_strided_slice %2 {offsets = [0, 0, 0], sizes = [16, 16, 8], strides = [1, 1, 1]} : vector<18x18x8xf32> to vector<16x16x8xf32>
    %4 = vector.shape_cast %3 : vector<16x16x8xf32> to vector<256x8xf32>
    %5 = vector.extract_strided_slice %2 {offsets = [0, 1, 0], sizes = [16, 16, 8], strides = [1, 1, 1]} : vector<18x18x8xf32> to vector<16x16x8xf32>
    %6 = vector.shape_cast %5 : vector<16x16x8xf32> to vector<256x8xf32>
    %7 = vector.extract_strided_slice %2 {offsets = [0, 2, 0], sizes = [16, 16, 8], strides = [1, 1, 1]} : vector<18x18x8xf32> to vector<16x16x8xf32>
    %8 = vector.shape_cast %7 : vector<16x16x8xf32> to vector<256x8xf32>
    %9 = vector.extract_strided_slice %2 {offsets = [1, 0, 0], sizes = [16, 16, 8], strides = [1, 1, 1]} : vector<18x18x8xf32> to vector<16x16x8xf32>
    %10 = vector.shape_cast %9 : vector<16x16x8xf32> to vector<256x8xf32>
    %11 = vector.extract_strided_slice %2 {offsets = [1, 1, 0], sizes = [16, 16, 8], strides = [1, 1, 1]} : vector<18x18x8xf32> to vector<16x16x8xf32>
    %12 = vector.shape_cast %11 : vector<16x16x8xf32> to vector<256x8xf32>
    %13 = vector.extract_strided_slice %2 {offsets = [1, 2, 0], sizes = [16, 16, 8], strides = [1, 1, 1]} : vector<18x18x8xf32> to vector<16x16x8xf32>
    %14 = vector.shape_cast %13 : vector<16x16x8xf32> to vector<256x8xf32>
    %15 = vector.extract_strided_slice %2 {offsets = [2, 0, 0], sizes = [16, 16, 8], strides = [1, 1, 1]} : vector<18x18x8xf32> to vector<16x16x8xf32>
    %16 = vector.shape_cast %15 : vector<16x16x8xf32> to vector<256x8xf32>
    %17 = vector.extract_strided_slice %2 {offsets = [2, 1, 0], sizes = [16, 16, 8], strides = [1, 1, 1]} : vector<18x18x8xf32> to vector<16x16x8xf32>
    %18 = vector.shape_cast %17 : vector<16x16x8xf32> to vector<256x8xf32>
    %19 = vector.extract_strided_slice %2 {offsets = [2, 2, 0], sizes = [16, 16, 8], strides = [1, 1, 1]} : vector<18x18x8xf32> to vector<16x16x8xf32>
    %20 = vector.shape_cast %19 : vector<16x16x8xf32> to vector<256x8xf32>
    %21 = tpu.concatenate %4, %6, %8, %10, %12, %14, %16, %18, %20 in 1 : vector<256x8xf32>, vector<256x8xf32>, vector<256x8xf32>, vector<256x8xf32>, vector<256x8xf32>, vector<256x8xf32>, vector<256x8xf32>, vector<256x8xf32>, vector<256x8xf32> -> vector<256x72xf32>
    %22 = arith.truncf %21 : vector<256x72xf32> to vector<256x72xbf16>
    %c0_3 = arith.constant 0 : index
    %c0_4 = arith.constant 0 : index
    %23 = vector.load %arg2[%c0_3, %c0_4] : memref<72x128xbf16, #tpu.memory_space<vmem>>, vector<72x128xbf16>
    %cst = arith.constant dense<0.000000e+00> : vector<256x128xf32>
    %24 = tpu.matmul %22, %23, %cst {dimension_numbers = #tpu.dot_dimension_numbers<[1], [0], [0], [1], [0, 0, 1, 1], [], []>} : vector<256x72xbf16>, vector<72x128xbf16>, vector<256x128xf32> -> vector<256x128xf32>
    %c0_5 = arith.constant 0 : index
    %c0_6 = arith.constant 0 : index
    %25 = vector.load %arg3[%c0_5, %c0_6] : memref<1x128xf32, #tpu.memory_space<vmem>>, vector<1x128xf32>
    %26 = vector.broadcast %25 : vector<1x128xf32> to vector<256x128xf32>
    %27 = arith.addf %24, %26 : vector<256x128xf32>
    %cst_7 = arith.constant 0.000000e+00 : f32
    %28 = vector.broadcast %cst_7 : f32 to vector<256x128xf32>
    %29 = arith.maximumf %27, %28 : vector<256x128xf32>
    %cst_8 = arith.constant 0.000000e+00 : f32
    %30 = vector.broadcast %cst_8 : f32 to vector<18x18x128xf32>
    %c0_9 = arith.constant 0 : index
    %c0_10 = arith.constant 0 : index
    %c0_11 = arith.constant 0 : index
    %31 = vector.load %arg7[%c0_9, %c0_10, %c0_11] : memref<18x18x128xf32, #tpu.memory_space<vmem>>, vector<18x18x128xf32>
    tpu.vector_store %arg7[%c0_9, %c0_10, %c0_11], %30 {strides = array<i32>} : memref<18x18x128xf32, #tpu.memory_space<vmem>>, vector<18x18x128xf32>,
    %32 = vector.shape_cast %29 : vector<256x128xf32> to vector<16x16x128xf32>
    %c1 = arith.constant 1 : index
    %c1_12 = arith.constant 1 : index
    %c0_13 = arith.constant 0 : index
    %33 = vector.load %arg7[%c1, %c1_12, %c0_13] : memref<18x18x128xf32, #tpu.memory_space<vmem>>, vector<16x16x128xf32>
    tpu.vector_store %arg7[%c1, %c1_12, %c0_13], %32 {strides = array<i32>} : memref<18x18x128xf32, #tpu.memory_space<vmem>>, vector<16x16x128xf32>,
    %c0_14 = arith.constant 0 : index
    %c0_15 = arith.constant 0 : index
    %c0_16 = arith.constant 0 : index
    %34 = vector.load %arg7[%c0_14, %c0_15, %c0_16] : memref<18x18x128xf32, #tpu.memory_space<vmem>>, vector<16x16x128xf32>
    %35 = vector.shape_cast %34 : vector<16x16x128xf32> to vector<256x128xf32>
    %c0_17 = arith.constant 0 : index
    %c1_18 = arith.constant 1 : index
    %c0_19 = arith.constant 0 : index
    %36 = vector.load %arg7[%c0_17, %c1_18, %c0_19] : memref<18x18x128xf32, #tpu.memory_space<vmem>>, vector<16x16x128xf32>
    %37 = vector.shape_cast %36 : vector<16x16x128xf32> to vector<256x128xf32>
    %c0_20 = arith.constant 0 : index
    %c2 = arith.constant 2 : index
    %c0_21 = arith.constant 0 : index
    %38 = vector.load %arg7[%c0_20, %c2, %c0_21] : memref<18x18x128xf32, #tpu.memory_space<vmem>>, vector<16x16x128xf32>
    %39 = vector.shape_cast %38 : vector<16x16x128xf32> to vector<256x128xf32>
    %c1_22 = arith.constant 1 : index
    %c0_23 = arith.constant 0 : index
    %c0_24 = arith.constant 0 : index
    %40 = vector.load %arg7[%c1_22, %c0_23, %c0_24] : memref<18x18x128xf32, #tpu.memory_space<vmem>>, vector<16x16x128xf32>
    %41 = vector.shape_cast %40 : vector<16x16x128xf32> to vector<256x128xf32>
    %c1_25 = arith.constant 1 : index
    %c1_26 = arith.constant 1 : index
    %c0_27 = arith.constant 0 : index
    %42 = vector.load %arg7[%c1_25, %c1_26, %c0_27] : memref<18x18x128xf32, #tpu.memory_space<vmem>>, vector<16x16x128xf32>
    %43 = vector.shape_cast %42 : vector<16x16x128xf32> to vector<256x128xf32>
    %c1_28 = arith.constant 1 : index
    %c2_29 = arith.constant 2 : index
    %c0_30 = arith.constant 0 : index
    %44 = vector.load %arg7[%c1_28, %c2_29, %c0_30] : memref<18x18x128xf32, #tpu.memory_space<vmem>>, vector<16x16x128xf32>
    %45 = vector.shape_cast %44 : vector<16x16x128xf32> to vector<256x128xf32>
    %c2_31 = arith.constant 2 : index
    %c0_32 = arith.constant 0 : index
    %c0_33 = arith.constant 0 : index
    %46 = vector.load %arg7[%c2_31, %c0_32, %c0_33] : memref<18x18x128xf32, #tpu.memory_space<vmem>>, vector<16x16x128xf32>
    %47 = vector.shape_cast %46 : vector<16x16x128xf32> to vector<256x128xf32>
    %c2_34 = arith.constant 2 : index
    %c1_35 = arith.constant 1 : index
    %c0_36 = arith.constant 0 : index
    %48 = vector.load %arg7[%c2_34, %c1_35, %c0_36] : memref<18x18x128xf32, #tpu.memory_space<vmem>>, vector<16x16x128xf32>
    %49 = vector.shape_cast %48 : vector<16x16x128xf32> to vector<256x128xf32>
    %c2_37 = arith.constant 2 : index
    %c2_38 = arith.constant 2 : index
    %c0_39 = arith.constant 0 : index
    %50 = vector.load %arg7[%c2_37, %c2_38, %c0_39] : memref<18x18x128xf32, #tpu.memory_space<vmem>>, vector<16x16x128xf32>
    %51 = vector.shape_cast %50 : vector<16x16x128xf32> to vector<256x128xf32>
    %52 = tpu.concatenate %35, %37, %39, %41, %43, %45, %47, %49, %51 in 1 : vector<256x128xf32>, vector<256x128xf32>, vector<256x128xf32>, vector<256x128xf32>, vector<256x128xf32>, vector<256x128xf32>, vector<256x128xf32>, vector<256x128xf32>, vector<256x128xf32> -> vector<256x1152xf32>
    %53 = arith.truncf %52 : vector<256x1152xf32> to vector<256x1152xbf16>
    %c0_40 = arith.constant 0 : index
    %c0_41 = arith.constant 0 : index
    %54 = vector.load %arg4[%c0_40, %c0_41] : memref<1152x128xbf16, #tpu.memory_space<vmem>>, vector<1152x128xbf16>
    %cst_42 = arith.constant dense<0.000000e+00> : vector<256x128xf32>
    %55 = tpu.matmul %53, %54, %cst_42 {dimension_numbers = #tpu.dot_dimension_numbers<[1], [0], [0], [1], [0, 0, 1, 1], [], []>} : vector<256x1152xbf16>, vector<1152x128xbf16>, vector<256x128xf32> -> vector<256x128xf32>
    %c0_43 = arith.constant 0 : index
    %c0_44 = arith.constant 0 : index
    %56 = vector.load %arg5[%c0_43, %c0_44] : memref<1x128xf32, #tpu.memory_space<vmem>>, vector<1x128xf32>
    %57 = vector.broadcast %56 : vector<1x128xf32> to vector<256x128xf32>
    %58 = arith.addf %55, %57 : vector<256x128xf32>
    %cst_45 = arith.constant 0.000000e+00 : f32
    %59 = vector.broadcast %cst_45 : f32 to vector<256x128xf32>
    %60 = arith.maximumf %58, %59 : vector<256x128xf32>
    %61 = vector.shape_cast %60 : vector<256x128xf32> to vector<16x16x128xf32>
    %c0_46 = arith.constant 0 : index
    %c0_47 = arith.constant 0 : index
    %c0_48 = arith.constant 0 : index
    %c0_49 = arith.constant 0 : index
    %62 = vector.load %arg6[%c0_46, %c0_47, %c0_48, %c0_49] : memref<1x16x16x128xf32, #tpu.memory_space<vmem>>, vector<1x16x16x128xf32>
    %63 = vector.shape_cast %62 : vector<1x16x16x128xf32> to vector<16x16x128xf32>
    %64 = vector.shape_cast %61 : vector<16x16x128xf32> to vector<1x16x16x128xf32>
    tpu.vector_store %arg6[%c0_46, %c0_47, %c0_48, %c0_49], %64 {strides = array<i32>} : memref<1x16x16x128xf32, #tpu.memory_space<vmem>>, vector<1x16x16x128xf32>,
    return
  }
  func.func @transform_0(%arg0: i32) -> (i32, i32, i32, i32) {
    %c0_i32 = arith.constant 0 : i32
    %c0_i32_0 = arith.constant 0 : i32
    %c0_i32_1 = arith.constant 0 : i32
    %c0_i32_2 = arith.constant 0 : i32
    return %arg0, %c0_i32, %c0_i32_0, %c0_i32_1 : i32, i32, i32, i32
  }
  func.func @transform_1(%arg0: i32) -> (i32, i32) {
    %c0_i32 = arith.constant 0 : i32
    %c0_i32_0 = arith.constant 0 : i32
    %c0_i32_1 = arith.constant 0 : i32
    return %c0_i32, %c0_i32_0 : i32, i32
  }
  func.func @transform_2(%arg0: i32) -> (i32, i32) {
    %c0_i32 = arith.constant 0 : i32
    %c0_i32_0 = arith.constant 0 : i32
    %c0_i32_1 = arith.constant 0 : i32
    return %c0_i32, %c0_i32_0 : i32, i32
  }
  func.func @transform_3(%arg0: i32) -> (i32, i32) {
    %c0_i32 = arith.constant 0 : i32
    %c0_i32_0 = arith.constant 0 : i32
    %c0_i32_1 = arith.constant 0 : i32
    return %c0_i32, %c0_i32_0 : i32, i32
  }
  func.func @transform_4(%arg0: i32) -> (i32, i32) {
    %c0_i32 = arith.constant 0 : i32
    %c0_i32_0 = arith.constant 0 : i32
    %c0_i32_1 = arith.constant 0 : i32
    return %c0_i32, %c0_i32_0 : i32, i32
  }
  func.func @transform_5(%arg0: i32) -> (i32, i32, i32, i32) {
    %c0_i32 = arith.constant 0 : i32
    %c0_i32_0 = arith.constant 0 : i32
    %c0_i32_1 = arith.constant 0 : i32
    %c0_i32_2 = arith.constant 0 : i32
    return %arg0, %c0_i32, %c0_i32_0, %c0_i32_1 : i32, i32, i32, i32
  }
}

</mosaic_0001>

<llo_original>
// kernel: up_forward.1
$region0: #{up_forward.1}
  #allocation0 [shape = 'u32[]', space=smem, size = 0x4, offset = 0x4, fixed_abs, tag = 'smem constant byte address 0x4 - core index']
  #allocation1 [shape = 'u32[144,128]{1,0:T(1,128)}', space=vmem, size = 0x12000, scoped, tag = 'internal scratch']
  #allocation2 [shape = 'f32[18,18,128]{2,1,0:T(8,128)}', space=vmem, size = 0x36000, scoped, tag = 'scratch operand']
  %s0 = inlined_call_operand.vmem [shape: bf16[2,18,18,8], index: 0, kind: input, shape index: {}]
  %s1 = inlined_call_operand.vmem [shape: bf16[72,128], index: 1, kind: input, shape index: {}]
  %s2 = inlined_call_operand.vmem [shape: f32[1,128], index: 2, kind: input, shape index: {}]
  %s3 = inlined_call_operand.vmem [shape: bf16[1152,128], index: 3, kind: input, shape index: {}]
  %s4 = inlined_call_operand.vmem [shape: f32[1,128], index: 4, kind: input, shape index: {}]
  %s5 = inlined_call_operand.vmem [shape: f32[2,16,16,128], index: 5, kind: output, shape index: {}]
  %s6 = sld [smem:[#allocation0]]
  $region53: #{up_forward.1} parent=0
    _
  %s8 = ssub.s32 1, %s6
  %s9 = scalar_select 0, %s8, %s6
  loop: start=0, step=1, limit=4
  $region2: #{up_forward.1} parent=0 // loop_pre_header
    _
  $region3: #{up_forward.1} parent=0 // loop_header
    %s11 = sphi 0, %s15
    %p12 = scmp.ge.s32.totalorder %s11, 4
    %s21 = sphi 0, %s23
    %s24 = sphi 0, %s21
    %s25 = sphi 0, %s24
    %s41 = sphi 0, %s25
    %s45 = sphi 0, %s45
    %s47 = sphi 0, %s45
    %s48 = sphi 0, %s47
    %s62 = sphi 0, %s48
    %s66 = sphi 0, %s66
    %s68 = sphi 0, %s66
    %s69 = sphi 0, %s68
    %s83 = sphi 0, %s69
    %s87 = sphi 0, %s87
    %s89 = sphi 0, %s87
    %s90 = sphi 0, %s89
    %s104 = sphi 0, %s90
    %s108 = sphi 0, %s108
    %s110 = sphi 0, %s108
    %s111 = sphi 0, %s110
    %s125 = sphi 0, %s111
    %s131 = sphi 0, %s133
    %s134 = sphi 0, %s131
    %s135 = sphi 0, %s134
    %s151 = sphi 0, %s135
  $region4: #{up_forward.1} parent=0 // loop_header_branch
    %14 = sbr.rel (%p12) target = $region8
  $region5: #{up_forward.1} parent=0 // loop_body
    %s16 = ssub.s32 %s11, 1
    %s17 = ssub.s32 %s11, 2
    %s18 = sadd.s32 %s11, 1
    %s19 = ssub.s32 %s11, %s18
    %p20 = scmp.eq.s32.totalorder %s19, 0
    %s22 = sadd.s32 %s21, 1
    %s23 = scalar_select %p20, %s21, %s22
    %p26 = pneg %p20
    %p27 = scmp.eq.s32.totalorder %s11, 1
    %p28 = por %p26, %p27
    %p29 = scmp.ne.s32.totalorder %s21, %s24
    %p30 = scmp.eq.s32.totalorder %s11, 0
    %p31 = por %p29, %p30
    %p32 = scmp.ne.s32.totalorder %s21, %s24
    %p33 = scmp.eq.s32.totalorder %s16, 1
    %p34 = por %p32, %p33
    %p35 = scmp.ne.s32.totalorder %s24, %s25
    %p36 = scmp.eq.s32.totalorder %s16, 0
    %p37 = por %p35, %p36
    %p38 = scmp.ne.s32.totalorder %s24, %s25
    %p39 = scmp.eq.s32.totalorder %s17, 1
    %p40 = por %p38, %p39
    %p42 = scmp.ne.s32.totalorder %s25, %s41
    %p43 = scmp.eq.s32.totalorder %s17, 0
    %p44 = por %p42, %p43
    %s46 = sadd.s32 %s45, 1
    %p49 = scmp.eq.s32.totalorder %s11, 1
    %p50 = scmp.ne.s32.totalorder %s45, %s47
    %p51 = scmp.eq.s32.totalorder %s11, 0
    %p52 = por %p50, %p51
    %p53 = scmp.ne.s32.totalorder %s45, %s47
    %p54 = scmp.eq.s32.totalorder %s16, 1
    %p55 = por %p53, %p54
    %p56 = scmp.ne.s32.totalorder %s47, %s48
    %p57 = scmp.eq.s32.totalorder %s16, 0
    %p58 = por %p56, %p57
    %p59 = scmp.ne.s32.totalorder %s47, %s48
    %p60 = scmp.eq.s32.totalorder %s17, 1
    %p61 = por %p59, %p60
    %p63 = scmp.ne.s32.totalorder %s48, %s62
    %p64 = scmp.eq.s32.totalorder %s17, 0
    %p65 = por %p63, %p64
    %s67 = sadd.s32 %s66, 1
    %p70 = scmp.eq.s32.totalorder %s11, 1
    %p71 = scmp.ne.s32.totalorder %s66, %s68
    %p72 = scmp.eq.s32.totalorder %s11, 0
    %p73 = por %p71, %p72
    %p74 = scmp.ne.s32.totalorder %s66, %s68
    %p75 = scmp.eq.s32.totalorder %s16, 1
    %p76 = por %p74, %p75
    %p77 = scmp.ne.s32.totalorder %s68, %s69
    %p78 = scmp.eq.s32.totalorder %s16, 0
    %p79 = por %p77, %p78
    %p80 = scmp.ne.s32.totalorder %s68, %s69
    %p81 = scmp.eq.s32.totalorder %s17, 1
    %p82 = por %p80, %p81
    %p84 = scmp.ne.s32.totalorder %s69, %s83
    %p85 = scmp.eq.s32.totalorder %s17, 0
    %p86 = por %p84, %p85
    %s88 = sadd.s32 %s87, 1
    %p91 = scmp.eq.s32.totalorder %s11, 1
    %p92 = scmp.ne.s32.totalorder %s87, %s89
    %p93 = scmp.eq.s32.totalorder %s11, 0
    %p94 = por %p92, %p93
    %p95 = scmp.ne.s32.totalorder %s87, %s89
    %p96 = scmp.eq.s32.totalorder %s16, 1
    %p97 = por %p95, %p96
    %p98 = scmp.ne.s32.totalorder %s89, %s90
    %p99 = scmp.eq.s32.totalorder %s16, 0
    %p100 = por %p98, %p99
    %p101 = scmp.ne.s32.totalorder %s89, %s90
    %p102 = scmp.eq.s32.totalorder %s17, 1
    %p103 = por %p101, %p102
    %p105 = scmp.ne.s32.totalorder %s90, %s104
    %p106 = scmp.eq.s32.totalorder %s17, 0
    %p107 = por %p105, %p106
    %s109 = sadd.s32 %s108, 1
    %p112 = scmp.eq.s32.totalorder %s11, 1
    %p113 = scmp.ne.s32.totalorder %s108, %s110
    %p114 = scmp.eq.s32.totalorder %s11, 0
    %p115 = por %p113, %p114
    %p116 = scmp.ne.s32.totalorder %s108, %s110
    %p117 = scmp.eq.s32.totalorder %s16, 1
    %p118 = por %p116, %p117
    %p119 = scmp.ne.s32.totalorder %s110, %s111
    %p120 = scmp.eq.s32.totalorder %s16, 0
    %p121 = por %p119, %p120
    %p122 = scmp.ne.s32.totalorder %s110, %s111
    %p123 = scmp.eq.s32.totalorder %s17, 1
    %p124 = por %p122, %p123
    %p126 = scmp.ne.s32.totalorder %s111, %s125
    %p127 = scmp.eq.s32.totalorder %s17, 0
    %p128 = por %p126, %p127
    %s129 = ssub.s32 %s11, %s18
    %p130 = scmp.eq.s32.totalorder %s129, 0
    %s132 = sadd.s32 %s131, 1
    %s133 = scalar_select %p130, %s131, %s132
    %p136 = pneg %p130
    %p137 = scmp.eq.s32.totalorder %s11, 1
    %p138 = por %p136, %p137
    %p139 = scmp.ne.s32.totalorder %s131, %s134
    %p140 = scmp.eq.s32.totalorder %s11, 0
    %p141 = por %p139, %p140
    %p142 = scmp.ne.s32.totalorder %s131, %s134
    %p143 = scmp.eq.s32.totalorder %s16, 1
    %p144 = por %p142, %p143
    %p145 = scmp.ne.s32.totalorder %s134, %s135
    %p146 = scmp.eq.s32.totalorder %s16, 0
    %p147 = por %p145, %p146
    %p148 = scmp.ne.s32.totalorder %s134, %s135
    %p149 = scmp.eq.s32.totalorder %s17, 1
    %p150 = por %p148, %p149
    %p152 = scmp.ne.s32.totalorder %s135, %s151
    %p153 = scmp.eq.s32.totalorder %s17, 0
    %p154 = por %p152, %p153
    %p155 = scmp.le.s32.totalorder 1, %s11
    %p156 = scmp.lt.s32.totalorder %s11, 3
    %p157 = pnand %p155, %p156
    %p158 = pneg %p157
    // Predicated region
    $region9: #{up_forward.1} parent=5 // pred_check
      _
    $region10: #{up_forward.1} parent=5 // pred_check_branch
      %160 = sbr.rel (%p157) target = $region12
    $region11: #{up_forward.1} parent=5 // pred_region
      %s161 = ssub.s32 %s11, 1
      // Predicated region
      $region13: #{up_forward.1} parent=11 // pred_check
        %p162 = pneg %p58
      $region14: #{up_forward.1} parent=11 // pred_check_branch
        %164 = sbr.rel (%p162) target = $region16
      $region15: #{up_forward.1} parent=11 // pred_region
        _
      $region16: #{up_forward.1} parent=11 // pred_fallthru
        _
      // Predicated region
      $region17: #{up_forward.1} parent=11 // pred_check
        %p165 = pneg %p79
      $region18: #{up_forward.1} parent=11 // pred_check_branch
        %167 = sbr.rel (%p165) target = $region20
      $region19: #{up_forward.1} parent=11 // pred_region
        _
      $region20: #{up_forward.1} parent=11 // pred_fallthru
        _
      // Predicated region
      $region21: #{up_forward.1} parent=11 // pred_check
        %p168 = pneg %p100
      $region22: #{up_forward.1} parent=11 // pred_check_branch
        %170 = sbr.rel (%p168) target = $region24
      $region23: #{up_forward.1} parent=11 // pred_region
        _
      $region24: #{up_forward.1} parent=11 // pred_fallthru
        _
      // Predicated region
      $region25: #{up_forward.1} parent=11 // pred_check
        %p171 = pneg %p121
      $region26: #{up_forward.1} parent=11 // pred_check_branch
        %173 = sbr.rel (%p171) target = $region28
      $region27: #{up_forward.1} parent=11 // pred_region
        _
      $region28: #{up_forward.1} parent=11 // pred_fallthru
        _
    $region12: #{up_forward.1} parent=5 // pred_fallthru
      _
    %p174 = scmp.lt.s32.totalorder %s11, 2
    // Predicated region
    $region29: #{up_forward.1} parent=5 // pred_check
      %p175 = pneg %p174
    $region30: #{up_forward.1} parent=5 // pred_check_branch
      %177 = sbr.rel (%p175) target = $region32
    $region31: #{up_forward.1} parent=5 // pred_region
      // Predicated region
      $region33: #{up_forward.1} parent=31 // pred_check
        %p178 = pneg %p31
      $region34: #{up_forward.1} parent=31 // pred_check_branch
        %180 = sbr.rel (%p178) target = $region36
      $region35: #{up_forward.1} parent=31 // pred_region
        %p181 = scmp.lt.s32.totalorder %s11, 1
        %s182 = scalar_select %p181, %s11, 1
        %s183 = smul.addr %s182, 54
        %s184 = smul.addr %s183, 4
        %s185 = scalar_lea.vmem %s0, %s184
      $region36: #{up_forward.1} parent=31 // pred_fallthru
        _
    $region32: #{up_forward.1} parent=5 // pred_fallthru
      _
    %p186 = scmp.le.s32.totalorder 1, %s11
    %p187 = scmp.lt.s32.totalorder %s11, 3
    %p188 = pnand %p186, %p187
    %p189 = pneg %p188
    // Predicated region
    $region37: #{up_forward.1} parent=5 // pred_check
      _
    $region38: #{up_forward.1} parent=5 // pred_check_branch
      %191 = sbr.rel (%p188) target = $region40
    $region39: #{up_forward.1} parent=5 // pred_region
      %s192 = ssub.s32 %s11, 1
      %p193 = scmp.lt.s32.totalorder %s16, 1
      %s194 = scalar_select %p193, %s16, 1
      %s195 = smul.addr %s194, 54
      %s196 = smul.addr %s195, 4
      %s197 = scalar_lea.vmem %s0, %s196
      %p198 = pneg %p37
      %p199 = pneg %p34
      %p200 = pneg %p58
      %p201 = pneg %p55
      %p202 = pneg %p79
      %p203 = pneg %p76
      %p204 = pneg %p100
      %p205 = pneg %p97
      %p206 = pneg %p121
      %p207 = pneg %p118
      %p208 = pneg %p147
      %p209 = pneg %p144
      %p210 = scmp.lt.s32.totalorder %s16, 1
      %s211 = scalar_select %p210, %s16, 1
      %s212 = smul.addr %s211, 32
      %s213 = smul.addr %s212, 8
      %s214 = scalar_lea.vmem %s5, %s213
      %p215 = scmp.lt.s32.totalorder %s16, 1
      %s216 = scalar_select %p215, %s16, 1
      %s217 = smul.addr %s216, 54
      %s218 = smul.addr %s217, 4
      %s219 = scalar_lea.vmem %s0, %s218
      %p220 = scmp.lt.s32.totalorder %s16, 1
      %s221 = scalar_select %p220, %s16, 1
      %s222 = smul.addr %s221, 32
      %s223 = smul.addr %s222, 8
      %s224 = scalar_lea.vmem %s5, %s223
      %v226 = vld [vmem:[%s219] sm:$0xf]
      %v227 = vld [vmem:[%s219 + $0x4] sm:$0xf]
      %v228 = vld [vmem:[%s219 + $0x8] sm:$0x1]
      %v229 = vld [vmem:[%s219 + $0xc] sm:$0xf]
      %v230 = vld [vmem:[%s219 + $0x10] sm:$0xf]
      %v231 = vld [vmem:[%s219 + $0x14] sm:$0x1]
      %v232 = vld [vmem:[%s219 + $0x18] sm:$0xf]
      %v233 = vld [vmem:[%s219 + $0x1c] sm:$0xf]
      %v234 = vld [vmem:[%s219 + $0x20] sm:$0x1]
      %v235 = vld [vmem:[%s219 + $0x24] sm:$0xf]
      %v236 = vld [vmem:[%s219 + $0x28] sm:$0xf]
      %v237 = vld [vmem:[%s219 + $0x2c] sm:$0x1]
      %v238 = vld [vmem:[%s219 + $0x30] sm:$0xf]
      %v239 = vld [vmem:[%s219 + $0x34] sm:$0xf]
      %v240 = vld [vmem:[%s219 + $0x38] sm:$0x1]
      %v241 = vld [vmem:[%s219 + $0x3c] sm:$0xf]
      %v242 = vld [vmem:[%s219 + $0x40] sm:$0xf]
      %v243 = vld [vmem:[%s219 + $0x44] sm:$0x1]
      %v244 = vld [vmem:[%s219 + $0x48] sm:$0xf]
      %v245 = vld [vmem:[%s219 + $0x4c] sm:$0xf]
      %v246 = vld [vmem:[%s219 + $0x50] sm:$0x1]
      %v247 = vld [vmem:[%s219 + $0x54] sm:$0xf]
      %v248 = vld [vmem:[%s219 + $0x58] sm:$0xf]
      %v249 = vld [vmem:[%s219 + $0x5c] sm:$0x1]
      %v250 = vld [vmem:[%s219 + $0x60] sm:$0xf]
      %v251 = vld [vmem:[%s219 + $0x64] sm:$0xf]
      %v252 = vld [vmem:[%s219 + $0x68] sm:$0x1]
      %v253 = vld [vmem:[%s219 + $0x6c] sm:$0xf]
      %v254 = vld [vmem:[%s219 + $0x70] sm:$0xf]
      %v255 = vld [vmem:[%s219 + $0x74] sm:$0x1]
      %v256 = vld [vmem:[%s219 + $0x78] sm:$0xf]
      %v257 = vld [vmem:[%s219 + $0x7c] sm:$0xf]
      %v258 = vld [vmem:[%s219 + $0x80] sm:$0x1]
      %v259 = vld [vmem:[%s219 + $0x84] sm:$0xf]
      %v260 = vld [vmem:[%s219 + $0x88] sm:$0xf]
      %v261 = vld [vmem:[%s219 + $0x8c] sm:$0x1]
      %v262 = vld [vmem:[%s219 + $0x90] sm:$0xf]
      %v263 = vld [vmem:[%s219 + $0x94] sm:$0xf]
      %v264 = vld [vmem:[%s219 + $0x98] sm:$0x1]
      %v265 = vld [vmem:[%s219 + $0x9c] sm:$0xf]
      %v266 = vld [vmem:[%s219 + $0xa0] sm:$0xf]
      %v267 = vld [vmem:[%s219 + $0xa4] sm:$0x1]
      %v268 = vld [vmem:[%s219 + $0xa8] sm:$0xf]
      %v269 = vld [vmem:[%s219 + $0xac] sm:$0xf]
      %v270 = vld [vmem:[%s219 + $0xb0] sm:$0x1]
      %v271 = vld [vmem:[%s219 + $0xb4] sm:$0xf]
      %v272 = vld [vmem:[%s219 + $0xb8] sm:$0xf]
      %v273 = vld [vmem:[%s219 + $0xbc] sm:$0x1]
      %v274 = vld [vmem:[%s219 + $0xc0] sm:$0xf]
      %v275 = vld [vmem:[%s219 + $0xc4] sm:$0xf]
      %v276 = vld [vmem:[%s219 + $0xc8] sm:$0x1]
      %v277 = vld [vmem:[%s219 + $0xcc] sm:$0xf]
      %v278 = vld [vmem:[%s219 + $0xd0] sm:$0xf]
      %v279 = vld [vmem:[%s219 + $0xd4] sm:$0x1]
      %v280 = vunpack.c.l.bf16 %v226
      %v281 = vunpack.c.l.bf16 %v227
      %v282 = vunpack.c.l.bf16 %v228
      %v283 = vunpack.c.l.bf16 %v229
      %v284 = vunpack.c.l.bf16 %v230
      %v285 = vunpack.c.l.bf16 %v231
      %v286 = vunpack.c.l.bf16 %v232
      %v287 = vunpack.c.l.bf16 %v233
      %v288 = vunpack.c.l.bf16 %v234
      %v289 = vunpack.c.l.bf16 %v235
      %v290 = vunpack.c.l.bf16 %v236
      %v291 = vunpack.c.l.bf16 %v237
      %v292 = vunpack.c.l.bf16 %v238
      %v293 = vunpack.c.l.bf16 %v239
      %v294 = vunpack.c.l.bf16 %v240
      %v295 = vunpack.c.l.bf16 %v241
      %v296 = vunpack.c.l.bf16 %v242
      %v297 = vunpack.c.l.bf16 %v243
      %v298 = vunpack.c.l.bf16 %v244
      %v299 = vunpack.c.l.bf16 %v245
      %v300 = vunpack.c.l.bf16 %v246
      %v301 = vunpack.c.l.bf16 %v247
      %v302 = vunpack.c.l.bf16 %v248
      %v303 = vunpack.c.l.bf16 %v249
      %v304 = vunpack.c.l.bf16 %v250
      %v305 = vunpack.c.l.bf16 %v251
      %v306 = vunpack.c.l.bf16 %v252
      %v307 = vunpack.c.l.bf16 %v253
      %v308 = vunpack.c.l.bf16 %v254
      %v309 = vunpack.c.l.bf16 %v255
      %v310 = vunpack.c.l.bf16 %v256
      %v311 = vunpack.c.l.bf16 %v257
      %v312 = vunpack.c.l.bf16 %v258
      %v313 = vunpack.c.l.bf16 %v259
      %v314 = vunpack.c.l.bf16 %v260
      %v315 = vunpack.c.l.bf16 %v261
      %v316 = vunpack.c.l.bf16 %v262
      %v317 = vunpack.c.l.bf16 %v263
      %v318 = vunpack.c.l.bf16 %v264
      %v319 = vunpack.c.l.bf16 %v265
      %v320 = vunpack.c.l.bf16 %v266
      %v321 = vunpack.c.l.bf16 %v267
      %v322 = vunpack.c.l.bf16 %v268
      %v323 = vunpack.c.l.bf16 %v269
      %v324 = vunpack.c.l.bf16 %v270
      %v325 = vunpack.c.l.bf16 %v271
      %v326 = vunpack.c.l.bf16 %v272
      %v327 = vunpack.c.l.bf16 %v273
      %v328 = vunpack.c.l.bf16 %v274
      %v329 = vunpack.c.l.bf16 %v275
      %v330 = vunpack.c.l.bf16 %v276
      %v331 = vunpack.c.l.bf16 %v277
      %v332 = vunpack.c.l.bf16 %v278
      %v333 = vunpack.c.l.bf16 %v279
      %vm382 = vcmask 1046528
      %v383 = vrot.slane %v280, 1
      %v384 = vrot.slane %v281, 1
      %v385 = vsel %vm382, %v383, %v384
      %v386 = vrot.slane %v282, 1
      %v387 = vsel %vm382, %v384, %v386
      %v388 = vrot.slane %v283, 1
      %v389 = vrot.slane %v284, 1
      %v390 = vsel %vm382, %v388, %v389
      %v391 = vrot.slane %v285, 1
      %v392 = vsel %vm382, %v389, %v391
      %v393 = vrot.slane %v286, 1
      %v394 = vrot.slane %v287, 1
      %v395 = vsel %vm382, %v393, %v394
      %v396 = vrot.slane %v288, 1
      %v397 = vsel %vm382, %v394, %v396
      %v398 = vrot.slane %v289, 1
      %v399 = vrot.slane %v290, 1
      %v400 = vsel %vm382, %v398, %v399
      %v401 = vrot.slane %v291, 1
      %v402 = vsel %vm382, %v399, %v401
      %v403 = vrot.slane %v292, 1
      %v404 = vrot.slane %v293, 1
      %v405 = vsel %vm382, %v403, %v404
      %v406 = vrot.slane %v294, 1
      %v407 = vsel %vm382, %v404, %v406
      %v408 = vrot.slane %v295, 1
      %v409 = vrot.slane %v296, 1
      %v410 = vsel %vm382, %v408, %v409
      %v411 = vrot.slane %v297, 1
      %v412 = vsel %vm382, %v409, %v411
      %v413 = vrot.slane %v298, 1
      %v414 = vrot.slane %v299, 1
      %v415 = vsel %vm382, %v413, %v414
      %v416 = vrot.slane %v300, 1
      %v417 = vsel %vm382, %v414, %v416
      %v418 = vrot.slane %v301, 1
      %v419 = vrot.slane %v302, 1
      %v420 = vsel %vm382, %v418, %v419
      %v421 = vrot.slane %v303, 1
      %v422 = vsel %vm382, %v419, %v421
      %v423 = vrot.slane %v304, 1
      %v424 = vrot.slane %v305, 1
      %v425 = vsel %vm382, %v423, %v424
      %v426 = vrot.slane %v306, 1
      %v427 = vsel %vm382, %v424, %v426
      %v428 = vrot.slane %v307, 1
      %v429 = vrot.slane %v308, 1
      %v430 = vsel %vm382, %v428, %v429
      %v431 = vrot.slane %v309, 1
      %v432 = vsel %vm382, %v429, %v431
      %v433 = vrot.slane %v310, 1
      %v434 = vrot.slane %v311, 1
      %v435 = vsel %vm382, %v433, %v434
      %v436 = vrot.slane %v312, 1
      %v437 = vsel %vm382, %v434, %v436
      %v438 = vrot.slane %v313, 1
      %v439 = vrot.slane %v314, 1
      %v440 = vsel %vm382, %v438, %v439
      %v441 = vrot.slane %v315, 1
      %v442 = vsel %vm382, %v439, %v441
      %v443 = vrot.slane %v316, 1
      %v444 = vrot.slane %v317, 1
      %v445 = vsel %vm382, %v443, %v444
      %v446 = vrot.slane %v318, 1
      %v447 = vsel %vm382, %v444, %v446
      %v448 = vrot.slane %v319, 1
      %v449 = vrot.slane %v320, 1
      %v450 = vsel %vm382, %v448, %v449
      %v451 = vrot.slane %v321, 1
      %v452 = vsel %vm382, %v449, %v451
      %v453 = vrot.slane %v322, 1
      %v454 = vrot.slane %v323, 1
      %v455 = vsel %vm382, %v453, %v454
      %v456 = vrot.slane %v324, 1
      %v457 = vsel %vm382, %v454, %v456
      %v458 = vrot.slane %v325, 1
      %v459 = vrot.slane %v326, 1
      %v460 = vsel %vm382, %v458, %v459
      %v461 = vrot.slane %v327, 1
      %v462 = vsel %vm382, %v459, %v461
      %vm463 = vcmask 1045504
      %v464 = vrot.slane %v280, 2
      %v465 = vrot.slane %v281, 2
      %v466 = vsel %vm463, %v464, %v465
      %v467 = vrot.slane %v282, 2
      %v468 = vsel %vm463, %v465, %v467
      %v469 = vrot.slane %v283, 2
      %v470 = vrot.slane %v284, 2
      %v471 = vsel %vm463, %v469, %v470
      %v472 = vrot.slane %v285, 2
      %v473 = vsel %vm463, %v470, %v472
      %v474 = vrot.slane %v286, 2
      %v475 = vrot.slane %v287, 2
      %v476 = vsel %vm463, %v474, %v475
      %v477 = vrot.slane %v288, 2
      %v478 = vsel %vm463, %v475, %v477
      %v479 = vrot.slane %v289, 2
      %v480 = vrot.slane %v290, 2
      %v481 = vsel %vm463, %v479, %v480
      %v482 = vrot.slane %v291, 2
      %v483 = vsel %vm463, %v480, %v482
      %v484 = vrot.slane %v292, 2
      %v485 = vrot.slane %v293, 2
      %v486 = vsel %vm463, %v484, %v485
      %v487 = vrot.slane %v294, 2
      %v488 = vsel %vm463, %v485, %v487
      %v489 = vrot.slane %v295, 2
      %v490 = vrot.slane %v296, 2
      %v491 = vsel %vm463, %v489, %v490
      %v492 = vrot.slane %v297, 2
      %v493 = vsel %vm463, %v490, %v492
      %v494 = vrot.slane %v298, 2
      %v495 = vrot.slane %v299, 2
      %v496 = vsel %vm463, %v494, %v495
      %v497 = vrot.slane %v300, 2
      %v498 = vsel %vm463, %v495, %v497
      %v499 = vrot.slane %v301, 2
      %v500 = vrot.slane %v302, 2
      %v501 = vsel %vm463, %v499, %v500
      %v502 = vrot.slane %v303, 2
      %v503 = vsel %vm463, %v500, %v502
      %v504 = vrot.slane %v304, 2
      %v505 = vrot.slane %v305, 2
      %v506 = vsel %vm463, %v504, %v505
      %v507 = vrot.slane %v306, 2
      %v508 = vsel %vm463, %v505, %v507
      %v509 = vrot.slane %v307, 2
      %v510 = vrot.slane %v308, 2
      %v511 = vsel %vm463, %v509, %v510
      %v512 = vrot.slane %v309, 2
      %v513 = vsel %vm463, %v510, %v512
      %v514 = vrot.slane %v310, 2
      %v515 = vrot.slane %v311, 2
      %v516 = vsel %vm463, %v514, %v515
      %v517 = vrot.slane %v312, 2
      %v518 = vsel %vm463, %v515, %v517
      %v519 = vrot.slane %v313, 2
      %v520 = vrot.slane %v314, 2
      %v521 = vsel %vm463, %v519, %v520
      %v522 = vrot.slane %v315, 2
      %v523 = vsel %vm463, %v520, %v522
      %v524 = vrot.slane %v316, 2
      %v525 = vrot.slane %v317, 2
      %v526 = vsel %vm463, %v524, %v525
      %v527 = vrot.slane %v318, 2
      %v528 = vsel %vm463, %v525, %v527
      %v529 = vrot.slane %v319, 2
      %v530 = vrot.slane %v320, 2
      %v531 = vsel %vm463, %v529, %v530
      %v532 = vrot.slane %v321, 2
      %v533 = vsel %vm463, %v530, %v532
      %v534 = vrot.slane %v322, 2
      %v535 = vrot.slane %v323, 2
      %v536 = vsel %vm463, %v534, %v535
      %v537 = vrot.slane %v324, 2
      %v538 = vsel %vm463, %v535, %v537
      %v539 = vrot.slane %v325, 2
      %v540 = vrot.slane %v326, 2
      %v541 = vsel %vm463, %v539, %v540
      %v542 = vrot.slane %v327, 2
      %v543 = vsel %vm463, %v540, %v542
      %v547 = vrot.slane %v328, 1
      %v548 = vrot.slane %v329, 1
      %v549 = vsel %vm382, %v547, %v548
      %v550 = vrot.slane %v330, 1
      %v551 = vsel %vm382, %v548, %v550
      %v552 = vrot.slane %v328, 2
      %v553 = vrot.slane %v329, 2
      %v554 = vsel %vm463, %v552, %v553
      %v555 = vrot.slane %v330, 2
      %v556 = vsel %vm463, %v553, %v555
      %v560 = vrot.slane %v331, 1
      %v561 = vrot.slane %v332, 1
      %v562 = vsel %vm382, %v560, %v561
      %v563 = vrot.slane %v333, 1
      %v564 = vsel %vm382, %v561, %v563
      %v565 = vrot.slane %v331, 2
      %v566 = vrot.slane %v332, 2
      %v567 = vsel %vm463, %v565, %v566
      %v568 = vrot.slane %v333, 2
      %v569 = vsel %vm463, %v566, %v568
      %570 = vrot.lane.b32.xlu0 %v385, 8
      %v571 = vpop.permute.xlu0 %570
      %572 = vrot.lane.b32.xlu0 %v387, 8
      %v573 = vpop.permute.xlu0 %572
      %574 = vrot.lane.b32.xlu0 %v390, 8
      %v575 = vpop.permute.xlu0 %574
      %576 = vrot.lane.b32.xlu0 %v392, 8
      %v577 = vpop.permute.xlu0 %576
      %578 = vrot.lane.b32.xlu0 %v395, 8
      %v579 = vpop.permute.xlu0 %578
      %580 = vrot.lane.b32.xlu0 %v397, 8
      %v581 = vpop.permute.xlu0 %580
      %582 = vrot.lane.b32.xlu0 %v400, 8
      %v583 = vpop.permute.xlu0 %582
      %584 = vrot.lane.b32.xlu0 %v402, 8
      %v585 = vpop.permute.xlu0 %584
      %586 = vrot.lane.b32.xlu0 %v405, 8
      %v587 = vpop.permute.xlu0 %586
      %588 = vrot.lane.b32.xlu0 %v407, 8
      %v589 = vpop.permute.xlu0 %588
      %590 = vrot.lane.b32.xlu0 %v410, 8
      %v591 = vpop.permute.xlu0 %590
      %592 = vrot.lane.b32.xlu0 %v412, 8
      %v593 = vpop.permute.xlu0 %592
      %594 = vrot.lane.b32.xlu0 %v415, 8
      %v595 = vpop.permute.xlu0 %594
      %596 = vrot.lane.b32.xlu0 %v417, 8
      %v597 = vpop.permute.xlu0 %596
      %598 = vrot.lane.b32.xlu0 %v420, 8
      %v599 = vpop.permute.xlu0 %598
      %600 = vrot.lane.b32.xlu0 %v422, 8
      %v601 = vpop.permute.xlu0 %600
      %602 = vrot.lane.b32.xlu0 %v425, 8
      %v603 = vpop.permute.xlu0 %602
      %604 = vrot.lane.b32.xlu0 %v427, 8
      %v605 = vpop.permute.xlu0 %604
      %606 = vrot.lane.b32.xlu0 %v430, 8
      %v607 = vpop.permute.xlu0 %606
      %608 = vrot.lane.b32.xlu0 %v432, 8
      %v609 = vpop.permute.xlu0 %608
      %610 = vrot.lane.b32.xlu0 %v435, 8
      %v611 = vpop.permute.xlu0 %610
      %612 = vrot.lane.b32.xlu0 %v437, 8
      %v613 = vpop.permute.xlu0 %612
      %614 = vrot.lane.b32.xlu0 %v440, 8
      %v615 = vpop.permute.xlu0 %614
      %616 = vrot.lane.b32.xlu0 %v442, 8
      %v617 = vpop.permute.xlu0 %616
      %618 = vrot.lane.b32.xlu0 %v445, 8
      %v619 = vpop.permute.xlu0 %618
      %620 = vrot.lane.b32.xlu0 %v447, 8
      %v621 = vpop.permute.xlu0 %620
      %622 = vrot.lane.b32.xlu0 %v450, 8
      %v623 = vpop.permute.xlu0 %622
      %624 = vrot.lane.b32.xlu0 %v452, 8
      %v625 = vpop.permute.xlu0 %624
      %626 = vrot.lane.b32.xlu0 %v455, 8
      %v627 = vpop.permute.xlu0 %626
      %628 = vrot.lane.b32.xlu0 %v457, 8
      %v629 = vpop.permute.xlu0 %628
      %630 = vrot.lane.b32.xlu0 %v460, 8
      %v631 = vpop.permute.xlu0 %630
      %632 = vrot.lane.b32.xlu0 %v462, 8
      %v633 = vpop.permute.xlu0 %632
      %666 = vrot.lane.b32.xlu0 %v466, 16
      %v667 = vpop.permute.xlu0 %666
      %668 = vrot.lane.b32.xlu0 %v468, 16
      %v669 = vpop.permute.xlu0 %668
      %670 = vrot.lane.b32.xlu0 %v471, 16
      %v671 = vpop.permute.xlu0 %670
      %672 = vrot.lane.b32.xlu0 %v473, 16
      %v673 = vpop.permute.xlu0 %672
      %674 = vrot.lane.b32.xlu0 %v476, 16
      %v675 = vpop.permute.xlu0 %674
      %676 = vrot.lane.b32.xlu0 %v478, 16
      %v677 = vpop.permute.xlu0 %676
      %678 = vrot.lane.b32.xlu0 %v481, 16
      %v679 = vpop.permute.xlu0 %678
      %680 = vrot.lane.b32.xlu0 %v483, 16
      %v681 = vpop.permute.xlu0 %680
      %682 = vrot.lane.b32.xlu0 %v486, 16
      %v683 = vpop.permute.xlu0 %682
      %684 = vrot.lane.b32.xlu0 %v488, 16
      %v685 = vpop.permute.xlu0 %684
      %686 = vrot.lane.b32.xlu0 %v491, 16
      %v687 = vpop.permute.xlu0 %686
      %688 = vrot.lane.b32.xlu0 %v493, 16
      %v689 = vpop.permute.xlu0 %688
      %690 = vrot.lane.b32.xlu0 %v496, 16
      %v691 = vpop.permute.xlu0 %690
      %692 = vrot.lane.b32.xlu0 %v498, 16
      %v693 = vpop.permute.xlu0 %692
      %694 = vrot.lane.b32.xlu0 %v501, 16
      %v695 = vpop.permute.xlu0 %694
      %696 = vrot.lane.b32.xlu0 %v503, 16
      %v697 = vpop.permute.xlu0 %696
      %698 = vrot.lane.b32.xlu0 %v506, 16
      %v699 = vpop.permute.xlu0 %698
      %700 = vrot.lane.b32.xlu0 %v508, 16
      %v701 = vpop.permute.xlu0 %700
      %702 = vrot.lane.b32.xlu0 %v511, 16
      %v703 = vpop.permute.xlu0 %702
      %704 = vrot.lane.b32.xlu0 %v513, 16
      %v705 = vpop.permute.xlu0 %704
      %706 = vrot.lane.b32.xlu0 %v516, 16
      %v707 = vpop.permute.xlu0 %706
      %708 = vrot.lane.b32.xlu0 %v518, 16
      %v709 = vpop.permute.xlu0 %708
      %710 = vrot.lane.b32.xlu0 %v521, 16
      %v711 = vpop.permute.xlu0 %710
      %712 = vrot.lane.b32.xlu0 %v523, 16
      %v713 = vpop.permute.xlu0 %712
      %714 = vrot.lane.b32.xlu0 %v526, 16
      %v715 = vpop.permute.xlu0 %714
      %716 = vrot.lane.b32.xlu0 %v528, 16
      %v717 = vpop.permute.xlu0 %716
      %718 = vrot.lane.b32.xlu0 %v531, 16
      %v719 = vpop.permute.xlu0 %718
      %720 = vrot.lane.b32.xlu0 %v533, 16
      %v721 = vpop.permute.xlu0 %720
      %722 = vrot.lane.b32.xlu0 %v536, 16
      %v723 = vpop.permute.xlu0 %722
      %724 = vrot.lane.b32.xlu0 %v538, 16
      %v725 = vpop.permute.xlu0 %724
      %726 = vrot.lane.b32.xlu0 %v541, 16
      %v727 = vpop.permute.xlu0 %726
      %728 = vrot.lane.b32.xlu0 %v543, 16
      %v729 = vpop.permute.xlu0 %728
      %762 = vrot.lane.b32.xlu0 %v283, 24
      %v763 = vpop.permute.xlu0 %762
      %764 = vrot.lane.b32.xlu0 %v284, 24
      %v765 = vpop.permute.xlu0 %764
      %766 = vrot.lane.b32.xlu0 %v286, 24
      %v767 = vpop.permute.xlu0 %766
      %768 = vrot.lane.b32.xlu0 %v287, 24
      %v769 = vpop.permute.xlu0 %768
      %770 = vrot.lane.b32.xlu0 %v289, 24
      %v771 = vpop.permute.xlu0 %770
      %772 = vrot.lane.b32.xlu0 %v290, 24
      %v773 = vpop.permute.xlu0 %772
      %774 = vrot.lane.b32.xlu0 %v292, 24
      %v775 = vpop.permute.xlu0 %774
      %776 = vrot.lane.b32.xlu0 %v293, 24
      %v777 = vpop.permute.xlu0 %776
      %778 = vrot.lane.b32.xlu0 %v295, 24
      %v779 = vpop.permute.xlu0 %778
      %780 = vrot.lane.b32.xlu0 %v296, 24
      %v781 = vpop.permute.xlu0 %780
      %782 = vrot.lane.b32.xlu0 %v298, 24
      %v783 = vpop.permute.xlu0 %782
      %784 = vrot.lane.b32.xlu0 %v299, 24
      %v785 = vpop.permute.xlu0 %784
      %786 = vrot.lane.b32.xlu0 %v301, 24
      %v787 = vpop.permute.xlu0 %786
      %788 = vrot.lane.b32.xlu0 %v302, 24
      %v789 = vpop.permute.xlu0 %788
      %790 = vrot.lane.b32.xlu0 %v304, 24
      %v791 = vpop.permute.xlu0 %790
      %792 = vrot.lane.b32.xlu0 %v305, 24
      %v793 = vpop.permute.xlu0 %792
      %794 = vrot.lane.b32.xlu0 %v307, 24
      %v795 = vpop.permute.xlu0 %794
      %796 = vrot.lane.b32.xlu0 %v308, 24
      %v797 = vpop.permute.xlu0 %796
      %798 = vrot.lane.b32.xlu0 %v310, 24
      %v799 = vpop.permute.xlu0 %798
      %800 = vrot.lane.b32.xlu0 %v311, 24
      %v801 = vpop.permute.xlu0 %800
      %802 = vrot.lane.b32.xlu0 %v313, 24
      %v803 = vpop.permute.xlu0 %802
      %804 = vrot.lane.b32.xlu0 %v314, 24
      %v805 = vpop.permute.xlu0 %804
      %806 = vrot.lane.b32.xlu0 %v316, 24
      %v807 = vpop.permute.xlu0 %806
      %808 = vrot.lane.b32.xlu0 %v317, 24
      %v809 = vpop.permute.xlu0 %808
      %810 = vrot.lane.b32.xlu0 %v319, 24
      %v811 = vpop.permute.xlu0 %810
      %812 = vrot.lane.b32.xlu0 %v320, 24
      %v813 = vpop.permute.xlu0 %812
      %814 = vrot.lane.b32.xlu0 %v322, 24
      %v815 = vpop.permute.xlu0 %814
      %816 = vrot.lane.b32.xlu0 %v323, 24
      %v817 = vpop.permute.xlu0 %816
      %818 = vrot.lane.b32.xlu0 %v325, 24
      %v819 = vpop.permute.xlu0 %818
      %820 = vrot.lane.b32.xlu0 %v326, 24
      %v821 = vpop.permute.xlu0 %820
      %822 = vrot.lane.b32.xlu0 %v328, 24
      %v823 = vpop.permute.xlu0 %822
      %824 = vrot.lane.b32.xlu0 %v329, 24
      %v825 = vpop.permute.xlu0 %824
      %858 = vrot.lane.b32.xlu0 %v390, 32
      %v859 = vpop.permute.xlu0 %858
      %860 = vrot.lane.b32.xlu0 %v392, 32
      %v861 = vpop.permute.xlu0 %860
      %862 = vrot.lane.b32.xlu0 %v395, 32
      %v863 = vpop.permute.xlu0 %862
      %864 = vrot.lane.b32.xlu0 %v397, 32
      %v865 = vpop.permute.xlu0 %864
      %866 = vrot.lane.b32.xlu0 %v400, 32
      %v867 = vpop.permute.xlu0 %866
      %868 = vrot.lane.b32.xlu0 %v402, 32
      %v869 = vpop.permute.xlu0 %868
      %870 = vrot.lane.b32.xlu0 %v405, 32
      %v871 = vpop.permute.xlu0 %870
      %872 = vrot.lane.b32.xlu0 %v407, 32
      %v873 = vpop.permute.xlu0 %872
      %874 = vrot.lane.b32.xlu0 %v410, 32
      %v875 = vpop.permute.xlu0 %874
      %876 = vrot.lane.b32.xlu0 %v412, 32
      %v877 = vpop.permute.xlu0 %876
      %878 = vrot.lane.b32.xlu0 %v415, 32
      %v879 = vpop.permute.xlu0 %878
      %880 = vrot.lane.b32.xlu0 %v417, 32
      %v881 = vpop.permute.xlu0 %880
      %882 = vrot.lane.b32.xlu0 %v420, 32
      %v883 = vpop.permute.xlu0 %882
      %884 = vrot.lane.b32.xlu0 %v422, 32
      %v885 = vpop.permute.xlu0 %884
      %886 = vrot.lane.b32.xlu0 %v425, 32
      %v887 = vpop.permute.xlu0 %886
      %888 = vrot.lane.b32.xlu0 %v427, 32
      %v889 = vpop.permute.xlu0 %888
      %890 = vrot.lane.b32.xlu0 %v430, 32
      %v891 = vpop.permute.xlu0 %890
      %892 = vrot.lane.b32.xlu0 %v432, 32
      %v893 = vpop.permute.xlu0 %892
      %894 = vrot.lane.b32.xlu0 %v435, 32
      %v895 = vpop.permute.xlu0 %894
      %896 = vrot.lane.b32.xlu0 %v437, 32
      %v897 = vpop.permute.xlu0 %896
      %898 = vrot.lane.b32.xlu0 %v440, 32
      %v899 = vpop.permute.xlu0 %898
      %900 = vrot.lane.b32.xlu0 %v442, 32
      %v901 = vpop.permute.xlu0 %900
      %902 = vrot.lane.b32.xlu0 %v445, 32
      %v903 = vpop.permute.xlu0 %902
      %904 = vrot.lane.b32.xlu0 %v447, 32
      %v905 = vpop.permute.xlu0 %904
      %906 = vrot.lane.b32.xlu0 %v450, 32
      %v907 = vpop.permute.xlu0 %906
      %908 = vrot.lane.b32.xlu0 %v452, 32
      %v909 = vpop.permute.xlu0 %908
      %910 = vrot.lane.b32.xlu0 %v455, 32
      %v911 = vpop.permute.xlu0 %910
      %912 = vrot.lane.b32.xlu0 %v457, 32
      %v913 = vpop.permute.xlu0 %912
      %914 = vrot.lane.b32.xlu0 %v460, 32
      %v915 = vpop.permute.xlu0 %914
      %916 = vrot.lane.b32.xlu0 %v462, 32
      %v917 = vpop.permute.xlu0 %916
      %918 = vrot.lane.b32.xlu0 %v549, 32
      %v919 = vpop.permute.xlu0 %918
      %920 = vrot.lane.b32.xlu0 %v551, 32
      %v921 = vpop.permute.xlu0 %920
      %954 = vrot.lane.b32.xlu0 %v471, 40
      %v955 = vpop.permute.xlu0 %954
      %956 = vrot.lane.b32.xlu0 %v473, 40
      %v957 = vpop.permute.xlu0 %956
      %958 = vrot.lane.b32.xlu0 %v476, 40
      %v959 = vpop.permute.xlu0 %958
      %960 = vrot.lane.b32.xlu0 %v478, 40
      %v961 = vpop.permute.xlu0 %960
      %962 = vrot.lane.b32.xlu0 %v481, 40
      %v963 = vpop.permute.xlu0 %962
      %964 = vrot.lane.b32.xlu0 %v483, 40
      %v965 = vpop.permute.xlu0 %964
      %966 = vrot.lane.b32.xlu0 %v486, 40
      %v967 = vpop.permute.xlu0 %966
      %968 = vrot.lane.b32.xlu0 %v488, 40
      %v969 = vpop.permute.xlu0 %968
      %970 = vrot.lane.b32.xlu0 %v491, 40
      %v971 = vpop.permute.xlu0 %970
      %972 = vrot.lane.b32.xlu0 %v493, 40
      %v973 = vpop.permute.xlu0 %972
      %974 = vrot.lane.b32.xlu0 %v496, 40
      %v975 = vpop.permute.xlu0 %974
      %976 = vrot.lane.b32.xlu0 %v498, 40
      %v977 = vpop.permute.xlu0 %976
      %978 = vrot.lane.b32.xlu0 %v501, 40
      %v979 = vpop.permute.xlu0 %978
      %980 = vrot.lane.b32.xlu0 %v503, 40
      %v981 = vpop.permute.xlu0 %980
      %982 = vrot.lane.b32.xlu0 %v506, 40
      %v983 = vpop.permute.xlu0 %982
      %984 = vrot.lane.b32.xlu0 %v508, 40
      %v985 = vpop.permute.xlu0 %984
      %986 = vrot.lane.b32.xlu0 %v511, 40
      %v987 = vpop.permute.xlu0 %986
      %988 = vrot.lane.b32.xlu0 %v513, 40
      %v989 = vpop.permute.xlu0 %988
      %990 = vrot.lane.b32.xlu0 %v516, 40
      %v991 = vpop.permute.xlu0 %990
      %992 = vrot.lane.b32.xlu0 %v518, 40
      %v993 = vpop.permute.xlu0 %992
      %994 = vrot.lane.b32.xlu0 %v521, 40
      %v995 = vpop.permute.xlu0 %994
      %996 = vrot.lane.b32.xlu0 %v523, 40
      %v997 = vpop.permute.xlu0 %996
      %998 = vrot.lane.b32.xlu0 %v526, 40
      %v999 = vpop.permute.xlu0 %998
      %1000 = vrot.lane.b32.xlu0 %v528, 40
      %v1001 = vpop.permute.xlu0 %1000
      %1002 = vrot.lane.b32.xlu0 %v531, 40
      %v1003 = vpop.permute.xlu0 %1002
      %1004 = vrot.lane.b32.xlu0 %v533, 40
      %v1005 = vpop.permute.xlu0 %1004
      %1006 = vrot.lane.b32.xlu0 %v536, 40
      %v1007 = vpop.permute.xlu0 %1006
      %1008 = vrot.lane.b32.xlu0 %v538, 40
      %v1009 = vpop.permute.xlu0 %1008
      %1010 = vrot.lane.b32.xlu0 %v541, 40
      %v1011 = vpop.permute.xlu0 %1010
      %1012 = vrot.lane.b32.xlu0 %v543, 40
      %v1013 = vpop.permute.xlu0 %1012
      %1014 = vrot.lane.b32.xlu0 %v554, 40
      %v1015 = vpop.permute.xlu0 %1014
      %1016 = vrot.lane.b32.xlu0 %v556, 40
      %v1017 = vpop.permute.xlu0 %1016
      %1050 = vrot.lane.b32.xlu0 %v286, 48
      %v1051 = vpop.permute.xlu0 %1050
      %1052 = vrot.lane.b32.xlu0 %v287, 48
      %v1053 = vpop.permute.xlu0 %1052
      %1054 = vrot.lane.b32.xlu0 %v289, 48
      %v1055 = vpop.permute.xlu0 %1054
      %1056 = vrot.lane.b32.xlu0 %v290, 48
      %v1057 = vpop.permute.xlu0 %1056
      %1058 = vrot.lane.b32.xlu0 %v292, 48
      %v1059 = vpop.permute.xlu0 %1058
      %1060 = vrot.lane.b32.xlu0 %v293, 48
      %v1061 = vpop.permute.xlu0 %1060
      %1062 = vrot.lane.b32.xlu0 %v295, 48
      %v1063 = vpop.permute.xlu0 %1062
      %1064 = vrot.lane.b32.xlu0 %v296, 48
      %v1065 = vpop.permute.xlu0 %1064
      %1066 = vrot.lane.b32.xlu0 %v298, 48
      %v1067 = vpop.permute.xlu0 %1066
      %1068 = vrot.lane.b32.xlu0 %v299, 48
      %v1069 = vpop.permute.xlu0 %1068
      %1070 = vrot.lane.b32.xlu0 %v301, 48
      %v1071 = vpop.permute.xlu0 %1070
      %1072 = vrot.lane.b32.xlu0 %v302, 48
      %v1073 = vpop.permute.xlu0 %1072
      %1074 = vrot.lane.b32.xlu0 %v304, 48
      %v1075 = vpop.permute.xlu0 %1074
      %1076 = vrot.lane.b32.xlu0 %v305, 48
      %v1077 = vpop.permute.xlu0 %1076
      %1078 = vrot.lane.b32.xlu0 %v307, 48
      %v1079 = vpop.permute.xlu0 %1078
      %1080 = vrot.lane.b32.xlu0 %v308, 48
      %v1081 = vpop.permute.xlu0 %1080
      %1082 = vrot.lane.b32.xlu0 %v310, 48
      %v1083 = vpop.permute.xlu0 %1082
      %1084 = vrot.lane.b32.xlu0 %v311, 48
      %v1085 = vpop.permute.xlu0 %1084
      %1086 = vrot.lane.b32.xlu0 %v313, 48
      %v1087 = vpop.permute.xlu0 %1086
      %1088 = vrot.lane.b32.xlu0 %v314, 48
      %v1089 = vpop.permute.xlu0 %1088
      %1090 = vrot.lane.b32.xlu0 %v316, 48
      %v1091 = vpop.permute.xlu0 %1090
      %1092 = vrot.lane.b32.xlu0 %v317, 48
      %v1093 = vpop.permute.xlu0 %1092
      %1094 = vrot.lane.b32.xlu0 %v319, 48
      %v1095 = vpop.permute.xlu0 %1094
      %1096 = vrot.lane.b32.xlu0 %v320, 48
      %v1097 = vpop.permute.xlu0 %1096
      %1098 = vrot.lane.b32.xlu0 %v322, 48
      %v1099 = vpop.permute.xlu0 %1098
      %1100 = vrot.lane.b32.xlu0 %v323, 48
      %v1101 = vpop.permute.xlu0 %1100
      %1102 = vrot.lane.b32.xlu0 %v325, 48
      %v1103 = vpop.permute.xlu0 %1102
      %1104 = vrot.lane.b32.xlu0 %v326, 48
      %v1105 = vpop.permute.xlu0 %1104
      %1106 = vrot.lane.b32.xlu0 %v328, 48
      %v1107 = vpop.permute.xlu0 %1106
      %1108 = vrot.lane.b32.xlu0 %v329, 48
      %v1109 = vpop.permute.xlu0 %1108
      %1110 = vrot.lane.b32.xlu0 %v331, 48
      %v1111 = vpop.permute.xlu0 %1110
      %1112 = vrot.lane.b32.xlu0 %v332, 48
      %v1113 = vpop.permute.xlu0 %1112
      %1146 = vrot.lane.b32.xlu0 %v395, 56
      %v1147 = vpop.permute.xlu0 %1146
      %1148 = vrot.lane.b32.xlu0 %v397, 56
      %v1149 = vpop.permute.xlu0 %1148
      %1150 = vrot.lane.b32.xlu0 %v400, 56
      %v1151 = vpop.permute.xlu0 %1150
      %1152 = vrot.lane.b32.xlu0 %v402, 56
      %v1153 = vpop.permute.xlu0 %1152
      %1154 = vrot.lane.b32.xlu0 %v405, 56
      %v1155 = vpop.permute.xlu0 %1154
      %1156 = vrot.lane.b32.xlu0 %v407, 56
      %v1157 = vpop.permute.xlu0 %1156
      %1158 = vrot.lane.b32.xlu0 %v410, 56
      %v1159 = vpop.permute.xlu0 %1158
      %1160 = vrot.lane.b32.xlu0 %v412, 56
      %v1161 = vpop.permute.xlu0 %1160
      %1162 = vrot.lane.b32.xlu0 %v415, 56
      %v1163 = vpop.permute.xlu0 %1162
      %1164 = vrot.lane.b32.xlu0 %v417, 56
      %v1165 = vpop.permute.xlu0 %1164
      %1166 = vrot.lane.b32.xlu0 %v420, 56
      %v1167 = vpop.permute.xlu0 %1166
      %1168 = vrot.lane.b32.xlu0 %v422, 56
      %v1169 = vpop.permute.xlu0 %1168
      %1170 = vrot.lane.b32.xlu0 %v425, 56
      %v1171 = vpop.permute.xlu0 %1170
      %1172 = vrot.lane.b32.xlu0 %v427, 56
      %v1173 = vpop.permute.xlu0 %1172
      %1174 = vrot.lane.b32.xlu0 %v430, 56
      %v1175 = vpop.permute.xlu0 %1174
      %1176 = vrot.lane.b32.xlu0 %v432, 56
      %v1177 = vpop.permute.xlu0 %1176
      %1178 = vrot.lane.b32.xlu0 %v435, 56
      %v1179 = vpop.permute.xlu0 %1178
      %1180 = vrot.lane.b32.xlu0 %v437, 56
      %v1181 = vpop.permute.xlu0 %1180
      %1182 = vrot.lane.b32.xlu0 %v440, 56
      %v1183 = vpop.permute.xlu0 %1182
      %1184 = vrot.lane.b32.xlu0 %v442, 56
      %v1185 = vpop.permute.xlu0 %1184
      %1186 = vrot.lane.b32.xlu0 %v445, 56
      %v1187 = vpop.permute.xlu0 %1186
      %1188 = vrot.lane.b32.xlu0 %v447, 56
      %v1189 = vpop.permute.xlu0 %1188
      %1190 = vrot.lane.b32.xlu0 %v450, 56
      %v1191 = vpop.permute.xlu0 %1190
      %1192 = vrot.lane.b32.xlu0 %v452, 56
      %v1193 = vpop.permute.xlu0 %1192
      %1194 = vrot.lane.b32.xlu0 %v455, 56
      %v1195 = vpop.permute.xlu0 %1194
      %1196 = vrot.lane.b32.xlu0 %v457, 56
      %v1197 = vpop.permute.xlu0 %1196
      %1198 = vrot.lane.b32.xlu0 %v460, 56
      %v1199 = vpop.permute.xlu0 %1198
      %1200 = vrot.lane.b32.xlu0 %v462, 56
      %v1201 = vpop.permute.xlu0 %1200
      %1202 = vrot.lane.b32.xlu0 %v549, 56
      %v1203 = vpop.permute.xlu0 %1202
      %1204 = vrot.lane.b32.xlu0 %v551, 56
      %v1205 = vpop.permute.xlu0 %1204
      %1206 = vrot.lane.b32.xlu0 %v562, 56
      %v1207 = vpop.permute.xlu0 %1206
      %1208 = vrot.lane.b32.xlu0 %v564, 56
      %v1209 = vpop.permute.xlu0 %1208
      %1242 = vrot.lane.b32.xlu0 %v476, 64
      %v1243 = vpop.permute.xlu0 %1242
      %1244 = vrot.lane.b32.xlu0 %v478, 64
      %v1245 = vpop.permute.xlu0 %1244
      %1246 = vrot.lane.b32.xlu0 %v481, 64
      %v1247 = vpop.permute.xlu0 %1246
      %1248 = vrot.lane.b32.xlu0 %v483, 64
      %v1249 = vpop.permute.xlu0 %1248
      %1250 = vrot.lane.b32.xlu0 %v486, 64
      %v1251 = vpop.permute.xlu0 %1250
      %1252 = vrot.lane.b32.xlu0 %v488, 64
      %v1253 = vpop.permute.xlu0 %1252
      %1254 = vrot.lane.b32.xlu0 %v491, 64
      %v1255 = vpop.permute.xlu0 %1254
      %1256 = vrot.lane.b32.xlu0 %v493, 64
      %v1257 = vpop.permute.xlu0 %1256
      %1258 = vrot.lane.b32.xlu0 %v496, 64
      %v1259 = vpop.permute.xlu0 %1258
      %1260 = vrot.lane.b32.xlu0 %v498, 64
      %v1261 = vpop.permute.xlu0 %1260
      %1262 = vrot.lane.b32.xlu0 %v501, 64
      %v1263 = vpop.permute.xlu0 %1262
      %1264 = vrot.lane.b32.xlu0 %v503, 64
      %v1265 = vpop.permute.xlu0 %1264
      %1266 = vrot.lane.b32.xlu0 %v506, 64
      %v1267 = vpop.permute.xlu0 %1266
      %1268 = vrot.lane.b32.xlu0 %v508, 64
      %v1269 = vpop.permute.xlu0 %1268
      %1270 = vrot.lane.b32.xlu0 %v511, 64
      %v1271 = vpop.permute.xlu0 %1270
      %1272 = vrot.lane.b32.xlu0 %v513, 64
      %v1273 = vpop.permute.xlu0 %1272
      %1274 = vrot.lane.b32.xlu0 %v516, 64
      %v1275 = vpop.permute.xlu0 %1274
      %1276 = vrot.lane.b32.xlu0 %v518, 64
      %v1277 = vpop.permute.xlu0 %1276
      %1278 = vrot.lane.b32.xlu0 %v521, 64
      %v1279 = vpop.permute.xlu0 %1278
      %1280 = vrot.lane.b32.xlu0 %v523, 64
      %v1281 = vpop.permute.xlu0 %1280
      %1282 = vrot.lane.b32.xlu0 %v526, 64
      %v1283 = vpop.permute.xlu0 %1282
      %1284 = vrot.lane.b32.xlu0 %v528, 64
      %v1285 = vpop.permute.xlu0 %1284
      %1286 = vrot.lane.b32.xlu0 %v531, 64
      %v1287 = vpop.permute.xlu0 %1286
      %1288 = vrot.lane.b32.xlu0 %v533, 64
      %v1289 = vpop.permute.xlu0 %1288
      %1290 = vrot.lane.b32.xlu0 %v536, 64
      %v1291 = vpop.permute.xlu0 %1290
      %1292 = vrot.lane.b32.xlu0 %v538, 64
      %v1293 = vpop.permute.xlu0 %1292
      %1294 = vrot.lane.b32.xlu0 %v541, 64
      %v1295 = vpop.permute.xlu0 %1294
      %1296 = vrot.lane.b32.xlu0 %v543, 64
      %v1297 = vpop.permute.xlu0 %1296
      %1298 = vrot.lane.b32.xlu0 %v554, 64
      %v1299 = vpop.permute.xlu0 %1298
      %1300 = vrot.lane.b32.xlu0 %v556, 64
      %v1301 = vpop.permute.xlu0 %1300
      %1302 = vrot.lane.b32.xlu0 %v567, 64
      %v1303 = vpop.permute.xlu0 %1302
      %1304 = vrot.lane.b32.xlu0 %v569, 64
      %v1305 = vpop.permute.xlu0 %1304
      %vm1338 = vcmask 64512
      %v1339 = vsel %vm1338, %v280, %v571
      %v1340 = vsel %vm1338, %v281, %v573
      %v1341 = vsel %vm1338, %v283, %v575
      %v1342 = vsel %vm1338, %v284, %v577
      %v1343 = vsel %vm1338, %v286, %v579
      %v1344 = vsel %vm1338, %v287, %v581
      %v1345 = vsel %vm1338, %v289, %v583
      %v1346 = vsel %vm1338, %v290, %v585
      %v1347 = vsel %vm1338, %v292, %v587
      %v1348 = vsel %vm1338, %v293, %v589
      %v1349 = vsel %vm1338, %v295, %v591
      %v1350 = vsel %vm1338, %v296, %v593
      %v1351 = vsel %vm1338, %v298, %v595
      %v1352 = vsel %vm1338, %v299, %v597
      %v1353 = vsel %vm1338, %v301, %v599
      %v1354 = vsel %vm1338, %v302, %v601
      %v1355 = vsel %vm1338, %v304, %v603
      %v1356 = vsel %vm1338, %v305, %v605
      %v1357 = vsel %vm1338, %v307, %v607
      %v1358 = vsel %vm1338, %v308, %v609
      %v1359 = vsel %vm1338, %v310, %v611
      %v1360 = vsel %vm1338, %v311, %v613
      %v1361 = vsel %vm1338, %v313, %v615
      %v1362 = vsel %vm1338, %v314, %v617
      %v1363 = vsel %vm1338, %v316, %v619
      %v1364 = vsel %vm1338, %v317, %v621
      %v1365 = vsel %vm1338, %v319, %v623
      %v1366 = vsel %vm1338, %v320, %v625
      %v1367 = vsel %vm1338, %v322, %v627
      %v1368 = vsel %vm1338, %v323, %v629
      %v1369 = vsel %vm1338, %v325, %v631
      %v1370 = vsel %vm1338, %v326, %v633
      %vm1371 = vcmask 130048
      %v1372 = vsel %vm1371, %v1339, %v667
      %v1373 = vsel %vm1371, %v1340, %v669
      %v1374 = vsel %vm1371, %v1341, %v671
      %v1375 = vsel %vm1371, %v1342, %v673
      %v1376 = vsel %vm1371, %v1343, %v675
      %v1377 = vsel %vm1371, %v1344, %v677
      %v1378 = vsel %vm1371, %v1345, %v679
      %v1379 = vsel %vm1371, %v1346, %v681
      %v1380 = vsel %vm1371, %v1347, %v683
      %v1381 = vsel %vm1371, %v1348, %v685
      %v1382 = vsel %vm1371, %v1349, %v687
      %v1383 = vsel %vm1371, %v1350, %v689
      %v1384 = vsel %vm1371, %v1351, %v691
      %v1385 = vsel %vm1371, %v1352, %v693
      %v1386 = vsel %vm1371, %v1353, %v695
      %v1387 = vsel %vm1371, %v1354, %v697
      %v1388 = vsel %vm1371, %v1355, %v699
      %v1389 = vsel %vm1371, %v1356, %v701
      %v1390 = vsel %vm1371, %v1357, %v703
      %v1391 = vsel %vm1371, %v1358, %v705
      %v1392 = vsel %vm1371, %v1359, %v707
      %v1393 = vsel %vm1371, %v1360, %v709
      %v1394 = vsel %vm1371, %v1361, %v711
      %v1395 = vsel %vm1371, %v1362, %v713
      %v1396 = vsel %vm1371, %v1363, %v715
      %v1397 = vsel %vm1371, %v1364, %v717
      %v1398 = vsel %vm1371, %v1365, %v719
      %v1399 = vsel %vm1371, %v1366, %v721
      %v1400 = vsel %vm1371, %v1367, %v723
      %v1401 = vsel %vm1371, %v1368, %v725
      %v1402 = vsel %vm1371, %v1369, %v727
      %v1403 = vsel %vm1371, %v1370, %v729
      %vm1404 = vcmask 195584
      %v1405 = vsel %vm1404, %v1372, %v763
      %v1406 = vsel %vm1404, %v1373, %v765
      %v1407 = vsel %vm1404, %v1374, %v767
      %v1408 = vsel %vm1404, %v1375, %v769
      %v1409 = vsel %vm1404, %v1376, %v771
      %v1410 = vsel %vm1404, %v1377, %v773
      %v1411 = vsel %vm1404, %v1378, %v775
      %v1412 = vsel %vm1404, %v1379, %v777
      %v1413 = vsel %vm1404, %v1380, %v779
      %v1414 = vsel %vm1404, %v1381, %v781
      %v1415 = vsel %vm1404, %v1382, %v783
      %v1416 = vsel %vm1404, %v1383, %v785
      %v1417 = vsel %vm1404, %v1384, %v787
      %v1418 = vsel %vm1404, %v1385, %v789
      %v1419 = vsel %vm1404, %v1386, %v791
      %v1420 = vsel %vm1404, %v1387, %v793
      %v1421 = vsel %vm1404, %v1388, %v795
      %v1422 = vsel %vm1404, %v1389, %v797
      %v1423 = vsel %vm1404, %v1390, %v799
      %v1424 = vsel %vm1404, %v1391, %v801
      %v1425 = vsel %vm1404, %v1392, %v803
      %v1426 = vsel %vm1404, %v1393, %v805
      %v1427 = vsel %vm1404, %v1394, %v807
      %v1428 = vsel %vm1404, %v1395, %v809
      %v1429 = vsel %vm1404, %v1396, %v811
      %v1430 = vsel %vm1404, %v1397, %v813
      %v1431 = vsel %vm1404, %v1398, %v815
      %v1432 = vsel %vm1404, %v1399, %v817
      %v1433 = vsel %vm1404, %v1400, %v819
      %v1434 = vsel %vm1404, %v1401, %v821
      %v1435 = vsel %vm1404, %v1402, %v823
      %v1436 = vsel %vm1404, %v1403, %v825
      %vm1437 = vcmask 261120
      %v1438 = vsel %vm1437, %v1405, %v859
      %v1439 = vsel %vm1437, %v1406, %v861
      %v1440 = vsel %vm1437, %v1407, %v863
      %v1441 = vsel %vm1437, %v1408, %v865
      %v1442 = vsel %vm1437, %v1409, %v867
      %v1443 = vsel %vm1437, %v1410, %v869
      %v1444 = vsel %vm1437, %v1411, %v871
      %v1445 = vsel %vm1437, %v1412, %v873
      %v1446 = vsel %vm1437, %v1413, %v875
      %v1447 = vsel %vm1437, %v1414, %v877
      %v1448 = vsel %vm1437, %v1415, %v879
      %v1449 = vsel %vm1437, %v1416, %v881
      %v1450 = vsel %vm1437, %v1417, %v883
      %v1451 = vsel %vm1437, %v1418, %v885
      %v1452 = vsel %vm1437, %v1419, %v887
      %v1453 = vsel %vm1437, %v1420, %v889
      %v1454 = vsel %vm1437, %v1421, %v891
      %v1455 = vsel %vm1437, %v1422, %v893
      %v1456 = vsel %vm1437, %v1423, %v895
      %v1457 = vsel %vm1437, %v1424, %v897
      %v1458 = vsel %vm1437, %v1425, %v899
      %v1459 = vsel %vm1437, %v1426, %v901
      %v1460 = vsel %vm1437, %v1427, %v903
      %v1461 = vsel %vm1437, %v1428, %v905
      %v1462 = vsel %vm1437, %v1429, %v907
      %v1463 = vsel %vm1437, %v1430, %v909
      %v1464 = vsel %vm1437, %v1431, %v911
      %v1465 = vsel %vm1437, %v1432, %v913
      %v1466 = vsel %vm1437, %v1433, %v915
      %v1467 = vsel %vm1437, %v1434, %v917
      %v1468 = vsel %vm1437, %v1435, %v919
      %v1469 = vsel %vm1437, %v1436, %v921
      %vm1470 = vcmask 326656
      %v1471 = vsel %vm1470, %v1438, %v955
      %v1472 = vsel %vm1470, %v1439, %v957
      %v1473 = vsel %vm1470, %v1440, %v959
      %v1474 = vsel %vm1470, %v1441, %v961
      %v1475 = vsel %vm1470, %v1442, %v963
      %v1476 = vsel %vm1470, %v1443, %v965
      %v1477 = vsel %vm1470, %v1444, %v967
      %v1478 = vsel %vm1470, %v1445, %v969
      %v1479 = vsel %vm1470, %v1446, %v971
      %v1480 = vsel %vm1470, %v1447, %v973
      %v1481 = vsel %vm1470, %v1448, %v975
      %v1482 = vsel %vm1470, %v1449, %v977
      %v1483 = vsel %vm1470, %v1450, %v979
      %v1484 = vsel %vm1470, %v1451, %v981
      %v1485 = vsel %vm1470, %v1452, %v983
      %v1486 = vsel %vm1470, %v1453, %v985
      %v1487 = vsel %vm1470, %v1454, %v987
      %v1488 = vsel %vm1470, %v1455, %v989
      %v1489 = vsel %vm1470, %v1456, %v991
      %v1490 = vsel %vm1470, %v1457, %v993
      %v1491 = vsel %vm1470, %v1458, %v995
      %v1492 = vsel %vm1470, %v1459, %v997
      %v1493 = vsel %vm1470, %v1460, %v999
      %v1494 = vsel %vm1470, %v1461, %v1001
      %v1495 = vsel %vm1470, %v1462, %v1003
      %v1496 = vsel %vm1470, %v1463, %v1005
      %v1497 = vsel %vm1470, %v1464, %v1007
      %v1498 = vsel %vm1470, %v1465, %v1009
      %v1499 = vsel %vm1470, %v1466, %v1011
      %v1500 = vsel %vm1470, %v1467, %v1013
      %v1501 = vsel %vm1470, %v1468, %v1015
      %v1502 = vsel %vm1470, %v1469, %v1017
      %vm1503 = vcmask 392192
      %v1504 = vsel %vm1503, %v1471, %v1051
      %v1505 = vsel %vm1503, %v1472, %v1053
      %v1506 = vsel %vm1503, %v1473, %v1055
      %v1507 = vsel %vm1503, %v1474, %v1057
      %v1508 = vsel %vm1503, %v1475, %v1059
      %v1509 = vsel %vm1503, %v1476, %v1061
      %v1510 = vsel %vm1503, %v1477, %v1063
      %v1511 = vsel %vm1503, %v1478, %v1065
      %v1512 = vsel %vm1503, %v1479, %v1067
      %v1513 = vsel %vm1503, %v1480, %v1069
      %v1514 = vsel %vm1503, %v1481, %v1071
      %v1515 = vsel %vm1503, %v1482, %v1073
      %v1516 = vsel %vm1503, %v1483, %v1075
      %v1517 = vsel %vm1503, %v1484, %v1077
      %v1518 = vsel %vm1503, %v1485, %v1079
      %v1519 = vsel %vm1503, %v1486, %v1081
      %v1520 = vsel %vm1503, %v1487, %v1083
      %v1521 = vsel %vm1503, %v1488, %v1085
      %v1522 = vsel %vm1503, %v1489, %v1087
      %v1523 = vsel %vm1503, %v1490, %v1089
      %v1524 = vsel %vm1503, %v1491, %v1091
      %v1525 = vsel %vm1503, %v1492, %v1093
      %v1526 = vsel %vm1503, %v1493, %v1095
      %v1527 = vsel %vm1503, %v1494, %v1097
      %v1528 = vsel %vm1503, %v1495, %v1099
      %v1529 = vsel %vm1503, %v1496, %v1101
      %v1530 = vsel %vm1503, %v1497, %v1103
      %v1531 = vsel %vm1503, %v1498, %v1105
      %v1532 = vsel %vm1503, %v1499, %v1107
      %v1533 = vsel %vm1503, %v1500, %v1109
      %v1534 = vsel %vm1503, %v1501, %v1111
      %v1535 = vsel %vm1503, %v1502, %v1113
      %vm1536 = vcmask 457728
      %v1537 = vsel %vm1536, %v1504, %v1147
      %v1538 = vsel %vm1536, %v1505, %v1149
      %v1539 = vsel %vm1536, %v1506, %v1151
      %v1540 = vsel %vm1536, %v1507, %v1153
      %v1541 = vsel %vm1536, %v1508, %v1155
      %v1542 = vsel %vm1536, %v1509, %v1157
      %v1543 = vsel %vm1536, %v1510, %v1159
      %v1544 = vsel %vm1536, %v1511, %v1161
      %v1545 = vsel %vm1536, %v1512, %v1163
      %v1546 = vsel %vm1536, %v1513, %v1165
      %v1547 = vsel %vm1536, %v1514, %v1167
      %v1548 = vsel %vm1536, %v1515, %v1169
      %v1549 = vsel %vm1536, %v1516, %v1171
      %v1550 = vsel %vm1536, %v1517, %v1173
      %v1551 = vsel %vm1536, %v1518, %v1175
      %v1552 = vsel %vm1536, %v1519, %v1177
      %v1553 = vsel %vm1536, %v1520, %v1179
      %v1554 = vsel %vm1536, %v1521, %v1181
      %v1555 = vsel %vm1536, %v1522, %v1183
      %v1556 = vsel %vm1536, %v1523, %v1185
      %v1557 = vsel %vm1536, %v1524, %v1187
      %v1558 = vsel %vm1536, %v1525, %v1189
      %v1559 = vsel %vm1536, %v1526, %v1191
      %v1560 = vsel %vm1536, %v1527, %v1193
      %v1561 = vsel %vm1536, %v1528, %v1195
      %v1562 = vsel %vm1536, %v1529, %v1197
      %v1563 = vsel %vm1536, %v1530, %v1199
      %v1564 = vsel %vm1536, %v1531, %v1201
      %v1565 = vsel %vm1536, %v1532, %v1203
      %v1566 = vsel %vm1536, %v1533, %v1205
      %v1567 = vsel %vm1536, %v1534, %v1207
      %v1568 = vsel %vm1536, %v1535, %v1209
      %vm1569 = vcmask 523264
      %v1570 = vsel %vm1569, %v1537, %v1243
      %v1571 = vsel %vm1569, %v1538, %v1245
      %v1572 = vsel %vm1569, %v1539, %v1247
      %v1573 = vsel %vm1569, %v1540, %v1249
      %v1574 = vsel %vm1569, %v1541, %v1251
      %v1575 = vsel %vm1569, %v1542, %v1253
      %v1576 = vsel %vm1569, %v1543, %v1255
      %v1577 = vsel %vm1569, %v1544, %v1257
      %v1578 = vsel %vm1569, %v1545, %v1259
      %v1579 = vsel %vm1569, %v1546, %v1261
      %v1580 = vsel %vm1569, %v1547, %v1263
      %v1581 = vsel %vm1569, %v1548, %v1265
      %v1582 = vsel %vm1569, %v1549, %v1267
      %v1583 = vsel %vm1569, %v1550, %v1269
      %v1584 = vsel %vm1569, %v1551, %v1271
      %v1585 = vsel %vm1569, %v1552, %v1273
      %v1586 = vsel %vm1569, %v1553, %v1275
      %v1587 = vsel %vm1569, %v1554, %v1277
      %v1588 = vsel %vm1569, %v1555, %v1279
      %v1589 = vsel %vm1569, %v1556, %v1281
      %v1590 = vsel %vm1569, %v1557, %v1283
      %v1591 = vsel %vm1569, %v1558, %v1285
      %v1592 = vsel %vm1569, %v1559, %v1287
      %v1593 = vsel %vm1569, %v1560, %v1289
      %v1594 = vsel %vm1569, %v1561, %v1291
      %v1595 = vsel %vm1569, %v1562, %v1293
      %v1596 = vsel %vm1569, %v1563, %v1295
      %v1597 = vsel %vm1569, %v1564, %v1297
      %v1598 = vsel %vm1569, %v1565, %v1299
      %v1599 = vsel %vm1569, %v1566, %v1301
      %v1600 = vsel %vm1569, %v1567, %v1303
      %v1601 = vsel %vm1569, %v1568, %v1305
      %v1602 = vpack.c.bf16 %v1571, %v1570
      %v1603 = vpack.c.bf16 %v1573, %v1572
      %v1604 = vpack.c.bf16 %v1575, %v1574
      %v1605 = vpack.c.bf16 %v1577, %v1576
      %v1606 = vpack.c.bf16 %v1579, %v1578
      %v1607 = vpack.c.bf16 %v1581, %v1580
      %v1608 = vpack.c.bf16 %v1583, %v1582
      %v1609 = vpack.c.bf16 %v1585, %v1584
      %v1610 = vpack.c.bf16 %v1587, %v1586
      %v1611 = vpack.c.bf16 %v1589, %v1588
      %v1612 = vpack.c.bf16 %v1591, %v1590
      %v1613 = vpack.c.bf16 %v1593, %v1592
      %v1614 = vpack.c.bf16 %v1595, %v1594
      %v1615 = vpack.c.bf16 %v1597, %v1596
      %v1616 = vpack.c.bf16 %v1599, %v1598
      %v1617 = vpack.c.bf16 %v1601, %v1600
      %v1618 = vld [vmem:[%s1] sm:$0xf]
      %v1619 = vld [vmem:[%s1 + $0x4] sm:$0xf]
      %v1620 = vld [vmem:[%s1 + $0x8] sm:$0xf]
      %v1621 = vld [vmem:[%s1 + $0xc] sm:$0xf]
      %v1622 = vld [vmem:[%s1 + $0x10] sm:$0xf]
      %v1623 = vld [vmem:[%s1 + $0x14] sm:$0xf]
      %v1624 = vld [vmem:[%s1 + $0x18] sm:$0xf]
      %v1625 = vld [vmem:[%s1 + $0x1c] sm:$0xf]
      %v1626 = vld [vmem:[%s1 + $0x20] sm:$0xf]
      %v1627 = vld [vmem:[%s2] sm:$0x1]
      %v1629 = vlaneseq
      %v1630 = vshrl.u32 %v1629, 7
      %v1631 = vsub.s32 0, %v1630
      %v1632 = vrot.slane %v1627, %v1631
      %v1643 = vunpack.c.l.b16 %v1618
      %v1644 = vunpack.c.l.b16 %v1619
      %v1645 = vunpack.c.l.b16 %v1620
      %v1646 = vunpack.c.l.b16 %v1621
      %v1647 = vunpack.c.l.b16 %v1622
      %v1648 = vunpack.c.l.b16 %v1623
      %v1649 = vunpack.c.l.b16 %v1624
      %v1650 = vunpack.c.l.b16 %v1625
      %v1651 = vunpack.c.l.b16 %v1626
      %v1652 = vpack.c.b16 %v1644, %v1643
      %v1653 = vpack.c.b16 %v1646, %v1645
      %v1654 = vpack.c.b16 %v1648, %v1647
      %v1655 = vpack.c.b16 %v1650, %v1649
      %v1656 = vpack.c.b16 %v1651, %v1651
      %vm1661 = vcmask 588800
      %v1663 = vsel %vm1661, %v1602, 0
      %v1666 = vsel %vm1661, %v1603, 0
      %v1669 = vsel %vm1661, %v1604, 0
      %v1672 = vsel %vm1661, %v1605, 0
      %v1675 = vsel %vm1661, %v1606, 0
      %v1678 = vsel %vm1661, %v1607, 0
      %v1681 = vsel %vm1661, %v1608, 0
      %v1684 = vsel %vm1661, %v1609, 0
      %v1687 = vsel %vm1661, %v1610, 0
      %v1690 = vsel %vm1661, %v1611, 0
      %v1693 = vsel %vm1661, %v1612, 0
      %v1696 = vsel %vm1661, %v1613, 0
      %v1699 = vsel %vm1661, %v1614, 0
      %v1702 = vsel %vm1661, %v1615, 0
      %v1705 = vsel %vm1661, %v1616, 0
      %v1708 = vsel %vm1661, %v1617, 0
      %vm1710 = vcmask 1043456
      %v1712 = vsel %vm1710, %v1656, 0
      %1714 = vmatprep.subr.bf16.mxu0 0
      %1715 = vmatpush1.bf16.msra.mxu0 0
      %1716 = vmatprep.subr.bf16.mxu0 0
      %1717 = vmatpush1.bf16.msra.mxu0 0
      %1718 = vmatprep.subr.bf16.mxu0 0
      %1719 = vmatpush1.bf16.msra.mxu0 0
      %1720 = vmatprep.subr.bf16.mxu0 0
      %1721 = vmatpush1.bf16.msra.mxu0 %v1712
      %1722 = vmatprep.subr.bf16.mxu0 0
      %1723 = vmatpush1.bf16.msra.mxu0 %v1655
      %1724 = vmatprep.subr.bf16.mxu0 0
      %1725 = vmatpush1.bf16.msra.mxu0 %v1654
      %1726 = vmatprep.subr.bf16.mxu0 0
      %1727 = vmatpush1.bf16.msra.mxu0 %v1653
      %1728 = vmatprep.subr.bf16.mxu0 0
      %1729 = vmatpush1.bf16.msra.mxu0 %v1652
      %1730 = vmatprep.subr.bf16.mxu0 0
      %1731 = vmatpush2.bf16.msra.mxu0 0
      %1732 = vmatprep.subr.bf16.mxu0 0
      %1733 = vmatpush2.bf16.msra.mxu0 0
      %1734 = vmatprep.subr.bf16.mxu0 0
      %1735 = vmatpush2.bf16.msra.mxu0 0
      %1736 = vmatprep.subr.bf16.mxu0 0
      %1737 = vmatpush2.bf16.msra.mxu0 0
      %1738 = vmatprep.subr.bf16.mxu0 0
      %1739 = vmatpush2.bf16.msra.mxu0 0
      %1740 = vmatprep.subr.bf16.mxu0 0
      %1741 = vmatpush2.bf16.msra.mxu0 0
      %1742 = vmatprep.subr.bf16.mxu0 0
      %1743 = vmatpush2.bf16.msra.mxu0 0
      %1744 = vmatprep.subr.bf16.mxu0 0
      %1745 = vmatpush2.bf16.msra.mxu0 0
      %1746 = vmatprep.mubr.bf16.mxu0 0
      %1747 = vmatmul.mubr.bf16.gmra.mxu0 %v1663
      %v1748 = vpop.f32.mrf.mxu0
      %v1749 = vadd.f32 %v1632, %v1748
      %v1750 = vpop.f32.mrf.mxu0
      %v1751 = vpop.f32.mrf.mxu0
      %v1752 = vadd.f32 %v1632, %v1751
      %v1753 = vpop.f32.mrf.mxu0
      %1754 = vmatprep.mubr.bf16.mxu0 0
      %1755 = vmatmul.mubr.bf16.gmra.mxu0 %v1666
      %v1756 = vpop.f32.mrf.mxu0
      %v1757 = vadd.f32 %v1632, %v1756
      %v1758 = vpop.f32.mrf.mxu0
      %v1759 = vpop.f32.mrf.mxu0
      %v1760 = vadd.f32 %v1632, %v1759
      %v1761 = vpop.f32.mrf.mxu0
      %1762 = vmatprep.mubr.bf16.mxu0 0
      %1763 = vmatmul.mubr.bf16.gmra.mxu0 %v1669
      %v1764 = vpop.f32.mrf.mxu0
      %v1765 = vadd.f32 %v1632, %v1764
      %v1766 = vpop.f32.mrf.mxu0
      %v1767 = vpop.f32.mrf.mxu0
      %v1768 = vadd.f32 %v1632, %v1767
      %v1769 = vpop.f32.mrf.mxu0
      %1770 = vmatprep.mubr.bf16.mxu0 0
      %1771 = vmatmul.mubr.bf16.gmra.mxu0 %v1672
      %v1772 = vpop.f32.mrf.mxu0
      %v1773 = vadd.f32 %v1632, %v1772
      %v1774 = vpop.f32.mrf.mxu0
      %v1775 = vpop.f32.mrf.mxu0
      %v1776 = vadd.f32 %v1632, %v1775
      %v1777 = vpop.f32.mrf.mxu0
      %1778 = vmatprep.mubr.bf16.mxu0 0
      %1779 = vmatmul.mubr.bf16.gmra.mxu0 %v1675
      %v1780 = vpop.f32.mrf.mxu0
      %v1781 = vadd.f32 %v1632, %v1780
      %v1782 = vpop.f32.mrf.mxu0
      %v1783 = vpop.f32.mrf.mxu0
      %v1784 = vadd.f32 %v1632, %v1783
      %v1785 = vpop.f32.mrf.mxu0
      %1786 = vmatprep.mubr.bf16.mxu0 0
      %1787 = vmatmul.mubr.bf16.gmra.mxu0 %v1678
      %v1788 = vpop.f32.mrf.mxu0
      %v1789 = vadd.f32 %v1632, %v1788
      %v1790 = vpop.f32.mrf.mxu0
      %v1791 = vpop.f32.mrf.mxu0
      %v1792 = vadd.f32 %v1632, %v1791
      %v1793 = vpop.f32.mrf.mxu0
      %1794 = vmatprep.mubr.bf16.mxu0 0
      %1795 = vmatmul.mubr.bf16.gmra.mxu0 %v1681
      %v1796 = vpop.f32.mrf.mxu0
      %v1797 = vadd.f32 %v1632, %v1796
      %v1798 = vpop.f32.mrf.mxu0
      %v1799 = vpop.f32.mrf.mxu0
      %v1800 = vadd.f32 %v1632, %v1799
      %v1801 = vpop.f32.mrf.mxu0
      %1802 = vmatprep.mubr.bf16.mxu0 0
      %1803 = vmatmul.mubr.bf16.gmra.mxu0 %v1684
      %v1804 = vpop.f32.mrf.mxu0
      %v1805 = vadd.f32 %v1632, %v1804
      %v1806 = vpop.f32.mrf.mxu0
      %v1807 = vpop.f32.mrf.mxu0
      %v1808 = vadd.f32 %v1632, %v1807
      %v1809 = vpop.f32.mrf.mxu0
      %1810 = vmatprep.mubr.bf16.mxu0 0
      %1811 = vmatmul.mubr.bf16.gmra.mxu0 %v1687
      %v1812 = vpop.f32.mrf.mxu0
      %v1813 = vadd.f32 %v1632, %v1812
      %v1814 = vpop.f32.mrf.mxu0
      %v1815 = vpop.f32.mrf.mxu0
      %v1816 = vadd.f32 %v1632, %v1815
      %v1817 = vpop.f32.mrf.mxu0
      %1818 = vmatprep.mubr.bf16.mxu0 0
      %1819 = vmatmul.mubr.bf16.gmra.mxu0 %v1690
      %v1820 = vpop.f32.mrf.mxu0
      %v1821 = vadd.f32 %v1632, %v1820
      %v1822 = vpop.f32.mrf.mxu0
      %v1823 = vpop.f32.mrf.mxu0
      %v1824 = vadd.f32 %v1632, %v1823
      %v1825 = vpop.f32.mrf.mxu0
      %1826 = vmatprep.mubr.bf16.mxu0 0
      %1827 = vmatmul.mubr.bf16.gmra.mxu0 %v1693
      %v1828 = vpop.f32.mrf.mxu0
      %v1829 = vadd.f32 %v1632, %v1828
      %v1830 = vpop.f32.mrf.mxu0
      %v1831 = vpop.f32.mrf.mxu0
      %v1832 = vadd.f32 %v1632, %v1831
      %v1833 = vpop.f32.mrf.mxu0
      %1834 = vmatprep.mubr.bf16.mxu0 0
      %1835 = vmatmul.mubr.bf16.gmra.mxu0 %v1696
      %v1836 = vpop.f32.mrf.mxu0
      %v1837 = vadd.f32 %v1632, %v1836
      %v1838 = vpop.f32.mrf.mxu0
      %v1839 = vpop.f32.mrf.mxu0
      %v1840 = vadd.f32 %v1632, %v1839
      %v1841 = vpop.f32.mrf.mxu0
      %1842 = vmatprep.mubr.bf16.mxu0 0
      %1843 = vmatmul.mubr.bf16.gmra.mxu0 %v1699
      %v1844 = vpop.f32.mrf.mxu0
      %v1845 = vadd.f32 %v1632, %v1844
      %v1846 = vpop.f32.mrf.mxu0
      %v1847 = vpop.f32.mrf.mxu0
      %v1848 = vadd.f32 %v1632, %v1847
      %v1849 = vpop.f32.mrf.mxu0
      %1850 = vmatprep.mubr.bf16.mxu0 0
      %1851 = vmatmul.mubr.bf16.gmra.mxu0 %v1702
      %v1852 = vpop.f32.mrf.mxu0
      %v1853 = vadd.f32 %v1632, %v1852
      %v1854 = vpop.f32.mrf.mxu0
      %v1855 = vpop.f32.mrf.mxu0
      %v1856 = vadd.f32 %v1632, %v1855
      %v1857 = vpop.f32.mrf.mxu0
      %1858 = vmatprep.mubr.bf16.mxu0 0
      %1859 = vmatmul.mubr.bf16.gmra.mxu0 %v1705
      %v1860 = vpop.f32.mrf.mxu0
      %v1861 = vadd.f32 %v1632, %v1860
      %v1862 = vpop.f32.mrf.mxu0
      %v1863 = vpop.f32.mrf.mxu0
      %v1864 = vadd.f32 %v1632, %v1863
      %v1865 = vpop.f32.mrf.mxu0
      %1866 = vmatprep.mubr.bf16.mxu0 0
      %1867 = vmatmul.mubr.bf16.gmra.mxu0 %v1708
      %v1868 = vpop.f32.mrf.mxu0
      %v1869 = vadd.f32 %v1632, %v1868
      %v1870 = vpop.f32.mrf.mxu0
      %v1871 = vpop.f32.mrf.mxu0
      %v1872 = vadd.f32 %v1632, %v1871
      %v1873 = vpop.f32.mrf.mxu0
      %1874 = vdwg.mxu0
      %v1875 = vmax.f32 %v1749, 0.0
      %v1876 = vmax.f32 %v1752, 0.0
      %v1877 = vmax.f32 %v1757, 0.0
      %v1878 = vmax.f32 %v1760, 0.0
      %v1879 = vmax.f32 %v1765, 0.0
      %v1880 = vmax.f32 %v1768, 0.0
      %v1881 = vmax.f32 %v1773, 0.0
      %v1882 = vmax.f32 %v1776, 0.0
      %v1883 = vmax.f32 %v1781, 0.0
      %v1884 = vmax.f32 %v1784, 0.0
      %v1885 = vmax.f32 %v1789, 0.0
      %v1886 = vmax.f32 %v1792, 0.0
      %v1887 = vmax.f32 %v1797, 0.0
      %v1888 = vmax.f32 %v1800, 0.0
      %v1889 = vmax.f32 %v1805, 0.0
      %v1890 = vmax.f32 %v1808, 0.0
      %v1891 = vmax.f32 %v1813, 0.0
      %v1892 = vmax.f32 %v1816, 0.0
      %v1893 = vmax.f32 %v1821, 0.0
      %v1894 = vmax.f32 %v1824, 0.0
      %v1895 = vmax.f32 %v1829, 0.0
      %v1896 = vmax.f32 %v1832, 0.0
      %v1897 = vmax.f32 %v1837, 0.0
      %v1898 = vmax.f32 %v1840, 0.0
      %v1899 = vmax.f32 %v1845, 0.0
      %v1900 = vmax.f32 %v1848, 0.0
      %v1901 = vmax.f32 %v1853, 0.0
      %v1902 = vmax.f32 %v1856, 0.0
      %v1903 = vmax.f32 %v1861, 0.0
      %v1904 = vmax.f32 %v1864, 0.0
      %v1905 = vmax.f32 %v1869, 0.0
      %v1906 = vmax.f32 %v1872, 0.0
      %1907 = vst [vmem:[#allocation2] sm:$0xff] 0.0
      %1908 = vst [vmem:[#allocation2 + $0x8] sm:$0xff] 0.0
      %1909 = vst [vmem:[#allocation2 + $0x10] sm:$0x3] 0.0
      %1910 = vst [vmem:[#allocation2 + $0x18] sm:$0xff] 0.0
      %1911 = vst [vmem:[#allocation2 + $0x20] sm:$0xff] 0.0
      %1912 = vst [vmem:[#allocation2 + $0x28] sm:$0x3] 0.0
      %1913 = vst [vmem:[#allocation2 + $0x30] sm:$0xff] 0.0
      %1914 = vst [vmem:[#allocation2 + $0x38] sm:$0xff] 0.0
      %1915 = vst [vmem:[#allocation2 + $0x40] sm:$0x3] 0.0
      %1916 = vst [vmem:[#allocation2 + $0x48] sm:$0xff] 0.0
      %1917 = vst [vmem:[#allocation2 + $0x50] sm:$0xff] 0.0
      %1918 = vst [vmem:[#allocation2 + $0x58] sm:$0x3] 0.0
      %1919 = vst [vmem:[#allocation2 + $0x60] sm:$0xff] 0.0
      %1920 = vst [vmem:[#allocation2 + $0x68] sm:$0xff] 0.0
      %1921 = vst [vmem:[#allocation2 + $0x70] sm:$0x3] 0.0
      %1922 = vst [vmem:[#allocation2 + $0x78] sm:$0xff] 0.0
      %1923 = vst [vmem:[#allocation2 + $0x80] sm:$0xff] 0.0
      %1924 = vst [vmem:[#allocation2 + $0x88] sm:$0x3] 0.0
      %1925 = vst [vmem:[#allocation2 + $0x90] sm:$0xff] 0.0
      %1926 = vst [vmem:[#allocation2 + $0x98] sm:$0xff] 0.0
      %1927 = vst [vmem:[#allocation2 + $0xa0] sm:$0x3] 0.0
      %1928 = vst [vmem:[#allocation2 + $0xa8] sm:$0xff] 0.0
      %1929 = vst [vmem:[#allocation2 + $0xb0] sm:$0xff] 0.0
      %1930 = vst [vmem:[#allocation2 + $0xb8] sm:$0x3] 0.0
      %1931 = vst [vmem:[#allocation2 + $0xc0] sm:$0xff] 0.0
      %1932 = vst [vmem:[#allocation2 + $0xc8] sm:$0xff] 0.0
      %1933 = vst [vmem:[#allocation2 + $0xd0] sm:$0x3] 0.0
      %1934 = vst [vmem:[#allocation2 + $0xd8] sm:$0xff] 0.0
      %1935 = vst [vmem:[#allocation2 + $0xe0] sm:$0xff] 0.0
      %1936 = vst [vmem:[#allocation2 + $0xe8] sm:$0x3] 0.0
      %1937 = vst [vmem:[#allocation2 + $0xf0] sm:$0xff] 0.0
      %1938 = vst [vmem:[#allocation2 + $0xf8] sm:$0xff] 0.0
      %1939 = vst [vmem:[#allocation2 + $0x100] sm:$0x3] 0.0
      %1940 = vst [vmem:[#allocation2 + $0x108] sm:$0xff] 0.0
      %1941 = vst [vmem:[#allocation2 + $0x110] sm:$0xff] 0.0
      %1942 = vst [vmem:[#allocation2 + $0x118] sm:$0x3] 0.0
      %1943 = vst [vmem:[#allocation2 + $0x120] sm:$0xff] 0.0
      %1944 = vst [vmem:[#allocation2 + $0x128] sm:$0xff] 0.0
      %1945 = vst [vmem:[#allocation2 + $0x130] sm:$0x3] 0.0
      %1946 = vst [vmem:[#allocation2 + $0x138] sm:$0xff] 0.0
      %1947 = vst [vmem:[#allocation2 + $0x140] sm:$0xff] 0.0
      %1948 = vst [vmem:[#allocation2 + $0x148] sm:$0x3] 0.0
      %1949 = vst [vmem:[#allocation2 + $0x150] sm:$0xff] 0.0
      %1950 = vst [vmem:[#allocation2 + $0x158] sm:$0xff] 0.0
      %1951 = vst [vmem:[#allocation2 + $0x160] sm:$0x3] 0.0
      %1952 = vst [vmem:[#allocation2 + $0x168] sm:$0xff] 0.0
      %1953 = vst [vmem:[#allocation2 + $0x170] sm:$0xff] 0.0
      %1954 = vst [vmem:[#allocation2 + $0x178] sm:$0x3] 0.0
      %1955 = vst [vmem:[#allocation2 + $0x180] sm:$0xff] 0.0
      %1956 = vst [vmem:[#allocation2 + $0x188] sm:$0xff] 0.0
      %1957 = vst [vmem:[#allocation2 + $0x190] sm:$0x3] 0.0
      %1958 = vst [vmem:[#allocation2 + $0x198] sm:$0xff] 0.0
      %1959 = vst [vmem:[#allocation2 + $0x1a0] sm:$0xff] 0.0
      %1960 = vst [vmem:[#allocation2 + $0x1a8] sm:$0x3] 0.0
      %s1961 = scalar_lea.vmem [#allocation2], 24
      %1962 = vst [vmem:[%s1961 + $0x1] sm:$0xff] %v1875
      %1963 = vst [vmem:[%s1961 + $0x9] sm:$0xff] %v1876
      %1964 = vst [vmem:[%s1961 + $0x19] sm:$0xff] %v1877
      %1965 = vst [vmem:[%s1961 + $0x21] sm:$0xff] %v1878
      %1966 = vst [vmem:[%s1961 + $0x31] sm:$0xff] %v1879
      %1967 = vst [vmem:[%s1961 + $0x39] sm:$0xff] %v1880
      %1968 = vst [vmem:[%s1961 + $0x49] sm:$0xff] %v1881
      %1969 = vst [vmem:[%s1961 + $0x51] sm:$0xff] %v1882
      %1970 = vst [vmem:[%s1961 + $0x61] sm:$0xff] %v1883
      %1971 = vst [vmem:[%s1961 + $0x69] sm:$0xff] %v1884
      %1972 = vst [vmem:[%s1961 + $0x79] sm:$0xff] %v1885
      %1973 = vst [vmem:[%s1961 + $0x81] sm:$0xff] %v1886
      %1974 = vst [vmem:[%s1961 + $0x91] sm:$0xff] %v1887
      %1975 = vst [vmem:[%s1961 + $0x99] sm:$0xff] %v1888
      %1976 = vst [vmem:[%s1961 + $0xa9] sm:$0xff] %v1889
      %1977 = vst [vmem:[%s1961 + $0xb1] sm:$0xff] %v1890
      %1978 = vst [vmem:[%s1961 + $0xc1] sm:$0xff] %v1891
      %1979 = vst [vmem:[%s1961 + $0xc9] sm:$0xff] %v1892
      %1980 = vst [vmem:[%s1961 + $0xd9] sm:$0xff] %v1893
      %1981 = vst [vmem:[%s1961 + $0xe1] sm:$0xff] %v1894
      %1982 = vst [vmem:[%s1961 + $0xf1] sm:$0xff] %v1895
      %1983 = vst [vmem:[%s1961 + $0xf9] sm:$0xff] %v1896
      %1984 = vst [vmem:[%s1961 + $0x109] sm:$0xff] %v1897
      %1985 = vst [vmem:[%s1961 + $0x111] sm:$0xff] %v1898
      %1986 = vst [vmem:[%s1961 + $0x121] sm:$0xff] %v1899
      %1987 = vst [vmem:[%s1961 + $0x129] sm:$0xff] %v1900
      %1988 = vst [vmem:[%s1961 + $0x139] sm:$0xff] %v1901
      %1989 = vst [vmem:[%s1961 + $0x141] sm:$0xff] %v1902
      %1990 = vst [vmem:[%s1961 + $0x151] sm:$0xff] %v1903
      %1991 = vst [vmem:[%s1961 + $0x159] sm:$0xff] %v1904
      %1992 = vst [vmem:[%s1961 + $0x169] sm:$0xff] %v1905
      %1993 = vst [vmem:[%s1961 + $0x171] sm:$0xff] %v1906
      %v1994 = vld [vmem:[#allocation2] sm:$0xff]
      %v1995 = vld [vmem:[#allocation2 + $0x8] sm:$0xff]
      %v1996 = vld [vmem:[#allocation2 + $0x18] sm:$0xff]
      %v1997 = vld [vmem:[#allocation2 + $0x20] sm:$0xff]
      %v1998 = vld [vmem:[#allocation2 + $0x30] sm:$0xff]
      %v1999 = vld [vmem:[#allocation2 + $0x38] sm:$0xff]
      %v2000 = vld [vmem:[#allocation2 + $0x48] sm:$0xff]
      %v2001 = vld [vmem:[#allocation2 + $0x50] sm:$0xff]
      %v2002 = vld [vmem:[#allocation2 + $0x60] sm:$0xff]
      %v2003 = vld [vmem:[#allocation2 + $0x68] sm:$0xff]
      %v2004 = vld [vmem:[#allocation2 + $0x78] sm:$0xff]
      %v2005 = vld [vmem:[#allocation2 + $0x80] sm:$0xff]
      %v2006 = vld [vmem:[#allocation2 + $0x90] sm:$0xff]
      %v2007 = vld [vmem:[#allocation2 + $0x98] sm:$0xff]
      %v2008 = vld [vmem:[#allocation2 + $0xa8] sm:$0xff]
      %v2009 = vld [vmem:[#allocation2 + $0xb0] sm:$0xff]
      %v2010 = vld [vmem:[#allocation2 + $0xc0] sm:$0xff]
      %v2011 = vld [vmem:[#allocation2 + $0xc8] sm:$0xff]
      %v2012 = vld [vmem:[#allocation2 + $0xd8] sm:$0xff]
      %v2013 = vld [vmem:[#allocation2 + $0xe0] sm:$0xff]
      %v2014 = vld [vmem:[#allocation2 + $0xf0] sm:$0xff]
      %v2015 = vld [vmem:[#allocation2 + $0xf8] sm:$0xff]
      %v2016 = vld [vmem:[#allocation2 + $0x108] sm:$0xff]
      %v2017 = vld [vmem:[#allocation2 + $0x110] sm:$0xff]
      %v2018 = vld [vmem:[#allocation2 + $0x120] sm:$0xff]
      %v2019 = vld [vmem:[#allocation2 + $0x128] sm:$0xff]
      %v2020 = vld [vmem:[#allocation2 + $0x138] sm:$0xff]
      %v2021 = vld [vmem:[#allocation2 + $0x140] sm:$0xff]
      %v2022 = vld [vmem:[#allocation2 + $0x150] sm:$0xff]
      %v2023 = vld [vmem:[#allocation2 + $0x158] sm:$0xff]
      %v2024 = vld [vmem:[#allocation2 + $0x168] sm:$0xff]
      %v2025 = vld [vmem:[#allocation2 + $0x170] sm:$0xff]
      %v2026 = vld [vmem:[#allocation2 + $0x1] sm:$0xff]
      %v2027 = vld [vmem:[#allocation2 + $0x9] sm:$0xff]
      %v2028 = vld [vmem:[#allocation2 + $0x19] sm:$0xff]
      %v2029 = vld [vmem:[#allocation2 + $0x21] sm:$0xff]
      %v2030 = vld [vmem:[#allocation2 + $0x31] sm:$0xff]
      %v2031 = vld [vmem:[#allocation2 + $0x39] sm:$0xff]
      %v2032 = vld [vmem:[#allocation2 + $0x49] sm:$0xff]
      %v2033 = vld [vmem:[#allocation2 + $0x51] sm:$0xff]
      %v2034 = vld [vmem:[#allocation2 + $0x61] sm:$0xff]
      %v2035 = vld [vmem:[#allocation2 + $0x69] sm:$0xff]
      %v2036 = vld [vmem:[#allocation2 + $0x79] sm:$0xff]
      %v2037 = vld [vmem:[#allocation2 + $0x81] sm:$0xff]
      %v2038 = vld [vmem:[#allocation2 + $0x91] sm:$0xff]
      %v2039 = vld [vmem:[#allocation2 + $0x99] sm:$0xff]
      %v2040 = vld [vmem:[#allocation2 + $0xa9] sm:$0xff]
      %v2041 = vld [vmem:[#allocation2 + $0xb1] sm:$0xff]
      %v2042 = vld [vmem:[#allocation2 + $0xc1] sm:$0xff]
      %v2043 = vld [vmem:[#allocation2 + $0xc9] sm:$0xff]
      %v2044 = vld [vmem:[#allocation2 + $0xd9] sm:$0xff]
      %v2045 = vld [vmem:[#allocation2 + $0xe1] sm:$0xff]
      %v2046 = vld [vmem:[#allocation2 + $0xf1] sm:$0xff]
      %v2047 = vld [vmem:[#allocation2 + $0xf9] sm:$0xff]
      %v2048 = vld [vmem:[#allocation2 + $0x109] sm:$0xff]
      %v2049 = vld [vmem:[#allocation2 + $0x111] sm:$0xff]
      %v2050 = vld [vmem:[#allocation2 + $0x121] sm:$0xff]
      %v2051 = vld [vmem:[#allocation2 + $0x129] sm:$0xff]
      %v2052 = vld [vmem:[#allocation2 + $0x139] sm:$0xff]
      %v2053 = vld [vmem:[#allocation2 + $0x141] sm:$0xff]
      %v2054 = vld [vmem:[#allocation2 + $0x151] sm:$0xff]
      %v2055 = vld [vmem:[#allocation2 + $0x159] sm:$0xff]
      %v2056 = vld [vmem:[#allocation2 + $0x169] sm:$0xff]
      %v2057 = vld [vmem:[#allocation2 + $0x171] sm:$0xff]
      %v2058 = vld [vmem:[#allocation2 + $0x2] sm:$0xff]
      %v2059 = vld [vmem:[#allocation2 + $0xa] sm:$0xff]
      %v2060 = vld [vmem:[#allocation2 + $0x1a] sm:$0xff]
      %v2061 = vld [vmem:[#allocation2 + $0x22] sm:$0xff]
      %v2062 = vld [vmem:[#allocation2 + $0x32] sm:$0xff]
      %v2063 = vld [vmem:[#allocation2 + $0x3a] sm:$0xff]
      %v2064 = vld [vmem:[#allocation2 + $0x4a] sm:$0xff]
      %v2065 = vld [vmem:[#allocation2 + $0x52] sm:$0xff]
      %v2066 = vld [vmem:[#allocation2 + $0x62] sm:$0xff]
      %v2067 = vld [vmem:[#allocation2 + $0x6a] sm:$0xff]
      %v2068 = vld [vmem:[#allocation2 + $0x7a] sm:$0xff]
      %v2069 = vld [vmem:[#allocation2 + $0x82] sm:$0xff]
      %v2070 = vld [vmem:[#allocation2 + $0x92] sm:$0xff]
      %v2071 = vld [vmem:[#allocation2 + $0x9a] sm:$0xff]
      %v2072 = vld [vmem:[#allocation2 + $0xaa] sm:$0xff]
      %v2073 = vld [vmem:[#allocation2 + $0xb2] sm:$0xff]
      %v2074 = vld [vmem:[#allocation2 + $0xc2] sm:$0xff]
      %v2075 = vld [vmem:[#allocation2 + $0xca] sm:$0xff]
      %v2076 = vld [vmem:[#allocation2 + $0xda] sm:$0xff]
      %v2077 = vld [vmem:[#allocation2 + $0xe2] sm:$0xff]
      %v2078 = vld [vmem:[#allocation2 + $0xf2] sm:$0xff]
      %v2079 = vld [vmem:[#allocation2 + $0xfa] sm:$0xff]
      %v2080 = vld [vmem:[#allocation2 + $0x10a] sm:$0xff]
      %v2081 = vld [vmem:[#allocation2 + $0x112] sm:$0xff]
      %v2082 = vld [vmem:[#allocation2 + $0x122] sm:$0xff]
      %v2083 = vld [vmem:[#allocation2 + $0x12a] sm:$0xff]
      %v2084 = vld [vmem:[#allocation2 + $0x13a] sm:$0xff]
      %v2085 = vld [vmem:[#allocation2 + $0x142] sm:$0xff]
      %v2086 = vld [vmem:[#allocation2 + $0x152] sm:$0xff]
      %v2087 = vld [vmem:[#allocation2 + $0x15a] sm:$0xff]
      %v2088 = vld [vmem:[#allocation2 + $0x16a] sm:$0xff]
      %v2089 = vld [vmem:[#allocation2 + $0x172] sm:$0xff]
      %v2090 = vld [vmem:[%s1961] sm:$0xff]
      %v2091 = vld [vmem:[%s1961 + $0x8] sm:$0xff]
      %v2092 = vld [vmem:[%s1961 + $0x18] sm:$0xff]
      %v2093 = vld [vmem:[%s1961 + $0x20] sm:$0xff]
      %v2094 = vld [vmem:[%s1961 + $0x30] sm:$0xff]
      %v2095 = vld [vmem:[%s1961 + $0x38] sm:$0xff]
      %v2096 = vld [vmem:[%s1961 + $0x48] sm:$0xff]
      %v2097 = vld [vmem:[%s1961 + $0x50] sm:$0xff]
      %v2098 = vld [vmem:[%s1961 + $0x60] sm:$0xff]
      %v2099 = vld [vmem:[%s1961 + $0x68] sm:$0xff]
      %v2100 = vld [vmem:[%s1961 + $0x78] sm:$0xff]
      %v2101 = vld [vmem:[%s1961 + $0x80] sm:$0xff]
      %v2102 = vld [vmem:[%s1961 + $0x90] sm:$0xff]
      %v2103 = vld [vmem:[%s1961 + $0x98] sm:$0xff]
      %v2104 = vld [vmem:[%s1961 + $0xa8] sm:$0xff]
      %v2105 = vld [vmem:[%s1961 + $0xb0] sm:$0xff]
      %v2106 = vld [vmem:[%s1961 + $0xc0] sm:$0xff]
      %v2107 = vld [vmem:[%s1961 + $0xc8] sm:$0xff]
      %v2108 = vld [vmem:[%s1961 + $0xd8] sm:$0xff]
      %v2109 = vld [vmem:[%s1961 + $0xe0] sm:$0xff]
      %v2110 = vld [vmem:[%s1961 + $0xf0] sm:$0xff]
      %v2111 = vld [vmem:[%s1961 + $0xf8] sm:$0xff]
      %v2112 = vld [vmem:[%s1961 + $0x108] sm:$0xff]
      %v2113 = vld [vmem:[%s1961 + $0x110] sm:$0xff]
      %v2114 = vld [vmem:[%s1961 + $0x120] sm:$0xff]
      %v2115 = vld [vmem:[%s1961 + $0x128] sm:$0xff]
      %v2116 = vld [vmem:[%s1961 + $0x138] sm:$0xff]
      %v2117 = vld [vmem:[%s1961 + $0x140] sm:$0xff]
      %v2118 = vld [vmem:[%s1961 + $0x150] sm:$0xff]
      %v2119 = vld [vmem:[%s1961 + $0x158] sm:$0xff]
      %v2120 = vld [vmem:[%s1961 + $0x168] sm:$0xff]
      %v2121 = vld [vmem:[%s1961 + $0x170] sm:$0xff]
      %v2122 = vld [vmem:[%s1961 + $0x1] sm:$0xff]
      %v2123 = vld [vmem:[%s1961 + $0x9] sm:$0xff]
      %v2124 = vld [vmem:[%s1961 + $0x19] sm:$0xff]
      %v2125 = vld [vmem:[%s1961 + $0x21] sm:$0xff]
      %v2126 = vld [vmem:[%s1961 + $0x31] sm:$0xff]
      %v2127 = vld [vmem:[%s1961 + $0x39] sm:$0xff]
      %v2128 = vld [vmem:[%s1961 + $0x49] sm:$0xff]
      %v2129 = vld [vmem:[%s1961 + $0x51] sm:$0xff]
      %v2130 = vld [vmem:[%s1961 + $0x61] sm:$0xff]
      %v2131 = vld [vmem:[%s1961 + $0x69] sm:$0xff]
      %v2132 = vld [vmem:[%s1961 + $0x79] sm:$0xff]
      %v2133 = vld [vmem:[%s1961 + $0x81] sm:$0xff]
      %v2134 = vld [vmem:[%s1961 + $0x91] sm:$0xff]
      %v2135 = vld [vmem:[%s1961 + $0x99] sm:$0xff]
      %v2136 = vld [vmem:[%s1961 + $0xa9] sm:$0xff]
      %v2137 = vld [vmem:[%s1961 + $0xb1] sm:$0xff]
      %v2138 = vld [vmem:[%s1961 + $0xc1] sm:$0xff]
      %v2139 = vld [vmem:[%s1961 + $0xc9] sm:$0xff]
      %v2140 = vld [vmem:[%s1961 + $0xd9] sm:$0xff]
      %v2141 = vld [vmem:[%s1961 + $0xe1] sm:$0xff]
      %v2142 = vld [vmem:[%s1961 + $0xf1] sm:$0xff]
      %v2143 = vld [vmem:[%s1961 + $0xf9] sm:$0xff]
      %v2144 = vld [vmem:[%s1961 + $0x109] sm:$0xff]
      %v2145 = vld [vmem:[%s1961 + $0x111] sm:$0xff]
      %v2146 = vld [vmem:[%s1961 + $0x121] sm:$0xff]
      %v2147 = vld [vmem:[%s1961 + $0x129] sm:$0xff]
      %v2148 = vld [vmem:[%s1961 + $0x139] sm:$0xff]
      %v2149 = vld [vmem:[%s1961 + $0x141] sm:$0xff]
      %v2150 = vld [vmem:[%s1961 + $0x151] sm:$0xff]
      %v2151 = vld [vmem:[%s1961 + $0x159] sm:$0xff]
      %v2152 = vld [vmem:[%s1961 + $0x169] sm:$0xff]
      %v2153 = vld [vmem:[%s1961 + $0x171] sm:$0xff]
      %v2154 = vld [vmem:[%s1961 + $0x2] sm:$0xff]
      %v2155 = vld [vmem:[%s1961 + $0xa] sm:$0xff]
      %v2156 = vld [vmem:[%s1961 + $0x1a] sm:$0xff]
      %v2157 = vld [vmem:[%s1961 + $0x22] sm:$0xff]
      %v2158 = vld [vmem:[%s1961 + $0x32] sm:$0xff]
      %v2159 = vld [vmem:[%s1961 + $0x3a] sm:$0xff]
      %v2160 = vld [vmem:[%s1961 + $0x4a] sm:$0xff]
      %v2161 = vld [vmem:[%s1961 + $0x52] sm:$0xff]
      %v2162 = vld [vmem:[%s1961 + $0x62] sm:$0xff]
      %v2163 = vld [vmem:[%s1961 + $0x6a] sm:$0xff]
      %v2164 = vld [vmem:[%s1961 + $0x7a] sm:$0xff]
      %v2165 = vld [vmem:[%s1961 + $0x82] sm:$0xff]
      %v2166 = vld [vmem:[%s1961 + $0x92] sm:$0xff]
      %v2167 = vld [vmem:[%s1961 + $0x9a] sm:$0xff]
      %v2168 = vld [vmem:[%s1961 + $0xaa] sm:$0xff]
      %v2169 = vld [vmem:[%s1961 + $0xb2] sm:$0xff]
      %v2170 = vld [vmem:[%s1961 + $0xc2] sm:$0xff]
      %v2171 = vld [vmem:[%s1961 + $0xca] sm:$0xff]
      %v2172 = vld [vmem:[%s1961 + $0xda] sm:$0xff]
      %v2173 = vld [vmem:[%s1961 + $0xe2] sm:$0xff]
      %v2174 = vld [vmem:[%s1961 + $0xf2] sm:$0xff]
      %v2175 = vld [vmem:[%s1961 + $0xfa] sm:$0xff]
      %v2176 = vld [vmem:[%s1961 + $0x10a] sm:$0xff]
      %v2177 = vld [vmem:[%s1961 + $0x112] sm:$0xff]
      %v2178 = vld [vmem:[%s1961 + $0x122] sm:$0xff]
      %v2179 = vld [vmem:[%s1961 + $0x12a] sm:$0xff]
      %v2180 = vld [vmem:[%s1961 + $0x13a] sm:$0xff]
      %v2181 = vld [vmem:[%s1961 + $0x142] sm:$0xff]
      %v2182 = vld [vmem:[%s1961 + $0x152] sm:$0xff]
      %v2183 = vld [vmem:[%s1961 + $0x15a] sm:$0xff]
      %v2184 = vld [vmem:[%s1961 + $0x16a] sm:$0xff]
      %v2185 = vld [vmem:[%s1961 + $0x172] sm:$0xff]
      %s2186 = scalar_lea.vmem [#allocation2], 48
      %v2187 = vld [vmem:[%s2186] sm:$0xff]
      %v2188 = vld [vmem:[%s2186 + $0x8] sm:$0xff]
      %v2189 = vld [vmem:[%s2186 + $0x18] sm:$0xff]
      %v2190 = vld [vmem:[%s2186 + $0x20] sm:$0xff]
      %v2191 = vld [vmem:[%s2186 + $0x30] sm:$0xff]
      %v2192 = vld [vmem:[%s2186 + $0x38] sm:$0xff]
      %v2193 = vld [vmem:[%s2186 + $0x48] sm:$0xff]
      %v2194 = vld [vmem:[%s2186 + $0x50] sm:$0xff]
      %v2195 = vld [vmem:[%s2186 + $0x60] sm:$0xff]
      %v2196 = vld [vmem:[%s2186 + $0x68] sm:$0xff]
      %v2197 = vld [vmem:[%s2186 + $0x78] sm:$0xff]
      %v2198 = vld [vmem:[%s2186 + $0x80] sm:$0xff]
      %v2199 = vld [vmem:[%s2186 + $0x90] sm:$0xff]
      %v2200 = vld [vmem:[%s2186 + $0x98] sm:$0xff]
      %v2201 = vld [vmem:[%s2186 + $0xa8] sm:$0xff]
      %v2202 = vld [vmem:[%s2186 + $0xb0] sm:$0xff]
      %v2203 = vld [vmem:[%s2186 + $0xc0] sm:$0xff]
      %v2204 = vld [vmem:[%s2186 + $0xc8] sm:$0xff]
      %v2205 = vld [vmem:[%s2186 + $0xd8] sm:$0xff]
      %v2206 = vld [vmem:[%s2186 + $0xe0] sm:$0xff]
      %v2207 = vld [vmem:[%s2186 + $0xf0] sm:$0xff]
      %v2208 = vld [vmem:[%s2186 + $0xf8] sm:$0xff]
      %v2209 = vld [vmem:[%s2186 + $0x108] sm:$0xff]
      %v2210 = vld [vmem:[%s2186 + $0x110] sm:$0xff]
      %v2211 = vld [vmem:[%s2186 + $0x120] sm:$0xff]
      %v2212 = vld [vmem:[%s2186 + $0x128] sm:$0xff]
      %v2213 = vld [vmem:[%s2186 + $0x138] sm:$0xff]
      %v2214 = vld [vmem:[%s2186 + $0x140] sm:$0xff]
      %v2215 = vld [vmem:[%s2186 + $0x150] sm:$0xff]
      %v2216 = vld [vmem:[%s2186 + $0x158] sm:$0xff]
      %v2217 = vld [vmem:[%s2186 + $0x168] sm:$0xff]
      %v2218 = vld [vmem:[%s2186 + $0x170] sm:$0xff]
      %v2219 = vld [vmem:[%s2186 + $0x1] sm:$0xff]
      %v2220 = vld [vmem:[%s2186 + $0x9] sm:$0xff]
      %v2221 = vld [vmem:[%s2186 + $0x19] sm:$0xff]
      %v2222 = vld [vmem:[%s2186 + $0x21] sm:$0xff]
      %v2223 = vld [vmem:[%s2186 + $0x31] sm:$0xff]
      %v2224 = vld [vmem:[%s2186 + $0x39] sm:$0xff]
      %v2225 = vld [vmem:[%s2186 + $0x49] sm:$0xff]
      %v2226 = vld [vmem:[%s2186 + $0x51] sm:$0xff]
      %v2227 = vld [vmem:[%s2186 + $0x61] sm:$0xff]
      %v2228 = vld [vmem:[%s2186 + $0x69] sm:$0xff]
      %v2229 = vld [vmem:[%s2186 + $0x79] sm:$0xff]
      %v2230 = vld [vmem:[%s2186 + $0x81] sm:$0xff]
      %v2231 = vld [vmem:[%s2186 + $0x91] sm:$0xff]
      %v2232 = vld [vmem:[%s2186 + $0x99] sm:$0xff]
      %v2233 = vld [vmem:[%s2186 + $0xa9] sm:$0xff]
      %v2234 = vld [vmem:[%s2186 + $0xb1] sm:$0xff]
      %v2235 = vld [vmem:[%s2186 + $0xc1] sm:$0xff]
      %v2236 = vld [vmem:[%s2186 + $0xc9] sm:$0xff]
      %v2237 = vld [vmem:[%s2186 + $0xd9] sm:$0xff]
      %v2238 = vld [vmem:[%s2186 + $0xe1] sm:$0xff]
      %v2239 = vld [vmem:[%s2186 + $0xf1] sm:$0xff]
      %v2240 = vld [vmem:[%s2186 + $0xf9] sm:$0xff]
      %v2241 = vld [vmem:[%s2186 + $0x109] sm:$0xff]
      %v2242 = vld [vmem:[%s2186 + $0x111] sm:$0xff]
      %v2243 = vld [vmem:[%s2186 + $0x121] sm:$0xff]
      %v2244 = vld [vmem:[%s2186 + $0x129] sm:$0xff]
      %v2245 = vld [vmem:[%s2186 + $0x139] sm:$0xff]
      %v2246 = vld [vmem:[%s2186 + $0x141] sm:$0xff]
      %v2247 = vld [vmem:[%s2186 + $0x151] sm:$0xff]
      %v2248 = vld [vmem:[%s2186 + $0x159] sm:$0xff]
      %v2249 = vld [vmem:[%s2186 + $0x169] sm:$0xff]
      %v2250 = vld [vmem:[%s2186 + $0x171] sm:$0xff]
      %v2251 = vld [vmem:[%s2186 + $0x2] sm:$0xff]
      %v2252 = vld [vmem:[%s2186 + $0xa] sm:$0xff]
      %v2253 = vld [vmem:[%s2186 + $0x1a] sm:$0xff]
      %v2254 = vld [vmem:[%s2186 + $0x22] sm:$0xff]
      %v2255 = vld [vmem:[%s2186 + $0x32] sm:$0xff]
      %v2256 = vld [vmem:[%s2186 + $0x3a] sm:$0xff]
      %v2257 = vld [vmem:[%s2186 + $0x4a] sm:$0xff]
      %v2258 = vld [vmem:[%s2186 + $0x52] sm:$0xff]
      %v2259 = vld [vmem:[%s2186 + $0x62] sm:$0xff]
      %v2260 = vld [vmem:[%s2186 + $0x6a] sm:$0xff]
      %v2261 = vld [vmem:[%s2186 + $0x7a] sm:$0xff]
      %v2262 = vld [vmem:[%s2186 + $0x82] sm:$0xff]
      %v2263 = vld [vmem:[%s2186 + $0x92] sm:$0xff]
      %v2264 = vld [vmem:[%s2186 + $0x9a] sm:$0xff]
      %v2265 = vld [vmem:[%s2186 + $0xaa] sm:$0xff]
      %v2266 = vld [vmem:[%s2186 + $0xb2] sm:$0xff]
      %v2267 = vld [vmem:[%s2186 + $0xc2] sm:$0xff]
      %v2268 = vld [vmem:[%s2186 + $0xca] sm:$0xff]
      %v2269 = vld [vmem:[%s2186 + $0xda] sm:$0xff]
      %v2270 = vld [vmem:[%s2186 + $0xe2] sm:$0xff]
      %v2271 = vld [vmem:[%s2186 + $0xf2] sm:$0xff]
      %v2272 = vld [vmem:[%s2186 + $0xfa] sm:$0xff]
      %v2273 = vld [vmem:[%s2186 + $0x10a] sm:$0xff]
      %v2274 = vld [vmem:[%s2186 + $0x112] sm:$0xff]
      %v2275 = vld [vmem:[%s2186 + $0x122] sm:$0xff]
      %v2276 = vld [vmem:[%s2186 + $0x12a] sm:$0xff]
      %v2277 = vld [vmem:[%s2186 + $0x13a] sm:$0xff]
      %v2278 = vld [vmem:[%s2186 + $0x142] sm:$0xff]
      %v2279 = vld [vmem:[%s2186 + $0x152] sm:$0xff]
      %v2280 = vld [vmem:[%s2186 + $0x15a] sm:$0xff]
      %v2281 = vld [vmem:[%s2186 + $0x16a] sm:$0xff]
      %v2282 = vld [vmem:[%s2186 + $0x172] sm:$0xff]
      %v2283 = vpack.c.bf16 %v1995, %v1994
      %v2284 = vpack.c.bf16 %v2027, %v2026
      %v2285 = vpack.c.bf16 %v2059, %v2058
      %v2286 = vpack.c.bf16 %v2091, %v2090
      %v2287 = vpack.c.bf16 %v2123, %v2122
      %v2288 = vpack.c.bf16 %v2155, %v2154
      %v2289 = vpack.c.bf16 %v2188, %v2187
      %v2290 = vpack.c.bf16 %v2220, %v2219
      %v2291 = vpack.c.bf16 %v2252, %v2251
      %v2292 = vpack.c.bf16 %v1997, %v1996
      %v2293 = vpack.c.bf16 %v2029, %v2028
      %v2294 = vpack.c.bf16 %v2061, %v2060
      %v2295 = vpack.c.bf16 %v2093, %v2092
      %v2296 = vpack.c.bf16 %v2125, %v2124
      %v2297 = vpack.c.bf16 %v2157, %v2156
      %v2298 = vpack.c.bf16 %v2190, %v2189
      %v2299 = vpack.c.bf16 %v2222, %v2221
      %v2300 = vpack.c.bf16 %v2254, %v2253
      %v2301 = vpack.c.bf16 %v1999, %v1998
      %v2302 = vpack.c.bf16 %v2031, %v2030
      %v2303 = vpack.c.bf16 %v2063, %v2062
      %v2304 = vpack.c.bf16 %v2095, %v2094
      %v2305 = vpack.c.bf16 %v2127, %v2126
      %v2306 = vpack.c.bf16 %v2159, %v2158
      %v2307 = vpack.c.bf16 %v2192, %v2191
      %v2308 = vpack.c.bf16 %v2224, %v2223
      %v2309 = vpack.c.bf16 %v2256, %v2255
      %v2310 = vpack.c.bf16 %v2001, %v2000
      %v2311 = vpack.c.bf16 %v2033, %v2032
      %v2312 = vpack.c.bf16 %v2065, %v2064
      %v2313 = vpack.c.bf16 %v2097, %v2096
      %v2314 = vpack.c.bf16 %v2129, %v2128
      %v2315 = vpack.c.bf16 %v2161, %v2160
      %v2316 = vpack.c.bf16 %v2194, %v2193
      %v2317 = vpack.c.bf16 %v2226, %v2225
      %v2318 = vpack.c.bf16 %v2258, %v2257
      %v2319 = vpack.c.bf16 %v2003, %v2002
      %v2320 = vpack.c.bf16 %v2035, %v2034
      %v2321 = vpack.c.bf16 %v2067, %v2066
      %v2322 = vpack.c.bf16 %v2099, %v2098
      %v2323 = vpack.c.bf16 %v2131, %v2130
      %v2324 = vpack.c.bf16 %v2163, %v2162
      %v2325 = vpack.c.bf16 %v2196, %v2195
      %v2326 = vpack.c.bf16 %v2228, %v2227
      %v2327 = vpack.c.bf16 %v2260, %v2259
      %v2328 = vpack.c.bf16 %v2005, %v2004
      %v2329 = vpack.c.bf16 %v2037, %v2036
      %v2330 = vpack.c.bf16 %v2069, %v2068
      %v2331 = vpack.c.bf16 %v2101, %v2100
      %v2332 = vpack.c.bf16 %v2133, %v2132
      %v2333 = vpack.c.bf16 %v2165, %v2164
      %v2334 = vpack.c.bf16 %v2198, %v2197
      %v2335 = vpack.c.bf16 %v2230, %v2229
      %v2336 = vpack.c.bf16 %v2262, %v2261
      %v2337 = vpack.c.bf16 %v2007, %v2006
      %v2338 = vpack.c.bf16 %v2039, %v2038
      %v2339 = vpack.c.bf16 %v2071, %v2070
      %v2340 = vpack.c.bf16 %v2103, %v2102
      %v2341 = vpack.c.bf16 %v2135, %v2134
      %v2342 = vpack.c.bf16 %v2167, %v2166
      %v2343 = vpack.c.bf16 %v2200, %v2199
      %v2344 = vpack.c.bf16 %v2232, %v2231
      %v2345 = vpack.c.bf16 %v2264, %v2263
      %v2346 = vpack.c.bf16 %v2009, %v2008
      %v2347 = vpack.c.bf16 %v2041, %v2040
      %v2348 = vpack.c.bf16 %v2073, %v2072
      %v2349 = vpack.c.bf16 %v2105, %v2104
      %v2350 = vpack.c.bf16 %v2137, %v2136
      %v2351 = vpack.c.bf16 %v2169, %v2168
      %v2352 = vpack.c.bf16 %v2202, %v2201
      %v2353 = vpack.c.bf16 %v2234, %v2233
      %v2354 = vpack.c.bf16 %v2266, %v2265
      %v2355 = vpack.c.bf16 %v2011, %v2010
      %v2356 = vpack.c.bf16 %v2043, %v2042
      %v2357 = vpack.c.bf16 %v2075, %v2074
      %v2358 = vpack.c.bf16 %v2107, %v2106
      %v2359 = vpack.c.bf16 %v2139, %v2138
      %v2360 = vpack.c.bf16 %v2171, %v2170
      %v2361 = vpack.c.bf16 %v2204, %v2203
      %v2362 = vpack.c.bf16 %v2236, %v2235
      %v2363 = vpack.c.bf16 %v2268, %v2267
      %v2364 = vpack.c.bf16 %v2013, %v2012
      %v2365 = vpack.c.bf16 %v2045, %v2044
      %v2366 = vpack.c.bf16 %v2077, %v2076
      %v2367 = vpack.c.bf16 %v2109, %v2108
      %v2368 = vpack.c.bf16 %v2141, %v2140
      %v2369 = vpack.c.bf16 %v2173, %v2172
      %v2370 = vpack.c.bf16 %v2206, %v2205
      %v2371 = vpack.c.bf16 %v2238, %v2237
      %v2372 = vpack.c.bf16 %v2270, %v2269
      %v2373 = vpack.c.bf16 %v2015, %v2014
      %v2374 = vpack.c.bf16 %v2047, %v2046
      %v2375 = vpack.c.bf16 %v2079, %v2078
      %v2376 = vpack.c.bf16 %v2111, %v2110
      %v2377 = vpack.c.bf16 %v2143, %v2142
      %v2378 = vpack.c.bf16 %v2175, %v2174
      %v2379 = vpack.c.bf16 %v2208, %v2207
      %v2380 = vpack.c.bf16 %v2240, %v2239
      %v2381 = vpack.c.bf16 %v2272, %v2271
      %v2382 = vpack.c.bf16 %v2017, %v2016
      %v2383 = vpack.c.bf16 %v2049, %v2048
      %v2384 = vpack.c.bf16 %v2081, %v2080
      %v2385 = vpack.c.bf16 %v2113, %v2112
      %v2386 = vpack.c.bf16 %v2145, %v2144
      %v2387 = vpack.c.bf16 %v2177, %v2176
      %v2388 = vpack.c.bf16 %v2210, %v2209
      %v2389 = vpack.c.bf16 %v2242, %v2241
      %v2390 = vpack.c.bf16 %v2274, %v2273
      %v2391 = vpack.c.bf16 %v2019, %v2018
      %v2392 = vpack.c.bf16 %v2051, %v2050
      %v2393 = vpack.c.bf16 %v2083, %v2082
      %v2394 = vpack.c.bf16 %v2115, %v2114
      %v2395 = vpack.c.bf16 %v2147, %v2146
      %v2396 = vpack.c.bf16 %v2179, %v2178
      %v2397 = vpack.c.bf16 %v2212, %v2211
      %v2398 = vpack.c.bf16 %v2244, %v2243
      %v2399 = vpack.c.bf16 %v2276, %v2275
      %v2400 = vpack.c.bf16 %v2021, %v2020
      %v2401 = vpack.c.bf16 %v2053, %v2052
      %v2402 = vpack.c.bf16 %v2085, %v2084
      %v2403 = vpack.c.bf16 %v2117, %v2116
      %v2404 = vpack.c.bf16 %v2149, %v2148
      %v2405 = vpack.c.bf16 %v2181, %v2180
      %v2406 = vpack.c.bf16 %v2214, %v2213
      %v2407 = vpack.c.bf16 %v2246, %v2245
      %v2408 = vpack.c.bf16 %v2278, %v2277
      %v2409 = vpack.c.bf16 %v2023, %v2022
      %v2410 = vpack.c.bf16 %v2055, %v2054
      %v2411 = vpack.c.bf16 %v2087, %v2086
      %v2412 = vpack.c.bf16 %v2119, %v2118
      %v2413 = vpack.c.bf16 %v2151, %v2150
      %v2414 = vpack.c.bf16 %v2183, %v2182
      %v2415 = vpack.c.bf16 %v2216, %v2215
      %v2416 = vpack.c.bf16 %v2248, %v2247
      %v2417 = vpack.c.bf16 %v2280, %v2279
      %v2418 = vpack.c.bf16 %v2025, %v2024
      %v2419 = vpack.c.bf16 %v2057, %v2056
      %v2420 = vpack.c.bf16 %v2089, %v2088
      %v2421 = vpack.c.bf16 %v2121, %v2120
      %v2422 = vpack.c.bf16 %v2153, %v2152
      %v2423 = vpack.c.bf16 %v2185, %v2184
      %v2424 = vpack.c.bf16 %v2218, %v2217
      %v2425 = vpack.c.bf16 %v2250, %v2249
      %v2426 = vpack.c.bf16 %v2282, %v2281
      %v2427 = vld [vmem:[%s3] sm:$0xf]
      %v2428 = vld [vmem:[%s3 + $0x4] sm:$0xf]
      %v2429 = vld [vmem:[%s3 + $0x8] sm:$0xf]
      %v2430 = vld [vmem:[%s3 + $0xc] sm:$0xf]
      %v2431 = vld [vmem:[%s3 + $0x10] sm:$0xf]
      %v2432 = vld [vmem:[%s3 + $0x14] sm:$0xf]
      %v2433 = vld [vmem:[%s3 + $0x18] sm:$0xf]
      %v2434 = vld [vmem:[%s3 + $0x1c] sm:$0xf]
      %v2435 = vld [vmem:[%s3 + $0x20] sm:$0xf]
      %v2436 = vld [vmem:[%s3 + $0x24] sm:$0xf]
      %v2437 = vld [vmem:[%s3 + $0x28] sm:$0xf]
      %v2438 = vld [vmem:[%s3 + $0x2c] sm:$0xf]
      %v2439 = vld [vmem:[%s3 + $0x30] sm:$0xf]
      %v2440 = vld [vmem:[%s3 + $0x34] sm:$0xf]
      %v2441 = vld [vmem:[%s3 + $0x38] sm:$0xf]
      %v2442 = vld [vmem:[%s3 + $0x3c] sm:$0xf]
      %v2443 = vld [vmem:[%s3 + $0x40] sm:$0xf]
      %v2444 = vld [vmem:[%s3 + $0x44] sm:$0xf]
      %v2445 = vld [vmem:[%s3 + $0x48] sm:$0xf]
      %v2446 = vld [vmem:[%s3 + $0x4c] sm:$0xf]
      %v2447 = vld [vmem:[%s3 + $0x50] sm:$0xf]
      %v2448 = vld [vmem:[%s3 + $0x54] sm:$0xf]
      %v2449 = vld [vmem:[%s3 + $0x58] sm:$0xf]
      %v2450 = vld [vmem:[%s3 + $0x5c] sm:$0xf]
      %v2451 = vld [vmem:[%s3 + $0x60] sm:$0xf]
      %v2452 = vld [vmem:[%s3 + $0x64] sm:$0xf]
      %v2453 = vld [vmem:[%s3 + $0x68] sm:$0xf]
      %v2454 = vld [vmem:[%s3 + $0x6c] sm:$0xf]
      %v2455 = vld [vmem:[%s3 + $0x70] sm:$0xf]
      %v2456 = vld [vmem:[%s3 + $0x74] sm:$0xf]
      %v2457 = vld [vmem:[%s3 + $0x78] sm:$0xf]
      %v2458 = vld [vmem:[%s3 + $0x7c] sm:$0xf]
      %v2459 = vld [vmem:[%s3 + $0x80] sm:$0xf]
      %v2460 = vld [vmem:[%s3 + $0x84] sm:$0xf]
      %v2461 = vld [vmem:[%s3 + $0x88] sm:$0xf]
      %v2462 = vld [vmem:[%s3 + $0x8c] sm:$0xf]
      %v2463 = vld [vmem:[%s3 + $0x90] sm:$0xf]
      %v2464 = vld [vmem:[%s3 + $0x94] sm:$0xf]
      %v2465 = vld [vmem:[%s3 + $0x98] sm:$0xf]
      %v2466 = vld [vmem:[%s3 + $0x9c] sm:$0xf]
      %v2467 = vld [vmem:[%s3 + $0xa0] sm:$0xf]
      %v2468 = vld [vmem:[%s3 + $0xa4] sm:$0xf]
      %v2469 = vld [vmem:[%s3 + $0xa8] sm:$0xf]
      %v2470 = vld [vmem:[%s3 + $0xac] sm:$0xf]
      %v2471 = vld [vmem:[%s3 + $0xb0] sm:$0xf]
      %v2472 = vld [vmem:[%s3 + $0xb4] sm:$0xf]
      %v2473 = vld [vmem:[%s3 + $0xb8] sm:$0xf]
      %v2474 = vld [vmem:[%s3 + $0xbc] sm:$0xf]
      %v2475 = vld [vmem:[%s3 + $0xc0] sm:$0xf]
      %v2476 = vld [vmem:[%s3 + $0xc4] sm:$0xf]
      %v2477 = vld [vmem:[%s3 + $0xc8] sm:$0xf]
      %v2478 = vld [vmem:[%s3 + $0xcc] sm:$0xf]
      %v2479 = vld [vmem:[%s3 + $0xd0] sm:$0xf]
      %v2480 = vld [vmem:[%s3 + $0xd4] sm:$0xf]
      %v2481 = vld [vmem:[%s3 + $0xd8] sm:$0xf]
      %v2482 = vld [vmem:[%s3 + $0xdc] sm:$0xf]
      %v2483 = vld [vmem:[%s3 + $0xe0] sm:$0xf]
      %v2484 = vld [vmem:[%s3 + $0xe4] sm:$0xf]
      %v2485 = vld [vmem:[%s3 + $0xe8] sm:$0xf]
      %v2486 = vld [vmem:[%s3 + $0xec] sm:$0xf]
      %v2487 = vld [vmem:[%s3 + $0xf0] sm:$0xf]
      %v2488 = vld [vmem:[%s3 + $0xf4] sm:$0xf]
      %v2489 = vld [vmem:[%s3 + $0xf8] sm:$0xf]
      %v2490 = vld [vmem:[%s3 + $0xfc] sm:$0xf]
      %v2491 = vld [vmem:[%s3 + $0x100] sm:$0xf]
      %v2492 = vld [vmem:[%s3 + $0x104] sm:$0xf]
      %v2493 = vld [vmem:[%s3 + $0x108] sm:$0xf]
      %v2494 = vld [vmem:[%s3 + $0x10c] sm:$0xf]
      %v2495 = vld [vmem:[%s3 + $0x110] sm:$0xf]
      %v2496 = vld [vmem:[%s3 + $0x114] sm:$0xf]
      %v2497 = vld [vmem:[%s3 + $0x118] sm:$0xf]
      %v2498 = vld [vmem:[%s3 + $0x11c] sm:$0xf]
      %v2499 = vld [vmem:[%s3 + $0x120] sm:$0xf]
      %v2500 = vld [vmem:[%s3 + $0x124] sm:$0xf]
      %v2501 = vld [vmem:[%s3 + $0x128] sm:$0xf]
      %v2502 = vld [vmem:[%s3 + $0x12c] sm:$0xf]
      %v2503 = vld [vmem:[%s3 + $0x130] sm:$0xf]
      %v2504 = vld [vmem:[%s3 + $0x134] sm:$0xf]
      %v2505 = vld [vmem:[%s3 + $0x138] sm:$0xf]
      %v2506 = vld [vmem:[%s3 + $0x13c] sm:$0xf]
      %v2507 = vld [vmem:[%s3 + $0x140] sm:$0xf]
      %v2508 = vld [vmem:[%s3 + $0x144] sm:$0xf]
      %v2509 = vld [vmem:[%s3 + $0x148] sm:$0xf]
      %v2510 = vld [vmem:[%s3 + $0x14c] sm:$0xf]
      %v2511 = vld [vmem:[%s3 + $0x150] sm:$0xf]
      %v2512 = vld [vmem:[%s3 + $0x154] sm:$0xf]
      %v2513 = vld [vmem:[%s3 + $0x158] sm:$0xf]
      %v2514 = vld [vmem:[%s3 + $0x15c] sm:$0xf]
      %v2515 = vld [vmem:[%s3 + $0x160] sm:$0xf]
      %v2516 = vld [vmem:[%s3 + $0x164] sm:$0xf]
      %v2517 = vld [vmem:[%s3 + $0x168] sm:$0xf]
      %v2518 = vld [vmem:[%s3 + $0x16c] sm:$0xf]
      %v2519 = vld [vmem:[%s3 + $0x170] sm:$0xf]
      %v2520 = vld [vmem:[%s3 + $0x174] sm:$0xf]
      %v2521 = vld [vmem:[%s3 + $0x178] sm:$0xf]
      %v2522 = vld [vmem:[%s3 + $0x17c] sm:$0xf]
      %v2523 = vld [vmem:[%s3 + $0x180] sm:$0xf]
      %v2524 = vld [vmem:[%s3 + $0x184] sm:$0xf]
      %v2525 = vld [vmem:[%s3 + $0x188] sm:$0xf]
      %v2526 = vld [vmem:[%s3 + $0x18c] sm:$0xf]
      %v2527 = vld [vmem:[%s3 + $0x190] sm:$0xf]
      %v2528 = vld [vmem:[%s3 + $0x194] sm:$0xf]
      %v2529 = vld [vmem:[%s3 + $0x198] sm:$0xf]
      %v2530 = vld [vmem:[%s3 + $0x19c] sm:$0xf]
      %v2531 = vld [vmem:[%s3 + $0x1a0] sm:$0xf]
      %v2532 = vld [vmem:[%s3 + $0x1a4] sm:$0xf]
      %v2533 = vld [vmem:[%s3 + $0x1a8] sm:$0xf]
      %v2534 = vld [vmem:[%s3 + $0x1ac] sm:$0xf]
      %v2535 = vld [vmem:[%s3 + $0x1b0] sm:$0xf]
      %v2536 = vld [vmem:[%s3 + $0x1b4] sm:$0xf]
      %v2537 = vld [vmem:[%s3 + $0x1b8] sm:$0xf]
      %v2538 = vld [vmem:[%s3 + $0x1bc] sm:$0xf]
      %v2539 = vld [vmem:[%s3 + $0x1c0] sm:$0xf]
      %v2540 = vld [vmem:[%s3 + $0x1c4] sm:$0xf]
      %v2541 = vld [vmem:[%s3 + $0x1c8] sm:$0xf]
      %v2542 = vld [vmem:[%s3 + $0x1cc] sm:$0xf]
      %v2543 = vld [vmem:[%s3 + $0x1d0] sm:$0xf]
      %v2544 = vld [vmem:[%s3 + $0x1d4] sm:$0xf]
      %v2545 = vld [vmem:[%s3 + $0x1d8] sm:$0xf]
      %v2546 = vld [vmem:[%s3 + $0x1dc] sm:$0xf]
      %v2547 = vld [vmem:[%s3 + $0x1e0] sm:$0xf]
      %v2548 = vld [vmem:[%s3 + $0x1e4] sm:$0xf]
      %v2549 = vld [vmem:[%s3 + $0x1e8] sm:$0xf]
      %v2550 = vld [vmem:[%s3 + $0x1ec] sm:$0xf]
      %v2551 = vld [vmem:[%s3 + $0x1f0] sm:$0xf]
      %v2552 = vld [vmem:[%s3 + $0x1f4] sm:$0xf]
      %v2553 = vld [vmem:[%s3 + $0x1f8] sm:$0xf]
      %v2554 = vld [vmem:[%s3 + $0x1fc] sm:$0xf]
      %v2555 = vld [vmem:[%s3 + $0x200] sm:$0xf]
      %v2556 = vld [vmem:[%s3 + $0x204] sm:$0xf]
      %v2557 = vld [vmem:[%s3 + $0x208] sm:$0xf]
      %v2558 = vld [vmem:[%s3 + $0x20c] sm:$0xf]
      %v2559 = vld [vmem:[%s3 + $0x210] sm:$0xf]
      %v2560 = vld [vmem:[%s3 + $0x214] sm:$0xf]
      %v2561 = vld [vmem:[%s3 + $0x218] sm:$0xf]
      %v2562 = vld [vmem:[%s3 + $0x21c] sm:$0xf]
      %v2563 = vld [vmem:[%s3 + $0x220] sm:$0xf]
      %v2564 = vld [vmem:[%s3 + $0x224] sm:$0xf]
      %v2565 = vld [vmem:[%s3 + $0x228] sm:$0xf]
      %v2566 = vld [vmem:[%s3 + $0x22c] sm:$0xf]
      %v2567 = vld [vmem:[%s3 + $0x230] sm:$0xf]
      %v2568 = vld [vmem:[%s3 + $0x234] sm:$0xf]
      %v2569 = vld [vmem:[%s3 + $0x238] sm:$0xf]
      %v2570 = vld [vmem:[%s3 + $0x23c] sm:$0xf]
      %v2571 = vld [vmem:[%s4] sm:$0x1]
      %v2573 = vlaneseq
      %v2574 = vshrl.u32 %v2573, 7
      %v2575 = vsub.s32 0, %v2574
      %v2576 = vrot.slane %v2571, %v2575
      %v2722 = vunpack.c.l.b16 %v2427
      %v2723 = vunpack.c.l.b16 %v2428
      %v2724 = vunpack.c.l.b16 %v2429
      %v2725 = vunpack.c.l.b16 %v2430
      %v2726 = vunpack.c.l.b16 %v2431
      %v2727 = vunpack.c.l.b16 %v2432
      %v2728 = vunpack.c.l.b16 %v2433
      %v2729 = vunpack.c.l.b16 %v2434
      %v2730 = vunpack.c.l.b16 %v2435
      %v2731 = vunpack.c.l.b16 %v2436
      %v2732 = vunpack.c.l.b16 %v2437
      %v2733 = vunpack.c.l.b16 %v2438
      %v2734 = vunpack.c.l.b16 %v2439
      %v2735 = vunpack.c.l.b16 %v2440
      %v2736 = vunpack.c.l.b16 %v2441
      %v2737 = vunpack.c.l.b16 %v2442
      %v2738 = vunpack.c.l.b16 %v2443
      %v2739 = vunpack.c.l.b16 %v2444
      %v2740 = vunpack.c.l.b16 %v2445
      %v2741 = vunpack.c.l.b16 %v2446
      %v2742 = vunpack.c.l.b16 %v2447
      %v2743 = vunpack.c.l.b16 %v2448
      %v2744 = vunpack.c.l.b16 %v2449
      %v2745 = vunpack.c.l.b16 %v2450
      %v2746 = vunpack.c.l.b16 %v2451
      %v2747 = vunpack.c.l.b16 %v2452
      %v2748 = vunpack.c.l.b16 %v2453
      %v2749 = vunpack.c.l.b16 %v2454
      %v2750 = vunpack.c.l.b16 %v2455
      %v2751 = vunpack.c.l.b16 %v2456
      %v2752 = vunpack.c.l.b16 %v2457
      %v2753 = vunpack.c.l.b16 %v2458
      %v2754 = vunpack.c.l.b16 %v2459
      %v2755 = vunpack.c.l.b16 %v2460
      %v2756 = vunpack.c.l.b16 %v2461
      %v2757 = vunpack.c.l.b16 %v2462
      %v2758 = vunpack.c.l.b16 %v2463
      %v2759 = vunpack.c.l.b16 %v2464
      %v2760 = vunpack.c.l.b16 %v2465
      %v2761 = vunpack.c.l.b16 %v2466
      %v2762 = vunpack.c.l.b16 %v2467
      %v2763 = vunpack.c.l.b16 %v2468
      %v2764 = vunpack.c.l.b16 %v2469
      %v2765 = vunpack.c.l.b16 %v2470
      %v2766 = vunpack.c.l.b16 %v2471
      %v2767 = vunpack.c.l.b16 %v2472
      %v2768 = vunpack.c.l.b16 %v2473
      %v2769 = vunpack.c.l.b16 %v2474
      %v2770 = vunpack.c.l.b16 %v2475
      %v2771 = vunpack.c.l.b16 %v2476
      %v2772 = vunpack.c.l.b16 %v2477
      %v2773 = vunpack.c.l.b16 %v2478
      %v2774 = vunpack.c.l.b16 %v2479
      %v2775 = vunpack.c.l.b16 %v2480
      %v2776 = vunpack.c.l.b16 %v2481
      %v2777 = vunpack.c.l.b16 %v2482
      %v2778 = vunpack.c.l.b16 %v2483
      %v2779 = vunpack.c.l.b16 %v2484
      %v2780 = vunpack.c.l.b16 %v2485
      %v2781 = vunpack.c.l.b16 %v2486
      %v2782 = vunpack.c.l.b16 %v2487
      %v2783 = vunpack.c.l.b16 %v2488
      %v2784 = vunpack.c.l.b16 %v2489
      %v2785 = vunpack.c.l.b16 %v2490
      %v2786 = vunpack.c.l.b16 %v2491
      %v2787 = vunpack.c.l.b16 %v2492
      %v2788 = vunpack.c.l.b16 %v2493
      %v2789 = vunpack.c.l.b16 %v2494
      %v2790 = vunpack.c.l.b16 %v2495
      %v2791 = vunpack.c.l.b16 %v2496
      %v2792 = vunpack.c.l.b16 %v2497
      %v2793 = vunpack.c.l.b16 %v2498
      %v2794 = vunpack.c.l.b16 %v2499
      %v2795 = vunpack.c.l.b16 %v2500
      %v2796 = vunpack.c.l.b16 %v2501
      %v2797 = vunpack.c.l.b16 %v2502
      %v2798 = vunpack.c.l.b16 %v2503
      %v2799 = vunpack.c.l.b16 %v2504
      %v2800 = vunpack.c.l.b16 %v2505
      %v2801 = vunpack.c.l.b16 %v2506
      %v2802 = vunpack.c.l.b16 %v2507
      %v2803 = vunpack.c.l.b16 %v2508
      %v2804 = vunpack.c.l.b16 %v2509
      %v2805 = vunpack.c.l.b16 %v2510
      %v2806 = vunpack.c.l.b16 %v2511
      %v2807 = vunpack.c.l.b16 %v2512
      %v2808 = vunpack.c.l.b16 %v2513
      %v2809 = vunpack.c.l.b16 %v2514
      %v2810 = vunpack.c.l.b16 %v2515
      %v2811 = vunpack.c.l.b16 %v2516
      %v2812 = vunpack.c.l.b16 %v2517
      %v2813 = vunpack.c.l.b16 %v2518
      %v2814 = vunpack.c.l.b16 %v2519
      %v2815 = vunpack.c.l.b16 %v2520
      %v2816 = vunpack.c.l.b16 %v2521
      %v2817 = vunpack.c.l.b16 %v2522
      %v2818 = vunpack.c.l.b16 %v2523
      %v2819 = vunpack.c.l.b16 %v2524
      %v2820 = vunpack.c.l.b16 %v2525
      %v2821 = vunpack.c.l.b16 %v2526
      %v2822 = vunpack.c.l.b16 %v2527
      %v2823 = vunpack.c.l.b16 %v2528
      %v2824 = vunpack.c.l.b16 %v2529
      %v2825 = vunpack.c.l.b16 %v2530
      %v2826 = vunpack.c.l.b16 %v2531
      %v2827 = vunpack.c.l.b16 %v2532
      %v2828 = vunpack.c.l.b16 %v2533
      %v2829 = vunpack.c.l.b16 %v2534
      %v2830 = vunpack.c.l.b16 %v2535
      %v2831 = vunpack.c.l.b16 %v2536
      %v2832 = vunpack.c.l.b16 %v2537
      %v2833 = vunpack.c.l.b16 %v2538
      %v2834 = vunpack.c.l.b16 %v2539
      %v2835 = vunpack.c.l.b16 %v2540
      %v2836 = vunpack.c.l.b16 %v2541
      %v2837 = vunpack.c.l.b16 %v2542
      %v2838 = vunpack.c.l.b16 %v2543
      %v2839 = vunpack.c.l.b16 %v2544
      %v2840 = vunpack.c.l.b16 %v2545
      %v2841 = vunpack.c.l.b16 %v2546
      %v2842 = vunpack.c.l.b16 %v2547
      %v2843 = vunpack.c.l.b16 %v2548
      %v2844 = vunpack.c.l.b16 %v2549
      %v2845 = vunpack.c.l.b16 %v2550
      %v2846 = vunpack.c.l.b16 %v2551
      %v2847 = vunpack.c.l.b16 %v2552
      %v2848 = vunpack.c.l.b16 %v2553
      %v2849 = vunpack.c.l.b16 %v2554
      %v2850 = vunpack.c.l.b16 %v2555
      %v2851 = vunpack.c.l.b16 %v2556
      %v2852 = vunpack.c.l.b16 %v2557
      %v2853 = vunpack.c.l.b16 %v2558
      %v2854 = vunpack.c.l.b16 %v2559
      %v2855 = vunpack.c.l.b16 %v2560
      %v2856 = vunpack.c.l.b16 %v2561
      %v2857 = vunpack.c.l.b16 %v2562
      %v2858 = vunpack.c.l.b16 %v2563
      %v2859 = vunpack.c.l.b16 %v2564
      %v2860 = vunpack.c.l.b16 %v2565
      %v2861 = vunpack.c.l.b16 %v2566
      %v2862 = vunpack.c.l.b16 %v2567
      %v2863 = vunpack.c.l.b16 %v2568
      %v2864 = vunpack.c.l.b16 %v2569
      %v2865 = vunpack.c.l.b16 %v2570
      %v2866 = vpack.c.b16 %v2723, %v2722
      %v2867 = vpack.c.b16 %v2725, %v2724
      %v2868 = vpack.c.b16 %v2727, %v2726
      %v2869 = vpack.c.b16 %v2729, %v2728
      %v2870 = vpack.c.b16 %v2731, %v2730
      %v2871 = vpack.c.b16 %v2733, %v2732
      %v2872 = vpack.c.b16 %v2735, %v2734
      %v2873 = vpack.c.b16 %v2737, %v2736
      %v2874 = vpack.c.b16 %v2739, %v2738
      %v2875 = vpack.c.b16 %v2741, %v2740
      %v2876 = vpack.c.b16 %v2743, %v2742
      %v2877 = vpack.c.b16 %v2745, %v2744
      %v2878 = vpack.c.b16 %v2747, %v2746
      %v2879 = vpack.c.b16 %v2749, %v2748
      %v2880 = vpack.c.b16 %v2751, %v2750
      %v2881 = vpack.c.b16 %v2753, %v2752
      %v2882 = vpack.c.b16 %v2755, %v2754
      %v2883 = vpack.c.b16 %v2757, %v2756
      %v2884 = vpack.c.b16 %v2759, %v2758
      %v2885 = vpack.c.b16 %v2761, %v2760
      %v2886 = vpack.c.b16 %v2763, %v2762
      %v2887 = vpack.c.b16 %v2765, %v2764
      %v2888 = vpack.c.b16 %v2767, %v2766
      %v2889 = vpack.c.b16 %v2769, %v2768
      %v2890 = vpack.c.b16 %v2771, %v2770
      %v2891 = vpack.c.b16 %v2773, %v2772
      %v2892 = vpack.c.b16 %v2775, %v2774
      %v2893 = vpack.c.b16 %v2777, %v2776
      %v2894 = vpack.c.b16 %v2779, %v2778
      %v2895 = vpack.c.b16 %v2781, %v2780
      %v2896 = vpack.c.b16 %v2783, %v2782
      %v2897 = vpack.c.b16 %v2785, %v2784
      %v2898 = vpack.c.b16 %v2787, %v2786
      %v2899 = vpack.c.b16 %v2789, %v2788
      %v2900 = vpack.c.b16 %v2791, %v2790
      %v2901 = vpack.c.b16 %v2793, %v2792
      %v2902 = vpack.c.b16 %v2795, %v2794
      %v2903 = vpack.c.b16 %v2797, %v2796
      %v2904 = vpack.c.b16 %v2799, %v2798
      %v2905 = vpack.c.b16 %v2801, %v2800
      %v2906 = vpack.c.b16 %v2803, %v2802
      %v2907 = vpack.c.b16 %v2805, %v2804
      %v2908 = vpack.c.b16 %v2807, %v2806
      %v2909 = vpack.c.b16 %v2809, %v2808
      %v2910 = vpack.c.b16 %v2811, %v2810
      %v2911 = vpack.c.b16 %v2813, %v2812
      %v2912 = vpack.c.b16 %v2815, %v2814
      %v2913 = vpack.c.b16 %v2817, %v2816
      %v2914 = vpack.c.b16 %v2819, %v2818
      %v2915 = vpack.c.b16 %v2821, %v2820
      %v2916 = vpack.c.b16 %v2823, %v2822
      %v2917 = vpack.c.b16 %v2825, %v2824
      %v2918 = vpack.c.b16 %v2827, %v2826
      %v2919 = vpack.c.b16 %v2829, %v2828
      %v2920 = vpack.c.b16 %v2831, %v2830
      %v2921 = vpack.c.b16 %v2833, %v2832
      %v2922 = vpack.c.b16 %v2835, %v2834
      %v2923 = vpack.c.b16 %v2837, %v2836
      %v2924 = vpack.c.b16 %v2839, %v2838
      %v2925 = vpack.c.b16 %v2841, %v2840
      %v2926 = vpack.c.b16 %v2843, %v2842
      %v2927 = vpack.c.b16 %v2845, %v2844
      %v2928 = vpack.c.b16 %v2847, %v2846
      %v2929 = vpack.c.b16 %v2849, %v2848
      %v2930 = vpack.c.b16 %v2851, %v2850
      %v2931 = vpack.c.b16 %v2853, %v2852
      %v2932 = vpack.c.b16 %v2855, %v2854
      %v2933 = vpack.c.b16 %v2857, %v2856
      %v2934 = vpack.c.b16 %v2859, %v2858
      %v2935 = vpack.c.b16 %v2861, %v2860
      %v2936 = vpack.c.b16 %v2863, %v2862
      %v2937 = vpack.c.b16 %v2865, %v2864
      %3010 = vmatprep.subr.bf16.mxu0 0
      %3011 = vmatpush1.bf16.msra.mxu0 %v2873
      %3012 = vmatprep.subr.bf16.mxu0 0
      %3013 = vmatpush1.bf16.msra.mxu0 %v2872
      %3014 = vmatprep.subr.bf16.mxu0 0
      %3015 = vmatpush1.bf16.msra.mxu0 %v2871
      %3016 = vmatprep.subr.bf16.mxu0 0
      %3017 = vmatpush1.bf16.msra.mxu0 %v2870
      %3018 = vmatprep.subr.bf16.mxu0 0
      %3019 = vmatpush1.bf16.msra.mxu0 %v2869
      %3020 = vmatprep.subr.bf16.mxu0 0
      %3021 = vmatpush1.bf16.msra.mxu0 %v2868
      %3022 = vmatprep.subr.bf16.mxu0 0
      %3023 = vmatpush1.bf16.msra.mxu0 %v2867
      %3024 = vmatprep.subr.bf16.mxu0 0
      %3025 = vmatpush1.bf16.msra.mxu0 %v2866
      %3026 = vmatprep.subr.bf16.mxu0 0
      %3027 = vmatpush2.bf16.msra.mxu0 %v2881
      %3028 = vmatprep.subr.bf16.mxu0 0
      %3029 = vmatpush2.bf16.msra.mxu0 %v2880
      %3030 = vmatprep.subr.bf16.mxu0 0
      %3031 = vmatpush2.bf16.msra.mxu0 %v2879
      %3032 = vmatprep.subr.bf16.mxu0 0
      %3033 = vmatpush2.bf16.msra.mxu0 %v2878
      %3034 = vmatprep.subr.bf16.mxu0 0
      %3035 = vmatpush2.bf16.msra.mxu0 %v2877
      %3036 = vmatprep.subr.bf16.mxu0 0
      %3037 = vmatpush2.bf16.msra.mxu0 %v2876
      %3038 = vmatprep.subr.bf16.mxu0 0
      %3039 = vmatpush2.bf16.msra.mxu0 %v2875
      %3040 = vmatprep.subr.bf16.mxu0 0
      %3041 = vmatpush2.bf16.msra.mxu0 %v2874
      %3042 = vmatprep.mubr.bf16.mxu0 %v2284
      %3043 = vmatmul.mubr.bf16.gmra.mxu0 %v2283
      %v3044 = vpop.f32.mrf.mxu0
      %v3045 = vadd.f32 %v2576, %v3044
      %v3046 = vpop.f32.mrf.mxu0
      %v3047 = vpop.f32.mrf.mxu0
      %v3048 = vadd.f32 %v2576, %v3047
      %v3049 = vpop.f32.mrf.mxu0
      %3050 = vmatprep.mubr.bf16.mxu0 %v2293
      %3051 = vmatmul.mubr.bf16.gmra.mxu0 %v2292
      %v3052 = vpop.f32.mrf.mxu0
      %v3053 = vadd.f32 %v2576, %v3052
      %v3054 = vpop.f32.mrf.mxu0
      %v3055 = vpop.f32.mrf.mxu0
      %v3056 = vadd.f32 %v2576, %v3055
      %v3057 = vpop.f32.mrf.mxu0
      %3058 = vmatprep.mubr.bf16.mxu0 %v2302
      %3059 = vmatmul.mubr.bf16.gmra.mxu0 %v2301
      %v3060 = vpop.f32.mrf.mxu0
      %v3061 = vadd.f32 %v2576, %v3060
      %v3062 = vpop.f32.mrf.mxu0
      %v3063 = vpop.f32.mrf.mxu0
      %v3064 = vadd.f32 %v2576, %v3063
      %v3065 = vpop.f32.mrf.mxu0
      %3066 = vmatprep.mubr.bf16.mxu0 %v2311
      %3067 = vmatmul.mubr.bf16.gmra.mxu0 %v2310
      %v3068 = vpop.f32.mrf.mxu0
      %v3069 = vadd.f32 %v2576, %v3068
      %v3070 = vpop.f32.mrf.mxu0
      %v3071 = vpop.f32.mrf.mxu0
      %v3072 = vadd.f32 %v2576, %v3071
      %v3073 = vpop.f32.mrf.mxu0
      %3074 = vmatprep.mubr.bf16.mxu0 %v2320
      %3075 = vmatmul.mubr.bf16.gmra.mxu0 %v2319
      %v3076 = vpop.f32.mrf.mxu0
      %v3077 = vadd.f32 %v2576, %v3076
      %v3078 = vpop.f32.mrf.mxu0
      %v3079 = vpop.f32.mrf.mxu0
      %v3080 = vadd.f32 %v2576, %v3079
      %v3081 = vpop.f32.mrf.mxu0
      %3082 = vmatprep.mubr.bf16.mxu0 %v2329
      %3083 = vmatmul.mubr.bf16.gmra.mxu0 %v2328
      %v3084 = vpop.f32.mrf.mxu0
      %v3085 = vadd.f32 %v2576, %v3084
      %v3086 = vpop.f32.mrf.mxu0
      %v3087 = vpop.f32.mrf.mxu0
      %v3088 = vadd.f32 %v2576, %v3087
      %v3089 = vpop.f32.mrf.mxu0
      %3090 = vmatprep.mubr.bf16.mxu0 %v2338
      %3091 = vmatmul.mubr.bf16.gmra.mxu0 %v2337
      %v3092 = vpop.f32.mrf.mxu0
      %v3093 = vadd.f32 %v2576, %v3092
      %v3094 = vpop.f32.mrf.mxu0
      %v3095 = vpop.f32.mrf.mxu0
      %v3096 = vadd.f32 %v2576, %v3095
      %v3097 = vpop.f32.mrf.mxu0
      %3098 = vmatprep.mubr.bf16.mxu0 %v2347
      %3099 = vmatmul.mubr.bf16.gmra.mxu0 %v2346
      %v3100 = vpop.f32.mrf.mxu0
      %v3101 = vadd.f32 %v2576, %v3100
      %v3102 = vpop.f32.mrf.mxu0
      %v3103 = vpop.f32.mrf.mxu0
      %v3104 = vadd.f32 %v2576, %v3103
      %v3105 = vpop.f32.mrf.mxu0
      %3106 = vmatprep.mubr.bf16.mxu0 %v2356
      %3107 = vmatmul.mubr.bf16.gmra.mxu0 %v2355
      %v3108 = vpop.f32.mrf.mxu0
      %v3109 = vadd.f32 %v2576, %v3108
      %v3110 = vpop.f32.mrf.mxu0
      %v3111 = vpop.f32.mrf.mxu0
      %v3112 = vadd.f32 %v2576, %v3111
      %v3113 = vpop.f32.mrf.mxu0
      %3114 = vmatprep.mubr.bf16.mxu0 %v2365
      %3115 = vmatmul.mubr.bf16.gmra.mxu0 %v2364
      %v3116 = vpop.f32.mrf.mxu0
      %v3117 = vadd.f32 %v2576, %v3116
      %v3118 = vpop.f32.mrf.mxu0
      %v3119 = vpop.f32.mrf.mxu0
      %v3120 = vadd.f32 %v2576, %v3119
      %v3121 = vpop.f32.mrf.mxu0
      %3122 = vmatprep.mubr.bf16.mxu0 %v2374
      %3123 = vmatmul.mubr.bf16.gmra.mxu0 %v2373
      %v3124 = vpop.f32.mrf.mxu0
      %v3125 = vadd.f32 %v2576, %v3124
      %v3126 = vpop.f32.mrf.mxu0
      %v3127 = vpop.f32.mrf.mxu0
      %v3128 = vadd.f32 %v2576, %v3127
      %v3129 = vpop.f32.mrf.mxu0
      %3130 = vmatprep.mubr.bf16.mxu0 %v2383
      %3131 = vmatmul.mubr.bf16.gmra.mxu0 %v2382
      %v3132 = vpop.f32.mrf.mxu0
      %v3133 = vadd.f32 %v2576, %v3132
      %v3134 = vpop.f32.mrf.mxu0
      %v3135 = vpop.f32.mrf.mxu0
      %v3136 = vadd.f32 %v2576, %v3135
      %v3137 = vpop.f32.mrf.mxu0
      %3138 = vmatprep.mubr.bf16.mxu0 %v2392
      %3139 = vmatmul.mubr.bf16.gmra.mxu0 %v2391
      %v3140 = vpop.f32.mrf.mxu0
      %v3141 = vadd.f32 %v2576, %v3140
      %v3142 = vpop.f32.mrf.mxu0
      %v3143 = vpop.f32.mrf.mxu0
      %v3144 = vadd.f32 %v2576, %v3143
      %v3145 = vpop.f32.mrf.mxu0
      %3146 = vmatprep.mubr.bf16.mxu0 %v2401
      %3147 = vmatmul.mubr.bf16.gmra.mxu0 %v2400
      %v3148 = vpop.f32.mrf.mxu0
      %v3149 = vadd.f32 %v2576, %v3148
      %v3150 = vpop.f32.mrf.mxu0
      %v3151 = vpop.f32.mrf.mxu0
      %v3152 = vadd.f32 %v2576, %v3151
      %v3153 = vpop.f32.mrf.mxu0
      %3154 = vmatprep.mubr.bf16.mxu0 %v2410
      %3155 = vmatmul.mubr.bf16.gmra.mxu0 %v2409
      %v3156 = vpop.f32.mrf.mxu0
      %v3157 = vadd.f32 %v2576, %v3156
      %v3158 = vpop.f32.mrf.mxu0
      %v3159 = vpop.f32.mrf.mxu0
      %v3160 = vadd.f32 %v2576, %v3159
      %v3161 = vpop.f32.mrf.mxu0
      %3162 = vmatprep.mubr.bf16.mxu0 %v2419
      %3163 = vmatmul.mubr.bf16.gmra.mxu0 %v2418
      %v3164 = vpop.f32.mrf.mxu0
      %v3165 = vadd.f32 %v2576, %v3164
      %v3166 = vpop.f32.mrf.mxu0
      %v3167 = vpop.f32.mrf.mxu0
      %v3168 = vadd.f32 %v2576, %v3167
      %v3169 = vpop.f32.mrf.mxu0
      %3170 = vdwg.mxu0
      %3171 = vmatprep.subr.bf16.mxu0 0
      %3172 = vmatpush1.bf16.msra.mxu0 %v2889
      %3173 = vmatprep.subr.bf16.mxu0 0
      %3174 = vmatpush1.bf16.msra.mxu0 %v2888
      %3175 = vmatprep.subr.bf16.mxu0 0
      %3176 = vmatpush1.bf16.msra.mxu0 %v2887
      %3177 = vmatprep.subr.bf16.mxu0 0
      %3178 = vmatpush1.bf16.msra.mxu0 %v2886
      %3179 = vmatprep.subr.bf16.mxu0 0
      %3180 = vmatpush1.bf16.msra.mxu0 %v2885
      %3181 = vmatprep.subr.bf16.mxu0 0
      %3182 = vmatpush1.bf16.msra.mxu0 %v2884
      %3183 = vmatprep.subr.bf16.mxu0 0
      %3184 = vmatpush1.bf16.msra.mxu0 %v2883
      %3185 = vmatprep.subr.bf16.mxu0 0
      %3186 = vmatpush1.bf16.msra.mxu0 %v2882
      %3187 = vmatprep.subr.bf16.mxu0 0
      %3188 = vmatpush2.bf16.msra.mxu0 %v2897
      %3189 = vmatprep.subr.bf16.mxu0 0
      %3190 = vmatpush2.bf16.msra.mxu0 %v2896
      %3191 = vmatprep.subr.bf16.mxu0 0
      %3192 = vmatpush2.bf16.msra.mxu0 %v2895
      %3193 = vmatprep.subr.bf16.mxu0 0
      %3194 = vmatpush2.bf16.msra.mxu0 %v2894
      %3195 = vmatprep.subr.bf16.mxu0 0
      %3196 = vmatpush2.bf16.msra.mxu0 %v2893
      %3197 = vmatprep.subr.bf16.mxu0 0
      %3198 = vmatpush2.bf16.msra.mxu0 %v2892
      %3199 = vmatprep.subr.bf16.mxu0 0
      %3200 = vmatpush2.bf16.msra.mxu0 %v2891
      %3201 = vmatprep.subr.bf16.mxu0 0
      %3202 = vmatpush2.bf16.msra.mxu0 %v2890
      %3203 = vmatprep.mubr.bf16.mxu0 %v2286
      %3204 = vmatmul.mubr.bf16.gmra.mxu0 %v2285
      %v3205 = vpop.f32.mrf.mxu0
      %v3206 = vadd.f32 %v3045, %v3205
      %v3207 = vpop.f32.mrf.mxu0
      %v3208 = vpop.f32.mrf.mxu0
      %v3209 = vadd.f32 %v3048, %v3208
      %v3210 = vpop.f32.mrf.mxu0
      %3211 = vmatprep.mubr.bf16.mxu0 %v2295
      %3212 = vmatmul.mubr.bf16.gmra.mxu0 %v2294
      %v3213 = vpop.f32.mrf.mxu0
      %v3214 = vadd.f32 %v3053, %v3213
      %v3215 = vpop.f32.mrf.mxu0
      %v3216 = vpop.f32.mrf.mxu0
      %v3217 = vadd.f32 %v3056, %v3216
      %v3218 = vpop.f32.mrf.mxu0
      %3219 = vmatprep.mubr.bf16.mxu0 %v2304
      %3220 = vmatmul.mubr.bf16.gmra.mxu0 %v2303
      %v3221 = vpop.f32.mrf.mxu0
      %v3222 = vadd.f32 %v3061, %v3221
      %v3223 = vpop.f32.mrf.mxu0
      %v3224 = vpop.f32.mrf.mxu0
      %v3225 = vadd.f32 %v3064, %v3224
      %v3226 = vpop.f32.mrf.mxu0
      %3227 = vmatprep.mubr.bf16.mxu0 %v2313
      %3228 = vmatmul.mubr.bf16.gmra.mxu0 %v2312
      %v3229 = vpop.f32.mrf.mxu0
      %v3230 = vadd.f32 %v3069, %v3229
      %v3231 = vpop.f32.mrf.mxu0
      %v3232 = vpop.f32.mrf.mxu0
      %v3233 = vadd.f32 %v3072, %v3232
      %v3234 = vpop.f32.mrf.mxu0
      %3235 = vmatprep.mubr.bf16.mxu0 %v2322
      %3236 = vmatmul.mubr.bf16.gmra.mxu0 %v2321
      %v3237 = vpop.f32.mrf.mxu0
      %v3238 = vadd.f32 %v3077, %v3237
      %v3239 = vpop.f32.mrf.mxu0
      %v3240 = vpop.f32.mrf.mxu0
      %v3241 = vadd.f32 %v3080, %v3240
      %v3242 = vpop.f32.mrf.mxu0
      %3243 = vmatprep.mubr.bf16.mxu0 %v2331
      %3244 = vmatmul.mubr.bf16.gmra.mxu0 %v2330
      %v3245 = vpop.f32.mrf.mxu0
      %v3246 = vadd.f32 %v3085, %v3245
      %v3247 = vpop.f32.mrf.mxu0
      %v3248 = vpop.f32.mrf.mxu0
      %v3249 = vadd.f32 %v3088, %v3248
      %v3250 = vpop.f32.mrf.mxu0
      %3251 = vmatprep.mubr.bf16.mxu0 %v2340
      %3252 = vmatmul.mubr.bf16.gmra.mxu0 %v2339
      %v3253 = vpop.f32.mrf.mxu0
      %v3254 = vadd.f32 %v3093, %v3253
      %v3255 = vpop.f32.mrf.mxu0
      %v3256 = vpop.f32.mrf.mxu0
      %v3257 = vadd.f32 %v3096, %v3256
      %v3258 = vpop.f32.mrf.mxu0
      %3259 = vmatprep.mubr.bf16.mxu0 %v2349
      %3260 = vmatmul.mubr.bf16.gmra.mxu0 %v2348
      %v3261 = vpop.f32.mrf.mxu0
      %v3262 = vadd.f32 %v3101, %v3261
      %v3263 = vpop.f32.mrf.mxu0
      %v3264 = vpop.f32.mrf.mxu0
      %v3265 = vadd.f32 %v3104, %v3264
      %v3266 = vpop.f32.mrf.mxu0
      %3267 = vmatprep.mubr.bf16.mxu0 %v2358
      %3268 = vmatmul.mubr.bf16.gmra.mxu0 %v2357
      %v3269 = vpop.f32.mrf.mxu0
      %v3270 = vadd.f32 %v3109, %v3269
      %v3271 = vpop.f32.mrf.mxu0
      %v3272 = vpop.f32.mrf.mxu0
      %v3273 = vadd.f32 %v3112, %v3272
      %v3274 = vpop.f32.mrf.mxu0
      %3275 = vmatprep.mubr.bf16.mxu0 %v2367
      %3276 = vmatmul.mubr.bf16.gmra.mxu0 %v2366
      %v3277 = vpop.f32.mrf.mxu0
      %v3278 = vadd.f32 %v3117, %v3277
      %v3279 = vpop.f32.mrf.mxu0
      %v3280 = vpop.f32.mrf.mxu0
      %v3281 = vadd.f32 %v3120, %v3280
      %v3282 = vpop.f32.mrf.mxu0
      %3283 = vmatprep.mubr.bf16.mxu0 %v2376
      %3284 = vmatmul.mubr.bf16.gmra.mxu0 %v2375
      %v3285 = vpop.f32.mrf.mxu0
      %v3286 = vadd.f32 %v3125, %v3285
      %v3287 = vpop.f32.mrf.mxu0
      %v3288 = vpop.f32.mrf.mxu0
      %v3289 = vadd.f32 %v3128, %v3288
      %v3290 = vpop.f32.mrf.mxu0
      %3291 = vmatprep.mubr.bf16.mxu0 %v2385
      %3292 = vmatmul.mubr.bf16.gmra.mxu0 %v2384
      %v3293 = vpop.f32.mrf.mxu0
      %v3294 = vadd.f32 %v3133, %v3293
      %v3295 = vpop.f32.mrf.mxu0
      %v3296 = vpop.f32.mrf.mxu0
      %v3297 = vadd.f32 %v3136, %v3296
      %v3298 = vpop.f32.mrf.mxu0
      %3299 = vmatprep.mubr.bf16.mxu0 %v2394
      %3300 = vmatmul.mubr.bf16.gmra.mxu0 %v2393
      %v3301 = vpop.f32.mrf.mxu0
      %v3302 = vadd.f32 %v3141, %v3301
      %v3303 = vpop.f32.mrf.mxu0
      %v3304 = vpop.f32.mrf.mxu0
      %v3305 = vadd.f32 %v3144, %v3304
      %v3306 = vpop.f32.mrf.mxu0
      %3307 = vmatprep.mubr.bf16.mxu0 %v2403
      %3308 = vmatmul.mubr.bf16.gmra.mxu0 %v2402
      %v3309 = vpop.f32.mrf.mxu0
      %v3310 = vadd.f32 %v3149, %v3309
      %v3311 = vpop.f32.mrf.mxu0
      %v3312 = vpop.f32.mrf.mxu0
      %v3313 = vadd.f32 %v3152, %v3312
      %v3314 = vpop.f32.mrf.mxu0
      %3315 = vmatprep.mubr.bf16.mxu0 %v2412
      %3316 = vmatmul.mubr.bf16.gmra.mxu0 %v2411
      %v3317 = vpop.f32.mrf.mxu0
      %v3318 = vadd.f32 %v3157, %v3317
      %v3319 = vpop.f32.mrf.mxu0
      %v3320 = vpop.f32.mrf.mxu0
      %v3321 = vadd.f32 %v3160, %v3320
      %v3322 = vpop.f32.mrf.mxu0
      %3323 = vmatprep.mubr.bf16.mxu0 %v2421
      %3324 = vmatmul.mubr.bf16.gmra.mxu0 %v2420
      %v3325 = vpop.f32.mrf.mxu0
      %v3326 = vadd.f32 %v3165, %v3325
      %v3327 = vpop.f32.mrf.mxu0
      %v3328 = vpop.f32.mrf.mxu0
      %v3329 = vadd.f32 %v3168, %v3328
      %v3330 = vpop.f32.mrf.mxu0
      %3331 = vdwg.mxu0
      %3332 = vmatprep.subr.bf16.mxu0 0
      %3333 = vmatpush1.bf16.msra.mxu0 %v2905
      %3334 = vmatprep.subr.bf16.mxu0 0
      %3335 = vmatpush1.bf16.msra.mxu0 %v2904
      %3336 = vmatprep.subr.bf16.mxu0 0
      %3337 = vmatpush1.bf16.msra.mxu0 %v2903
      %3338 = vmatprep.subr.bf16.mxu0 0
      %3339 = vmatpush1.bf16.msra.mxu0 %v2902
      %3340 = vmatprep.subr.bf16.mxu0 0
      %3341 = vmatpush1.bf16.msra.mxu0 %v2901
      %3342 = vmatprep.subr.bf16.mxu0 0
      %3343 = vmatpush1.bf16.msra.mxu0 %v2900
      %3344 = vmatprep.subr.bf16.mxu0 0
      %3345 = vmatpush1.bf16.msra.mxu0 %v2899
      %3346 = vmatprep.subr.bf16.mxu0 0
      %3347 = vmatpush1.bf16.msra.mxu0 %v2898
      %3348 = vmatprep.subr.bf16.mxu0 0
      %3349 = vmatpush2.bf16.msra.mxu0 %v2913
      %3350 = vmatprep.subr.bf16.mxu0 0
      %3351 = vmatpush2.bf16.msra.mxu0 %v2912
      %3352 = vmatprep.subr.bf16.mxu0 0
      %3353 = vmatpush2.bf16.msra.mxu0 %v2911
      %3354 = vmatprep.subr.bf16.mxu0 0
      %3355 = vmatpush2.bf16.msra.mxu0 %v2910
      %3356 = vmatprep.subr.bf16.mxu0 0
      %3357 = vmatpush2.bf16.msra.mxu0 %v2909
      %3358 = vmatprep.subr.bf16.mxu0 0
      %3359 = vmatpush2.bf16.msra.mxu0 %v2908
      %3360 = vmatprep.subr.bf16.mxu0 0
      %3361 = vmatpush2.bf16.msra.mxu0 %v2907
      %3362 = vmatprep.subr.bf16.mxu0 0
      %3363 = vmatpush2.bf16.msra.mxu0 %v2906
      %3364 = vmatprep.mubr.bf16.mxu0 %v2288
      %3365 = vmatmul.mubr.bf16.gmra.mxu0 %v2287
      %v3366 = vpop.f32.mrf.mxu0
      %v3367 = vadd.f32 %v3206, %v3366
      %v3368 = vpop.f32.mrf.mxu0
      %v3369 = vpop.f32.mrf.mxu0
      %v3370 = vadd.f32 %v3209, %v3369
      %v3371 = vpop.f32.mrf.mxu0
      %3372 = vmatprep.mubr.bf16.mxu0 %v2297
      %3373 = vmatmul.mubr.bf16.gmra.mxu0 %v2296
      %v3374 = vpop.f32.mrf.mxu0
      %v3375 = vadd.f32 %v3214, %v3374
      %v3376 = vpop.f32.mrf.mxu0
      %v3377 = vpop.f32.mrf.mxu0
      %v3378 = vadd.f32 %v3217, %v3377
      %v3379 = vpop.f32.mrf.mxu0
      %3380 = vmatprep.mubr.bf16.mxu0 %v2306
      %3381 = vmatmul.mubr.bf16.gmra.mxu0 %v2305
      %v3382 = vpop.f32.mrf.mxu0
      %v3383 = vadd.f32 %v3222, %v3382
      %v3384 = vpop.f32.mrf.mxu0
      %v3385 = vpop.f32.mrf.mxu0
      %v3386 = vadd.f32 %v3225, %v3385
      %v3387 = vpop.f32.mrf.mxu0
      %3388 = vmatprep.mubr.bf16.mxu0 %v2315
      %3389 = vmatmul.mubr.bf16.gmra.mxu0 %v2314
      %v3390 = vpop.f32.mrf.mxu0
      %v3391 = vadd.f32 %v3230, %v3390
      %v3392 = vpop.f32.mrf.mxu0
      %v3393 = vpop.f32.mrf.mxu0
      %v3394 = vadd.f32 %v3233, %v3393
      %v3395 = vpop.f32.mrf.mxu0
      %3396 = vmatprep.mubr.bf16.mxu0 %v2324
      %3397 = vmatmul.mubr.bf16.gmra.mxu0 %v2323
      %v3398 = vpop.f32.mrf.mxu0
      %v3399 = vadd.f32 %v3238, %v3398
      %v3400 = vpop.f32.mrf.mxu0
      %v3401 = vpop.f32.mrf.mxu0
      %v3402 = vadd.f32 %v3241, %v3401
      %v3403 = vpop.f32.mrf.mxu0
      %3404 = vmatprep.mubr.bf16.mxu0 %v2333
      %3405 = vmatmul.mubr.bf16.gmra.mxu0 %v2332
      %v3406 = vpop.f32.mrf.mxu0
      %v3407 = vadd.f32 %v3246, %v3406
      %v3408 = vpop.f32.mrf.mxu0
      %v3409 = vpop.f32.mrf.mxu0
      %v3410 = vadd.f32 %v3249, %v3409
      %v3411 = vpop.f32.mrf.mxu0
      %3412 = vmatprep.mubr.bf16.mxu0 %v2342
      %3413 = vmatmul.mubr.bf16.gmra.mxu0 %v2341
      %v3414 = vpop.f32.mrf.mxu0
      %v3415 = vadd.f32 %v3254, %v3414
      %v3416 = vpop.f32.mrf.mxu0
      %v3417 = vpop.f32.mrf.mxu0
      %v3418 = vadd.f32 %v3257, %v3417
      %v3419 = vpop.f32.mrf.mxu0
      %3420 = vmatprep.mubr.bf16.mxu0 %v2351
      %3421 = vmatmul.mubr.bf16.gmra.mxu0 %v2350
      %v3422 = vpop.f32.mrf.mxu0
      %v3423 = vadd.f32 %v3262, %v3422
      %v3424 = vpop.f32.mrf.mxu0
      %v3425 = vpop.f32.mrf.mxu0
      %v3426 = vadd.f32 %v3265, %v3425
      %v3427 = vpop.f32.mrf.mxu0
      %3428 = vmatprep.mubr.bf16.mxu0 %v2360
      %3429 = vmatmul.mubr.bf16.gmra.mxu0 %v2359
      %v3430 = vpop.f32.mrf.mxu0
      %v3431 = vadd.f32 %v3270, %v3430
      %v3432 = vpop.f32.mrf.mxu0
      %v3433 = vpop.f32.mrf.mxu0
      %v3434 = vadd.f32 %v3273, %v3433
      %v3435 = vpop.f32.mrf.mxu0
      %3436 = vmatprep.mubr.bf16.mxu0 %v2369
      %3437 = vmatmul.mubr.bf16.gmra.mxu0 %v2368
      %v3438 = vpop.f32.mrf.mxu0
      %v3439 = vadd.f32 %v3278, %v3438
      %v3440 = vpop.f32.mrf.mxu0
      %v3441 = vpop.f32.mrf.mxu0
      %v3442 = vadd.f32 %v3281, %v3441
      %v3443 = vpop.f32.mrf.mxu0
      %3444 = vmatprep.mubr.bf16.mxu0 %v2378
      %3445 = vmatmul.mubr.bf16.gmra.mxu0 %v2377
      %v3446 = vpop.f32.mrf.mxu0
      %v3447 = vadd.f32 %v3286, %v3446
      %v3448 = vpop.f32.mrf.mxu0
      %v3449 = vpop.f32.mrf.mxu0
      %v3450 = vadd.f32 %v3289, %v3449
      %v3451 = vpop.f32.mrf.mxu0
      %3452 = vmatprep.mubr.bf16.mxu0 %v2387
      %3453 = vmatmul.mubr.bf16.gmra.mxu0 %v2386
      %v3454 = vpop.f32.mrf.mxu0
      %v3455 = vadd.f32 %v3294, %v3454
      %v3456 = vpop.f32.mrf.mxu0
      %v3457 = vpop.f32.mrf.mxu0
      %v3458 = vadd.f32 %v3297, %v3457
      %v3459 = vpop.f32.mrf.mxu0
      %3460 = vmatprep.mubr.bf16.mxu0 %v2396
      %3461 = vmatmul.mubr.bf16.gmra.mxu0 %v2395
      %v3462 = vpop.f32.mrf.mxu0
      %v3463 = vadd.f32 %v3302, %v3462
      %v3464 = vpop.f32.mrf.mxu0
      %v3465 = vpop.f32.mrf.mxu0
      %v3466 = vadd.f32 %v3305, %v3465
      %v3467 = vpop.f32.mrf.mxu0
      %3468 = vmatprep.mubr.bf16.mxu0 %v2405
      %3469 = vmatmul.mubr.bf16.gmra.mxu0 %v2404
      %v3470 = vpop.f32.mrf.mxu0
      %v3471 = vadd.f32 %v3310, %v3470
      %v3472 = vpop.f32.mrf.mxu0
      %v3473 = vpop.f32.mrf.mxu0
      %v3474 = vadd.f32 %v3313, %v3473
      %v3475 = vpop.f32.mrf.mxu0
      %3476 = vmatprep.mubr.bf16.mxu0 %v2414
      %3477 = vmatmul.mubr.bf16.gmra.mxu0 %v2413
      %v3478 = vpop.f32.mrf.mxu0
      %v3479 = vadd.f32 %v3318, %v3478
      %v3480 = vpop.f32.mrf.mxu0
      %v3481 = vpop.f32.mrf.mxu0
      %v3482 = vadd.f32 %v3321, %v3481
      %v3483 = vpop.f32.mrf.mxu0
      %3484 = vmatprep.mubr.bf16.mxu0 %v2423
      %3485 = vmatmul.mubr.bf16.gmra.mxu0 %v2422
      %v3486 = vpop.f32.mrf.mxu0
      %v3487 = vadd.f32 %v3326, %v3486
      %v3488 = vpop.f32.mrf.mxu0
      %v3489 = vpop.f32.mrf.mxu0
      %v3490 = vadd.f32 %v3329, %v3489
      %v3491 = vpop.f32.mrf.mxu0
      %3492 = vdwg.mxu0
      %3493 = vmatprep.subr.bf16.mxu0 0
      %3494 = vmatpush1.bf16.msra.mxu0 %v2921
      %3495 = vmatprep.subr.bf16.mxu0 0
      %3496 = vmatpush1.bf16.msra.mxu0 %v2920
      %3497 = vmatprep.subr.bf16.mxu0 0
      %3498 = vmatpush1.bf16.msra.mxu0 %v2919
      %3499 = vmatprep.subr.bf16.mxu0 0
      %3500 = vmatpush1.bf16.msra.mxu0 %v2918
      %3501 = vmatprep.subr.bf16.mxu0 0
      %3502 = vmatpush1.bf16.msra.mxu0 %v2917
      %3503 = vmatprep.subr.bf16.mxu0 0
      %3504 = vmatpush1.bf16.msra.mxu0 %v2916
      %3505 = vmatprep.subr.bf16.mxu0 0
      %3506 = vmatpush1.bf16.msra.mxu0 %v2915
      %3507 = vmatprep.subr.bf16.mxu0 0
      %3508 = vmatpush1.bf16.msra.mxu0 %v2914
      %3509 = vmatprep.subr.bf16.mxu0 0
      %3510 = vmatpush2.bf16.msra.mxu0 %v2929
      %3511 = vmatprep.subr.bf16.mxu0 0
      %3512 = vmatpush2.bf16.msra.mxu0 %v2928
      %3513 = vmatprep.subr.bf16.mxu0 0
      %3514 = vmatpush2.bf16.msra.mxu0 %v2927
      %3515 = vmatprep.subr.bf16.mxu0 0
      %3516 = vmatpush2.bf16.msra.mxu0 %v2926
      %3517 = vmatprep.subr.bf16.mxu0 0
      %3518 = vmatpush2.bf16.msra.mxu0 %v2925
      %3519 = vmatprep.subr.bf16.mxu0 0
      %3520 = vmatpush2.bf16.msra.mxu0 %v2924
      %3521 = vmatprep.subr.bf16.mxu0 0
      %3522 = vmatpush2.bf16.msra.mxu0 %v2923
      %3523 = vmatprep.subr.bf16.mxu0 0
      %3524 = vmatpush2.bf16.msra.mxu0 %v2922
      %3525 = vmatprep.mubr.bf16.mxu0 %v2290
      %3526 = vmatmul.mubr.bf16.gmra.mxu0 %v2289
      %v3527 = vpop.f32.mrf.mxu0
      %v3528 = vadd.f32 %v3367, %v3527
      %v3529 = vpop.f32.mrf.mxu0
      %v3530 = vpop.f32.mrf.mxu0
      %v3531 = vadd.f32 %v3370, %v3530
      %v3532 = vpop.f32.mrf.mxu0
      %3533 = vmatprep.mubr.bf16.mxu0 %v2299
      %3534 = vmatmul.mubr.bf16.gmra.mxu0 %v2298
      %v3535 = vpop.f32.mrf.mxu0
      %v3536 = vadd.f32 %v3375, %v3535
      %v3537 = vpop.f32.mrf.mxu0
      %v3538 = vpop.f32.mrf.mxu0
      %v3539 = vadd.f32 %v3378, %v3538
      %v3540 = vpop.f32.mrf.mxu0
      %3541 = vmatprep.mubr.bf16.mxu0 %v2308
      %3542 = vmatmul.mubr.bf16.gmra.mxu0 %v2307
      %v3543 = vpop.f32.mrf.mxu0
      %v3544 = vadd.f32 %v3383, %v3543
      %v3545 = vpop.f32.mrf.mxu0
      %v3546 = vpop.f32.mrf.mxu0
      %v3547 = vadd.f32 %v3386, %v3546
      %v3548 = vpop.f32.mrf.mxu0
      %3549 = vmatprep.mubr.bf16.mxu0 %v2317
      %3550 = vmatmul.mubr.bf16.gmra.mxu0 %v2316
      %v3551 = vpop.f32.mrf.mxu0
      %v3552 = vadd.f32 %v3391, %v3551
      %v3553 = vpop.f32.mrf.mxu0
      %v3554 = vpop.f32.mrf.mxu0
      %v3555 = vadd.f32 %v3394, %v3554
      %v3556 = vpop.f32.mrf.mxu0
      %3557 = vmatprep.mubr.bf16.mxu0 %v2326
      %3558 = vmatmul.mubr.bf16.gmra.mxu0 %v2325
      %v3559 = vpop.f32.mrf.mxu0
      %v3560 = vadd.f32 %v3399, %v3559
      %v3561 = vpop.f32.mrf.mxu0
      %v3562 = vpop.f32.mrf.mxu0
      %v3563 = vadd.f32 %v3402, %v3562
      %v3564 = vpop.f32.mrf.mxu0
      %3565 = vmatprep.mubr.bf16.mxu0 %v2335
      %3566 = vmatmul.mubr.bf16.gmra.mxu0 %v2334
      %v3567 = vpop.f32.mrf.mxu0
      %v3568 = vadd.f32 %v3407, %v3567
      %v3569 = vpop.f32.mrf.mxu0
      %v3570 = vpop.f32.mrf.mxu0
      %v3571 = vadd.f32 %v3410, %v3570
      %v3572 = vpop.f32.mrf.mxu0
      %3573 = vmatprep.mubr.bf16.mxu0 %v2344
      %3574 = vmatmul.mubr.bf16.gmra.mxu0 %v2343
      %v3575 = vpop.f32.mrf.mxu0
      %v3576 = vadd.f32 %v3415, %v3575
      %v3577 = vpop.f32.mrf.mxu0
      %v3578 = vpop.f32.mrf.mxu0
      %v3579 = vadd.f32 %v3418, %v3578
      %v3580 = vpop.f32.mrf.mxu0
      %3581 = vmatprep.mubr.bf16.mxu0 %v2353
      %3582 = vmatmul.mubr.bf16.gmra.mxu0 %v2352
      %v3583 = vpop.f32.mrf.mxu0
      %v3584 = vadd.f32 %v3423, %v3583
      %v3585 = vpop.f32.mrf.mxu0
      %v3586 = vpop.f32.mrf.mxu0
      %v3587 = vadd.f32 %v3426, %v3586
      %v3588 = vpop.f32.mrf.mxu0
      %3589 = vmatprep.mubr.bf16.mxu0 %v2362
      %3590 = vmatmul.mubr.bf16.gmra.mxu0 %v2361
      %v3591 = vpop.f32.mrf.mxu0
      %v3592 = vadd.f32 %v3431, %v3591
      %v3593 = vpop.f32.mrf.mxu0
      %v3594 = vpop.f32.mrf.mxu0
      %v3595 = vadd.f32 %v3434, %v3594
      %v3596 = vpop.f32.mrf.mxu0
      %3597 = vmatprep.mubr.bf16.mxu0 %v2371
      %3598 = vmatmul.mubr.bf16.gmra.mxu0 %v2370
      %v3599 = vpop.f32.mrf.mxu0
      %v3600 = vadd.f32 %v3439, %v3599
      %v3601 = vpop.f32.mrf.mxu0
      %v3602 = vpop.f32.mrf.mxu0
      %v3603 = vadd.f32 %v3442, %v3602
      %v3604 = vpop.f32.mrf.mxu0
      %3605 = vmatprep.mubr.bf16.mxu0 %v2380
      %3606 = vmatmul.mubr.bf16.gmra.mxu0 %v2379
      %v3607 = vpop.f32.mrf.mxu0
      %v3608 = vadd.f32 %v3447, %v3607
      %v3609 = vpop.f32.mrf.mxu0
      %v3610 = vpop.f32.mrf.mxu0
      %v3611 = vadd.f32 %v3450, %v3610
      %v3612 = vpop.f32.mrf.mxu0
      %3613 = vmatprep.mubr.bf16.mxu0 %v2389
      %3614 = vmatmul.mubr.bf16.gmra.mxu0 %v2388
      %v3615 = vpop.f32.mrf.mxu0
      %v3616 = vadd.f32 %v3455, %v3615
      %v3617 = vpop.f32.mrf.mxu0
      %v3618 = vpop.f32.mrf.mxu0
      %v3619 = vadd.f32 %v3458, %v3618
      %v3620 = vpop.f32.mrf.mxu0
      %3621 = vmatprep.mubr.bf16.mxu0 %v2398
      %3622 = vmatmul.mubr.bf16.gmra.mxu0 %v2397
      %v3623 = vpop.f32.mrf.mxu0
      %v3624 = vadd.f32 %v3463, %v3623
      %v3625 = vpop.f32.mrf.mxu0
      %v3626 = vpop.f32.mrf.mxu0
      %v3627 = vadd.f32 %v3466, %v3626
      %v3628 = vpop.f32.mrf.mxu0
      %3629 = vmatprep.mubr.bf16.mxu0 %v2407
      %3630 = vmatmul.mubr.bf16.gmra.mxu0 %v2406
      %v3631 = vpop.f32.mrf.mxu0
      %v3632 = vadd.f32 %v3471, %v3631
      %v3633 = vpop.f32.mrf.mxu0
      %v3634 = vpop.f32.mrf.mxu0
      %v3635 = vadd.f32 %v3474, %v3634
      %v3636 = vpop.f32.mrf.mxu0
      %3637 = vmatprep.mubr.bf16.mxu0 %v2416
      %3638 = vmatmul.mubr.bf16.gmra.mxu0 %v2415
      %v3639 = vpop.f32.mrf.mxu0
      %v3640 = vadd.f32 %v3479, %v3639
      %v3641 = vpop.f32.mrf.mxu0
      %v3642 = vpop.f32.mrf.mxu0
      %v3643 = vadd.f32 %v3482, %v3642
      %v3644 = vpop.f32.mrf.mxu0
      %3645 = vmatprep.mubr.bf16.mxu0 %v2425
      %3646 = vmatmul.mubr.bf16.gmra.mxu0 %v2424
      %v3647 = vpop.f32.mrf.mxu0
      %v3648 = vadd.f32 %v3487, %v3647
      %v3649 = vpop.f32.mrf.mxu0
      %v3650 = vpop.f32.mrf.mxu0
      %v3651 = vadd.f32 %v3490, %v3650
      %v3652 = vpop.f32.mrf.mxu0
      %3653 = vdwg.mxu0
      %3654 = vmatprep.subr.bf16.mxu0 0
      %3655 = vmatpush1.bf16.msra.mxu0 %v2937
      %3656 = vmatprep.subr.bf16.mxu0 0
      %3657 = vmatpush1.bf16.msra.mxu0 %v2936
      %3658 = vmatprep.subr.bf16.mxu0 0
      %3659 = vmatpush1.bf16.msra.mxu0 %v2935
      %3660 = vmatprep.subr.bf16.mxu0 0
      %3661 = vmatpush1.bf16.msra.mxu0 %v2934
      %3662 = vmatprep.subr.bf16.mxu0 0
      %3663 = vmatpush1.bf16.msra.mxu0 %v2933
      %3664 = vmatprep.subr.bf16.mxu0 0
      %3665 = vmatpush1.bf16.msra.mxu0 %v2932
      %3666 = vmatprep.subr.bf16.mxu0 0
      %3667 = vmatpush1.bf16.msra.mxu0 %v2931
      %3668 = vmatprep.subr.bf16.mxu0 0
      %3669 = vmatpush1.bf16.msra.mxu0 %v2930
      %3670 = vmatprep.subr.bf16.mxu0 0
      %3671 = vmatpush2.bf16.msra.mxu0 0
      %3672 = vmatprep.subr.bf16.mxu0 0
      %3673 = vmatpush2.bf16.msra.mxu0 0
      %3674 = vmatprep.subr.bf16.mxu0 0
      %3675 = vmatpush2.bf16.msra.mxu0 0
      %3676 = vmatprep.subr.bf16.mxu0 0
      %3677 = vmatpush2.bf16.msra.mxu0 0
      %3678 = vmatprep.subr.bf16.mxu0 0
      %3679 = vmatpush2.bf16.msra.mxu0 0
      %3680 = vmatprep.subr.bf16.mxu0 0
      %3681 = vmatpush2.bf16.msra.mxu0 0
      %3682 = vmatprep.subr.bf16.mxu0 0
      %3683 = vmatpush2.bf16.msra.mxu0 0
      %3684 = vmatprep.subr.bf16.mxu0 0
      %3685 = vmatpush2.bf16.msra.mxu0 0
      %3686 = vmatprep.mubr.bf16.mxu0 0
      %3687 = vmatmul.mubr.bf16.gmra.mxu0 %v2291
      %v3688 = vpop.f32.mrf.mxu0
      %v3689 = vadd.f32 %v3528, %v3688
      %v3690 = vpop.f32.mrf.mxu0
      %v3691 = vpop.f32.mrf.mxu0
      %v3692 = vadd.f32 %v3531, %v3691
      %v3693 = vpop.f32.mrf.mxu0
      %3694 = vmatprep.mubr.bf16.mxu0 0
      %3695 = vmatmul.mubr.bf16.gmra.mxu0 %v2300
      %v3696 = vpop.f32.mrf.mxu0
      %v3697 = vadd.f32 %v3536, %v3696
      %v3698 = vpop.f32.mrf.mxu0
      %v3699 = vpop.f32.mrf.mxu0
      %v3700 = vadd.f32 %v3539, %v3699
      %v3701 = vpop.f32.mrf.mxu0
      %3702 = vmatprep.mubr.bf16.mxu0 0
      %3703 = vmatmul.mubr.bf16.gmra.mxu0 %v2309
      %v3704 = vpop.f32.mrf.mxu0
      %v3705 = vadd.f32 %v3544, %v3704
      %v3706 = vpop.f32.mrf.mxu0
      %v3707 = vpop.f32.mrf.mxu0
      %v3708 = vadd.f32 %v3547, %v3707
      %v3709 = vpop.f32.mrf.mxu0
      %3710 = vmatprep.mubr.bf16.mxu0 0
      %3711 = vmatmul.mubr.bf16.gmra.mxu0 %v2318
      %v3712 = vpop.f32.mrf.mxu0
      %v3713 = vadd.f32 %v3552, %v3712
      %v3714 = vpop.f32.mrf.mxu0
      %v3715 = vpop.f32.mrf.mxu0
      %v3716 = vadd.f32 %v3555, %v3715
      %v3717 = vpop.f32.mrf.mxu0
      %3718 = vmatprep.mubr.bf16.mxu0 0
      %3719 = vmatmul.mubr.bf16.gmra.mxu0 %v2327
      %v3720 = vpop.f32.mrf.mxu0
      %v3721 = vadd.f32 %v3560, %v3720
      %v3722 = vpop.f32.mrf.mxu0
      %v3723 = vpop.f32.mrf.mxu0
      %v3724 = vadd.f32 %v3563, %v3723
      %v3725 = vpop.f32.mrf.mxu0
      %3726 = vmatprep.mubr.bf16.mxu0 0
      %3727 = vmatmul.mubr.bf16.gmra.mxu0 %v2336
      %v3728 = vpop.f32.mrf.mxu0
      %v3729 = vadd.f32 %v3568, %v3728
      %v3730 = vpop.f32.mrf.mxu0
      %v3731 = vpop.f32.mrf.mxu0
      %v3732 = vadd.f32 %v3571, %v3731
      %v3733 = vpop.f32.mrf.mxu0
      %3734 = vmatprep.mubr.bf16.mxu0 0
      %3735 = vmatmul.mubr.bf16.gmra.mxu0 %v2345
      %v3736 = vpop.f32.mrf.mxu0
      %v3737 = vadd.f32 %v3576, %v3736
      %v3738 = vpop.f32.mrf.mxu0
      %v3739 = vpop.f32.mrf.mxu0
      %v3740 = vadd.f32 %v3579, %v3739
      %v3741 = vpop.f32.mrf.mxu0
      %3742 = vmatprep.mubr.bf16.mxu0 0
      %3743 = vmatmul.mubr.bf16.gmra.mxu0 %v2354
      %v3744 = vpop.f32.mrf.mxu0
      %v3745 = vadd.f32 %v3584, %v3744
      %v3746 = vpop.f32.mrf.mxu0
      %v3747 = vpop.f32.mrf.mxu0
      %v3748 = vadd.f32 %v3587, %v3747
      %v3749 = vpop.f32.mrf.mxu0
      %3750 = vmatprep.mubr.bf16.mxu0 0
      %3751 = vmatmul.mubr.bf16.gmra.mxu0 %v2363
      %v3752 = vpop.f32.mrf.mxu0
      %v3753 = vadd.f32 %v3592, %v3752
      %v3754 = vpop.f32.mrf.mxu0
      %v3755 = vpop.f32.mrf.mxu0
      %v3756 = vadd.f32 %v3595, %v3755
      %v3757 = vpop.f32.mrf.mxu0
      %3758 = vmatprep.mubr.bf16.mxu0 0
      %3759 = vmatmul.mubr.bf16.gmra.mxu0 %v2372
      %v3760 = vpop.f32.mrf.mxu0
      %v3761 = vadd.f32 %v3600, %v3760
      %v3762 = vpop.f32.mrf.mxu0
      %v3763 = vpop.f32.mrf.mxu0
      %v3764 = vadd.f32 %v3603, %v3763
      %v3765 = vpop.f32.mrf.mxu0
      %3766 = vmatprep.mubr.bf16.mxu0 0
      %3767 = vmatmul.mubr.bf16.gmra.mxu0 %v2381
      %v3768 = vpop.f32.mrf.mxu0
      %v3769 = vadd.f32 %v3608, %v3768
      %v3770 = vpop.f32.mrf.mxu0
      %v3771 = vpop.f32.mrf.mxu0
      %v3772 = vadd.f32 %v3611, %v3771
      %v3773 = vpop.f32.mrf.mxu0
      %3774 = vmatprep.mubr.bf16.mxu0 0
      %3775 = vmatmul.mubr.bf16.gmra.mxu0 %v2390
      %v3776 = vpop.f32.mrf.mxu0
      %v3777 = vadd.f32 %v3616, %v3776
      %v3778 = vpop.f32.mrf.mxu0
      %v3779 = vpop.f32.mrf.mxu0
      %v3780 = vadd.f32 %v3619, %v3779
      %v3781 = vpop.f32.mrf.mxu0
      %3782 = vmatprep.mubr.bf16.mxu0 0
      %3783 = vmatmul.mubr.bf16.gmra.mxu0 %v2399
      %v3784 = vpop.f32.mrf.mxu0
      %v3785 = vadd.f32 %v3624, %v3784
      %v3786 = vpop.f32.mrf.mxu0
      %v3787 = vpop.f32.mrf.mxu0
      %v3788 = vadd.f32 %v3627, %v3787
      %v3789 = vpop.f32.mrf.mxu0
      %3790 = vmatprep.mubr.bf16.mxu0 0
      %3791 = vmatmul.mubr.bf16.gmra.mxu0 %v2408
      %v3792 = vpop.f32.mrf.mxu0
      %v3793 = vadd.f32 %v3632, %v3792
      %v3794 = vpop.f32.mrf.mxu0
      %v3795 = vpop.f32.mrf.mxu0
      %v3796 = vadd.f32 %v3635, %v3795
      %v3797 = vpop.f32.mrf.mxu0
      %3798 = vmatprep.mubr.bf16.mxu0 0
      %3799 = vmatmul.mubr.bf16.gmra.mxu0 %v2417
      %v3800 = vpop.f32.mrf.mxu0
      %v3801 = vadd.f32 %v3640, %v3800
      %v3802 = vpop.f32.mrf.mxu0
      %v3803 = vpop.f32.mrf.mxu0
      %v3804 = vadd.f32 %v3643, %v3803
      %v3805 = vpop.f32.mrf.mxu0
      %3806 = vmatprep.mubr.bf16.mxu0 0
      %3807 = vmatmul.mubr.bf16.gmra.mxu0 %v2426
      %v3808 = vpop.f32.mrf.mxu0
      %v3809 = vadd.f32 %v3648, %v3808
      %v3810 = vpop.f32.mrf.mxu0
      %v3811 = vpop.f32.mrf.mxu0
      %v3812 = vadd.f32 %v3651, %v3811
      %v3813 = vpop.f32.mrf.mxu0
      %3814 = vdwg.mxu0
      %v3815 = vmax.f32 %v3689, 0.0
      %v3816 = vmax.f32 %v3692, 0.0
      %v3817 = vmax.f32 %v3697, 0.0
      %v3818 = vmax.f32 %v3700, 0.0
      %v3819 = vmax.f32 %v3705, 0.0
      %v3820 = vmax.f32 %v3708, 0.0
      %v3821 = vmax.f32 %v3713, 0.0
      %v3822 = vmax.f32 %v3716, 0.0
      %v3823 = vmax.f32 %v3721, 0.0
      %v3824 = vmax.f32 %v3724, 0.0
      %v3825 = vmax.f32 %v3729, 0.0
      %v3826 = vmax.f32 %v3732, 0.0
      %v3827 = vmax.f32 %v3737, 0.0
      %v3828 = vmax.f32 %v3740, 0.0
      %v3829 = vmax.f32 %v3745, 0.0
      %v3830 = vmax.f32 %v3748, 0.0
      %v3831 = vmax.f32 %v3753, 0.0
      %v3832 = vmax.f32 %v3756, 0.0
      %v3833 = vmax.f32 %v3761, 0.0
      %v3834 = vmax.f32 %v3764, 0.0
      %v3835 = vmax.f32 %v3769, 0.0
      %v3836 = vmax.f32 %v3772, 0.0
      %v3837 = vmax.f32 %v3777, 0.0
      %v3838 = vmax.f32 %v3780, 0.0
      %v3839 = vmax.f32 %v3785, 0.0
      %v3840 = vmax.f32 %v3788, 0.0
      %v3841 = vmax.f32 %v3793, 0.0
      %v3842 = vmax.f32 %v3796, 0.0
      %v3843 = vmax.f32 %v3801, 0.0
      %v3844 = vmax.f32 %v3804, 0.0
      %v3845 = vmax.f32 %v3809, 0.0
      %v3846 = vmax.f32 %v3812, 0.0
      %3847 = vst [vmem:[%s224] sm:$0xff] %v3815
      %3848 = vst [vmem:[%s224 + $0x8] sm:$0xff] %v3816
      %3849 = vst [vmem:[%s224 + $0x10] sm:$0xff] %v3817
      %3850 = vst [vmem:[%s224 + $0x18] sm:$0xff] %v3818
      %3851 = vst [vmem:[%s224 + $0x20] sm:$0xff] %v3819
      %3852 = vst [vmem:[%s224 + $0x28] sm:$0xff] %v3820
      %3853 = vst [vmem:[%s224 + $0x30] sm:$0xff] %v3821
      %3854 = vst [vmem:[%s224 + $0x38] sm:$0xff] %v3822
      %3855 = vst [vmem:[%s224 + $0x40] sm:$0xff] %v3823
      %3856 = vst [vmem:[%s224 + $0x48] sm:$0xff] %v3824
      %3857 = vst [vmem:[%s224 + $0x50] sm:$0xff] %v3825
      %3858 = vst [vmem:[%s224 + $0x58] sm:$0xff] %v3826
      %3859 = vst [vmem:[%s224 + $0x60] sm:$0xff] %v3827
      %3860 = vst [vmem:[%s224 + $0x68] sm:$0xff] %v3828
      %3861 = vst [vmem:[%s224 + $0x70] sm:$0xff] %v3829
      %3862 = vst [vmem:[%s224 + $0x78] sm:$0xff] %v3830
      %3863 = vst [vmem:[%s224 + $0x80] sm:$0xff] %v3831
      %3864 = vst [vmem:[%s224 + $0x88] sm:$0xff] %v3832
      %3865 = vst [vmem:[%s224 + $0x90] sm:$0xff] %v3833
      %3866 = vst [vmem:[%s224 + $0x98] sm:$0xff] %v3834
      %3867 = vst [vmem:[%s224 + $0xa0] sm:$0xff] %v3835
      %3868 = vst [vmem:[%s224 + $0xa8] sm:$0xff] %v3836
      %3869 = vst [vmem:[%s224 + $0xb0] sm:$0xff] %v3837
      %3870 = vst [vmem:[%s224 + $0xb8] sm:$0xff] %v3838
      %3871 = vst [vmem:[%s224 + $0xc0] sm:$0xff] %v3839
      %3872 = vst [vmem:[%s224 + $0xc8] sm:$0xff] %v3840
      %3873 = vst [vmem:[%s224 + $0xd0] sm:$0xff] %v3841
      %3874 = vst [vmem:[%s224 + $0xd8] sm:$0xff] %v3842
      %3875 = vst [vmem:[%s224 + $0xe0] sm:$0xff] %v3843
      %3876 = vst [vmem:[%s224 + $0xe8] sm:$0xff] %v3844
      %3877 = vst [vmem:[%s224 + $0xf0] sm:$0xff] %v3845
      %3878 = vst [vmem:[%s224 + $0xf8] sm:$0xff] %v3846
      %p3879 = scmp.lt.s32.totalorder %s16, 1
      %s3880 = scalar_select %p3879, %s16, 1
      %s3881 = smul.addr %s3880, 32
      %s3882 = smul.addr %s3881, 8
      %s3883 = scalar_lea.vmem %s5, %s3882
      // Predicated region
      $region41: #{up_forward.1} parent=39 // pred_check
        %p3884 = pneg %p144
      $region42: #{up_forward.1} parent=39 // pred_check_branch
        %3886 = sbr.rel (%p3884) target = $region44
      $region43: #{up_forward.1} parent=39 // pred_region
        _
      $region44: #{up_forward.1} parent=39 // pred_fallthru
        _
    $region40: #{up_forward.1} parent=5 // pred_fallthru
      _
    %p3887 = scmp.le.s32.totalorder 2, %s11
    // Predicated region
    $region45: #{up_forward.1} parent=5 // pred_check
      %p3888 = pneg %p3887
    $region46: #{up_forward.1} parent=5 // pred_check_branch
      %3890 = sbr.rel (%p3888) target = $region48
    $region47: #{up_forward.1} parent=5 // pred_region
      %s3891 = ssub.s32 %s11, 2
      // Predicated region
      $region49: #{up_forward.1} parent=47 // pred_check
        %p3892 = pneg %p150
      $region50: #{up_forward.1} parent=47 // pred_check_branch
        %3894 = sbr.rel (%p3892) target = $region52
      $region51: #{up_forward.1} parent=47 // pred_region
        %p3895 = scmp.lt.s32.totalorder %s17, 1
        %s3896 = scalar_select %p3895, %s17, 1
        %s3897 = smul.addr %s3896, 32
        %s3898 = smul.addr %s3897, 8
        %s3899 = scalar_lea.vmem %s5, %s3898
      $region52: #{up_forward.1} parent=47 // pred_fallthru
        _
    $region48: #{up_forward.1} parent=5 // pred_fallthru
      _
  $region6: #{up_forward.1} parent=0 // loop_footer
    %s15 = sadd.s32 1, %s11
  $region7: #{up_forward.1} parent=0 // loop_footer_branch
    %10 = sbr.rel target = $region3
  $region8: #{up_forward.1} parent=0 // loop_exit
    _

</llo_original>
